<compile_context>
chip_gen: v6e
topology: v6e:2x2x1
jax: 0.10.0
libtpu: 0.0.40
codegen_flags: <defaults>
</compile_context>

<pallas_src>
import math
import functools

import jax
import jax.numpy as jnp
from jax import lax
from jax.experimental import pallas as pl
from jax.experimental.pallas import tpu as pltpu

F32 = jnp.float32
BF16 = jnp.bfloat16


def _vmem_limit_bytes():
    cap = 64 * 1024 * 1024                      # conservative fallback (v7x)
    try:
        info = pltpu.get_tpu_info()
        cap = int(getattr(info, "vmem_capacity_bytes", cap)) or cap
    except Exception:
        pass
    return min((cap * 3) // 4, 96 * 1024 * 1024)


_VMEM_LIMIT = _vmem_limit_bytes()
_ROW_TARGET = 1024 if _VMEM_LIMIT >= (64 << 20) else 512


def _row_tile(M):
    """Largest row-tile <= target that divides M (multiple of 8 preferred)."""
    for t in (1024, 512, 256, 128, 64, 32, 16, 8):
        if t <= _ROW_TARGET and t <= M and M % t == 0:
            return t
    return M


def _batch_tile(B):
    return 8 if B % 8 == 0 else B


def _cp(*sem):
    return pltpu.CompilerParams(dimension_semantics=sem,
                                vmem_limit_bytes=_VMEM_LIMIT)


# ----------------------------------------------------------------------------
# 1) encoder LayerNorm + fused QKV projection  (token-tile grid)
# ----------------------------------------------------------------------------
def pallas_encode_qkv(x, ln_g, ln_b, w_qkv, b_qkv):
    M, H = x.shape
    N3 = w_qkv.shape[1]
    tm = _row_tile(M)

    def kernel(x_ref, g_ref, b_ref, w_ref, bq_ref, seq_ref, qkv_ref):
        xv = x_ref[...]
        mu = jnp.mean(xv, axis=-1, keepdims=True)
        var = jnp.mean((xv - mu) ** 2, axis=-1, keepdims=True)
        seq = (xv - mu) * lax.rsqrt(var + 1e-5) * g_ref[...] + b_ref[...]
        seq_ref[...] = seq.astype(seq_ref.dtype)
        qkv_ref[...] = (jnp.dot(seq.astype(BF16), w_ref[...],
                                preferred_element_type=jnp.float32)
                        + bq_ref[...]).astype(qkv_ref.dtype)

    return pl.pallas_call(
        kernel,
        out_shape=(jax.ShapeDtypeStruct((M, H), BF16),
                   jax.ShapeDtypeStruct((M, N3), BF16)),
        grid=(M // tm,),
        in_specs=[pl.BlockSpec((tm, H), lambda i: (i, 0)),
                  pl.BlockSpec((1, H), lambda i: (0, 0)),
                  pl.BlockSpec((1, H), lambda i: (0, 0)),
                  pl.BlockSpec((H, N3), lambda i: (0, 0)),
                  pl.BlockSpec((1, N3), lambda i: (0, 0))],
        out_specs=(pl.BlockSpec((tm, H), lambda i: (i, 0)),
                   pl.BlockSpec((tm, N3), lambda i: (i, 0))),
        compiler_params=_cp("parallel"),
    )(x, ln_g, ln_b, w_qkv, b_qkv)


# ----------------------------------------------------------------------------
# 2) multi-head attention + output projection + residual + LayerNorm (fused)
# ----------------------------------------------------------------------------
def pallas_attention(qkv, seq2, mask3, wo, bo, ln_g, ln_b, num_heads, B, S, H):
    dh = H // num_heads
    scale = 1.0 / math.sqrt(dh)
    nh = num_heads

    def kernel(qkv_ref, seq_ref, m_ref, wo_ref, bo_ref, g_ref, b_ref, o_ref):
        blk = qkv_ref[...]                                       # (S, 3H) bf16
        q = jnp.swapaxes(blk[:, 0:H].reshape(S, nh, dh), 0, 1)   # (nh, S, dh)
        k = jnp.swapaxes(blk[:, H:2 * H].reshape(S, nh, dh), 0, 1)
        v = jnp.swapaxes(blk[:, 2 * H:3 * H].reshape(S, nh, dh), 0, 1)

        # batched over heads: contract dh -> (nh, S, S)
        s = lax.dot_general(q, k, (((2,), (2,)), ((0,), (0,))),
                            preferred_element_type=jnp.float32) * scale
        s = s + (1.0 - m_ref[...]) * (-1e9)                      # (1,1,S) bcast
        p = jax.nn.softmax(s, axis=-1)

        # (nh, S, S) x (nh, S, dh) -> (nh, S, dh)
        ctx = lax.dot_general(p.astype(BF16), v, (((2,), (1,)), ((0,), (0,))),
                              preferred_element_type=jnp.float32)
        merged = jnp.swapaxes(ctx, 0, 1).reshape(S, H)           # merge heads

        attn_out = jnp.dot(merged.astype(BF16), wo_ref[...],
                           preferred_element_type=jnp.float32) + bo_ref[...]

        x = seq_ref[...].astype(jnp.float32) + attn_out          # residual
        mu = jnp.mean(x, axis=-1, keepdims=True)
        var = jnp.mean((x - mu) ** 2, axis=-1, keepdims=True)
        o_ref[...] = ((x - mu) * lax.rsqrt(var + 1e-5) * g_ref[...]
                      + b_ref[...]).astype(o_ref.dtype)

    return pl.pallas_call(
        kernel,
        out_shape=jax.ShapeDtypeStruct((B * S, H), BF16),
        grid=(B,),
        in_specs=[pl.BlockSpec((S, 3 * H), lambda b: (b, 0)),
                  pl.BlockSpec((S, H), lambda b: (b, 0)),
                  pl.BlockSpec((1, 1, S), lambda b: (b, 0, 0)),
                  pl.BlockSpec((H, H), lambda b: (0, 0)),
                  pl.BlockSpec((1, H), lambda b: (0, 0)),
                  pl.BlockSpec((1, H), lambda b: (0, 0)),
                  pl.BlockSpec((1, H), lambda b: (0, 0))],
        out_specs=pl.BlockSpec((S, H), lambda b: (b, 0)),
        compiler_params=_cp("parallel"),
    )(qkv, seq2, mask3, wo, bo, ln_g, ln_b)


# ----------------------------------------------------------------------------
# 3) BiLSTM: gate projection fused into the recurrence, grid (batch-tile, dir)
# ----------------------------------------------------------------------------
def pallas_bilstm(attended2, w_ih, b_ih, w_hh, B, S, H):
    """Returns raw hidden states stacked per direction, shape (2, B*S, Hd).

    The input projection x @ W_ih is computed once per (batch-tile, direction)
    grid point (hoisted out of the time recurrence); only h @ W_hh stays on
    the sequential path.  Gate order i, f, g, o (PyTorch).  The residual is
    NOT added here — it is folded into the feature-fusion weights downstream.
    """
    Hd = H // 2
    M = B * S
    tb = _batch_tile(B)
    nb = B // tb

    def kernel(att_ref, wih_ref, bih_ref, whh_ref, out_ref, gx_ref, h_ref):
        d = pl.program_id(1)                                    # 0=fwd, 1=bwd

        # hoisted gate projection for this batch tile / direction
        gx = jnp.dot(att_ref[...], wih_ref[0],
                     preferred_element_type=jnp.float32) + bih_ref[0]
        # (tb*S, 4Hd) -> time-major (S, tb, 4Hd) so per-step reads are dense
        gx_ref[...] = gx.reshape(tb, S, 4 * Hd).transpose(1, 0, 2)

        def step(i, carry):
            h, c = carry
            t = jnp.where(d == 0, i, S - 1 - i)
            g = gx_ref[t] + jnp.dot(h.astype(BF16), whh_ref[0],
                                    preferred_element_type=jnp.float32)
            gi = jax.nn.sigmoid(g[:, 0:Hd])
            gf = jax.nn.sigmoid(g[:, Hd:2 * Hd])
            gg = jnp.tanh(g[:, 2 * Hd:3 * Hd])
            go = jax.nn.sigmoid(g[:, 3 * Hd:4 * Hd])
            c = gf * c + gi * gg
            h = go * jnp.tanh(c)
            h_ref[t] = h
            return (h, c)

        zero = jnp.zeros((tb, Hd), jnp.float32)
        lax.fori_loop(0, S, step, (zero, zero))

        # (S, tb, Hd) -> token-major (tb*S, Hd) block, stored bf16
        out_ref[0] = (h_ref[...].transpose(1, 0, 2)
                      .reshape(tb * S, Hd).astype(out_ref.dtype))

    return pl.pallas_call(
        kernel,
        out_shape=jax.ShapeDtypeStruct((2, M, Hd), BF16),
        grid=(nb, 2),
        in_specs=[pl.BlockSpec((tb * S, H), lambda bi, d: (bi, 0)),
                  pl.BlockSpec((1, H, 4 * Hd), lambda bi, d: (d, 0, 0)),
                  pl.BlockSpec((1, 1, 4 * Hd), lambda bi, d: (d, 0, 0)),
                  pl.BlockSpec((1, Hd, 4 * Hd), lambda bi, d: (d, 0, 0))],
        out_specs=pl.BlockSpec((1, tb * S, Hd), lambda bi, d: (d, bi, 0)),
        scratch_shapes=[pltpu.VMEM((S, tb, 4 * Hd), jnp.float32),
                        pltpu.VMEM((S, tb, Hd), jnp.float32)],
        compiler_params=_cp("parallel", "parallel"),
    )(attended2, w_ih, b_ih, w_hh)


# ----------------------------------------------------------------------------
# 4) feature fusion (residual folded into weights) + all output heads (fused)
# ----------------------------------------------------------------------------
def pallas_fuse_heads(attended2, lstm_h, wa, wf, wb, fb, w_heads, b_heads, H):
    """fused = relu(att @ (W1+W2) + h_f @ W2[:Hd] + h_b @ W2[Hd:] + b)
    head_out = fused @ W_heads + b_heads, tanh applied to the first 2H columns
    (pairing reps) via a lane mask; single full-width lane-dense store.

    Head column layout: [pair_a H | pair_o H | aspect T | opinion T |
                         sentiment | category | zero-pad to 128-mult]."""
    M = attended2.shape[0]
    Hd = H // 2
    Npad = w_heads.shape[1]
    tm = _row_tile(M)

    def kernel(att_ref, l_ref, wa_ref, wf_ref, wb_ref, fb_ref,
               wh_ref, bh_ref, o_ref):
        fused = (jnp.dot(att_ref[...], wa_ref[...],
                         preferred_element_type=jnp.float32)
                 + jnp.dot(l_ref[0], wf_ref[...],
                           preferred_element_type=jnp.float32)
                 + jnp.dot(l_ref[1], wb_ref[...],
                           preferred_element_type=jnp.float32)
                 + fb_ref[...])
        fused = jnp.maximum(fused, 0.0)      # ReLU; Dropout -> identity (eval)
        y = jnp.dot(fused.astype(BF16), wh_ref[...],
                    preferred_element_type=jnp.float32) + bh_ref[...]
        col = lax.broadcasted_iota(jnp.int32, y.shape, 1)
        o_ref[...] = jnp.where(col < 2 * H, jnp.tanh(y), y)

    return pl.pallas_call(
        kernel,
        out_shape=jax.ShapeDtypeStruct((M, Npad), F32),
        grid=(M // tm,),
        in_specs=[pl.BlockSpec((tm, H), lambda i: (i, 0)),
                  pl.BlockSpec((2, tm, Hd), lambda i: (0, i, 0)),
                  pl.BlockSpec((H, H), lambda i: (0, 0)),
                  pl.BlockSpec((Hd, H), lambda i: (0, 0)),
                  pl.BlockSpec((Hd, H), lambda i: (0, 0)),
                  pl.BlockSpec((1, H), lambda i: (0, 0)),
                  pl.BlockSpec((H, Npad), lambda i: (0, 0)),
                  pl.BlockSpec((1, Npad), lambda i: (0, 0))],
        out_specs=pl.BlockSpec((tm, Npad), lambda i: (i, 0)),
        compiler_params=_cp("parallel"),
    )(attended2, lstm_h, wa, wf, wb, fb, w_heads, b_heads)


# ----------------------------------------------------------------------------
# 5) aspect-opinion pairing (per batch)
# ----------------------------------------------------------------------------
def pallas_pairing(head_out, B, S, H, num_tags):
    """pairing[b,i,j] = sigmoid(a_i . o_j / sqrt(H)) * P(i aspect) * P(j opinion)
    with P(aspect) = 1 - softmax(aspect_logits)[..., 0] (tag 0 = "O")."""
    M, Np = head_out.shape
    T = num_tags
    scale = 1.0 / math.sqrt(H)

    def kernel(h_ref, out_ref):
        blk = h_ref[...]                                  # (S, Np)
        a = blk[:, 0:H].astype(BF16)
        o = blk[:, H:2 * H].astype(BF16)
        asp = blk[:, 2 * H:2 * H + T]
        opi = blk[:, 2 * H + T:2 * H + 2 * T]
        scores = lax.dot_general(a, o, (((1,), (1,)), ((), ())),
                                 preferred_element_type=jnp.float32) * scale
        p_asp = 1.0 - jax.nn.softmax(asp, axis=-1)[:, 0:1]        # (S, 1)
        p_opi = 1.0 - jax.nn.softmax(opi, axis=-1)[:, 0:1]        # (S, 1)
        out_ref[...] = (jax.nn.sigmoid(scores) * p_asp
                        * p_opi.reshape(1, S))[None]

    return pl.pallas_call(
        kernel,
        out_shape=jax.ShapeDtypeStruct((B, S, S), F32),
        grid=(B,),
        in_specs=[pl.BlockSpec((S, Np), lambda b: (b, 0))],
        out_specs=pl.BlockSpec((1, S, S), lambda b: (b, 0, 0)),
        compiler_params=_cp("parallel"),
    )(head_out)


# ----------------------------------------------------------------------------
# Parameter init + full forward
# ----------------------------------------------------------------------------
def init_params(key, vocab, H, num_heads, num_tags, num_sent, num_cat):
    Hd = H // 2
    ks = iter(jax.random.split(key, 24))

    def w(shape, scale=0.02):
        return (scale * jax.random.normal(next(ks), shape, F32)).astype(BF16)

    n_heads_raw = 2 * H + 2 * num_tags + num_sent + num_cat
    n_heads_pad = ((n_heads_raw + 127) // 128) * 128

    # feature fusion Linear(2H -> H); the BiLSTM residual (lstm_out = raw + att)
    # is folded in algebraically: att@(W1+W2) + h_f@W2[:Hd] + h_b@W2[Hd:]
    fuse_w1 = 0.02 * jax.random.normal(next(ks), (H, H), F32)
    fuse_w2 = 0.02 * jax.random.normal(next(ks), (H, H), F32)

    return {
        # encoder (synthetic PhoBERT stand-in)
        "emb": 0.02 * jax.random.normal(next(ks), (vocab, H), F32),
        "enc_ln_g": jnp.ones((1, H), F32), "enc_ln_b": jnp.zeros((1, H), F32),
        # multi-head self attention (fused QKV projection)
        "w_qkv": w((H, 3 * H)), "b_qkv": jnp.zeros((1, 3 * H), F32),
        "wo": w((H, H)), "bo": jnp.zeros((1, H), F32),
        "attn_ln_g": jnp.ones((1, H), F32), "attn_ln_b": jnp.zeros((1, H), F32),
        # BiLSTM (per-direction hidden = H//2), direction-stacked weights
        "w_ih": w((2, H, 4 * Hd)), "b_ih": jnp.zeros((2, 1, 4 * Hd), F32),
        "w_hh": w((2, Hd, 4 * Hd)),
        # feature fusion with residual folded into the weights
        "fuse_wa": (fuse_w1 + fuse_w2).astype(BF16),
        "fuse_wf": fuse_w2[0:Hd].astype(BF16),
        "fuse_wb": fuse_w2[Hd:2 * Hd].astype(BF16),
        "fuse_b": jnp.zeros((1, H), F32),
        # fused heads: [pair_a | pair_o | aspect | opinion | sentiment | category | pad]
        "w_heads": w((H, n_heads_pad)),
        "b_heads": jnp.zeros((1, n_heads_pad), F32),
    }


@functools.partial(jax.jit,
                   static_argnames=("num_heads", "num_tags",
                                    "num_sent", "num_cat"))
def acos_forward(params, input_ids, attention_mask,
                 num_heads, num_tags, num_sent, num_cat):
    B, S = input_ids.shape
    H = params["emb"].shape[1]
    M = B * S

    # ---- encoder (synthetic): embedding lookup, then fused LN + QKV --------
    x = jnp.take(params["emb"], input_ids, axis=0).reshape(M, H)
    seq2, qkv = pallas_encode_qkv(x, params["enc_ln_g"], params["enc_ln_b"],
                                  params["w_qkv"], params["b_qkv"])

    # ---- MHA + W_o + residual + LayerNorm (one kernel per batch) -----------
    mask3 = attention_mask.astype(F32).reshape(B, 1, S)
    attended2 = pallas_attention(qkv, seq2, mask3, params["wo"], params["bo"],
                                 params["attn_ln_g"], params["attn_ln_b"],
                                 num_heads, B, S, H)

    # ---- BiLSTM (gate projection fused into the recurrence) ----------------
    lstm_h = pallas_bilstm(attended2, params["w_ih"], params["b_ih"],
                           params["w_hh"], B, S, H)

    # ---- feature fusion + all output heads (one fused kernel) --------------
    head_out = pallas_fuse_heads(attended2, lstm_h,
                                 params["fuse_wa"], params["fuse_wf"],
                                 params["fuse_wb"], params["fuse_b"],
                                 params["w_heads"], params["b_heads"], H)

    off = 2 * H
    aspect_logits = head_out[:, off:off + num_tags].reshape(B, S, num_tags)
    opinion_logits = head_out[:, off + num_tags:off + 2 * num_tags] \
        .reshape(B, S, num_tags)
    off2 = off + 2 * num_tags
    sentiment_logits = head_out[:, off2:off2 + num_sent].reshape(B, S, num_sent)
    category_logits = head_out[:, off2 + num_sent:off2 + num_sent + num_cat] \
        .reshape(B, S, num_cat)

    # ---- aspect-opinion pairing ---------------------------------------------
    pairing_matrix = pallas_pairing(head_out, B, S, H, num_tags)

    return {
        "aspect_logits": aspect_logits,
        "opinion_logits": opinion_logits,
        "pairing_matrix": pairing_matrix,
        "sentiment_logits": sentiment_logits,
        "category_logits": category_logits,
    }


# ----------------------------------------------------------------------------
if __name__ == "__main__":
    B, S = 2, 8
    H, NUM_HEADS = 64, 4
    VOCAB, NUM_TAGS, NUM_SENT, NUM_CAT = 64, 3, 4, 6

    key = jax.random.PRNGKey(0)
    k_param, k_ids = jax.random.split(key)
    params = init_params(k_param, VOCAB, H, NUM_HEADS, NUM_TAGS, NUM_SENT,
                         NUM_CAT)

    input_ids = jax.random.randint(k_ids, (B, S), 0, VOCAB, dtype=jnp.int32)
    lengths = jnp.array([8, 5], dtype=jnp.int32)
    attention_mask = (jnp.arange(S)[None, :] < lengths[:, None]).astype(jnp.int32)

    out = acos_forward(params, input_ids, attention_mask,
                       NUM_HEADS, NUM_TAGS, NUM_SENT, NUM_CAT)
    out = jax.block_until_ready(out)

    expected = {
        "aspect_logits": (B, S, NUM_TAGS),
        "opinion_logits": (B, S, NUM_TAGS),
        "pairing_matrix": (B, S, S),
        "sentiment_logits": (B, S, NUM_SENT),
        "category_logits": (B, S, NUM_CAT),
    }
    for name, shape in expected.items():
        assert out[name].shape == shape, (name, out[name].shape, shape)
        assert bool(jnp.all(jnp.isfinite(out[name]))), name

    print("KERNEL_OK")
</pallas_src>

<mosaic_0001>
module attributes {stable_mosaic.version = 11 : i64} {
  func.func @kernel(%arg0: i32, %arg1: memref<16x64xf32, #tpu.memory_space<vmem>>, %arg2: memref<1x64xf32, #tpu.memory_space<vmem>>, %arg3: memref<1x64xf32, #tpu.memory_space<vmem>>, %arg4: memref<64x192xbf16, #tpu.memory_space<vmem>>, %arg5: memref<1x192xf32, #tpu.memory_space<vmem>>, %arg6: memref<16x64xbf16, #tpu.memory_space<vmem>>, %arg7: memref<16x192xbf16, #tpu.memory_space<vmem>>) attributes {dimension_semantics = [#tpu.dimension_semantics<parallel>], iteration_bounds = array<i64: 1>, scalar_prefetch = 0 : i64, scratch_operands = 0 : i64, tpu.core_type = #tpu.core_type<tc>, window_params = [{transform_indices = @transform_0, window_bounds = array<i64: 16, 64>}, {pipeline_mode = #tpu.pipeline_mode<synchronous>, transform_indices = @transform_1, window_bounds = array<i64: 1, 64>}, {pipeline_mode = #tpu.pipeline_mode<synchronous>, transform_indices = @transform_2, window_bounds = array<i64: 1, 64>}, {pipeline_mode = #tpu.pipeline_mode<synchronous>, transform_indices = @transform_3, window_bounds = array<i64: 64, 192>}, {pipeline_mode = #tpu.pipeline_mode<synchronous>, transform_indices = @transform_4, window_bounds = array<i64: 1, 192>}, {transform_indices = @transform_5, window_bounds = array<i64: 16, 64>}, {transform_indices = @transform_6, window_bounds = array<i64: 16, 192>}]} {
    %c0 = arith.constant 0 : index
    %c0_0 = arith.constant 0 : index
    %0 = vector.load %arg1[%c0, %c0_0] : memref<16x64xf32, #tpu.memory_space<vmem>>, vector<16x64xf32>
    %cst = arith.constant dense<0.000000e+00> : vector<16xf32>
    %1 = vector.multi_reduction <add>, %0, %cst [1] : vector<16x64xf32> to vector<16xf32>
    %2 = vector.shape_cast %1 : vector<16xf32> to vector<16x1xf32>
    %cst_1 = arith.constant 6.400000e+01 : f32
    %3 = vector.broadcast %cst_1 : f32 to vector<16x1xf32>
    %4 = arith.divf %2, %3 : vector<16x1xf32>
    %5 = vector.broadcast %4 : vector<16x1xf32> to vector<16x64xf32>
    %6 = arith.subf %0, %5 : vector<16x64xf32>
    %7 = arith.mulf %6, %6 : vector<16x64xf32>
    %cst_2 = arith.constant dense<0.000000e+00> : vector<16xf32>
    %8 = vector.multi_reduction <add>, %7, %cst_2 [1] : vector<16x64xf32> to vector<16xf32>
    %9 = vector.shape_cast %8 : vector<16xf32> to vector<16x1xf32>
    %cst_3 = arith.constant 6.400000e+01 : f32
    %10 = vector.broadcast %cst_3 : f32 to vector<16x1xf32>
    %11 = arith.divf %9, %10 : vector<16x1xf32>
    %12 = vector.broadcast %4 : vector<16x1xf32> to vector<16x64xf32>
    %13 = arith.subf %0, %12 : vector<16x64xf32>
    %cst_4 = arith.constant 9.99999974E-6 : f32
    %14 = vector.broadcast %cst_4 : f32 to vector<16x1xf32>
    %15 = arith.addf %11, %14 : vector<16x1xf32>
    %16 = math.rsqrt %15 : vector<16x1xf32>
    %17 = vector.broadcast %16 : vector<16x1xf32> to vector<16x64xf32>
    %18 = arith.mulf %13, %17 : vector<16x64xf32>
    %c0_5 = arith.constant 0 : index
    %c0_6 = arith.constant 0 : index
    %19 = vector.load %arg2[%c0_5, %c0_6] : memref<1x64xf32, #tpu.memory_space<vmem>>, vector<1x64xf32>
    %20 = vector.broadcast %19 : vector<1x64xf32> to vector<16x64xf32>
    %21 = arith.mulf %18, %20 : vector<16x64xf32>
    %c0_7 = arith.constant 0 : index
    %c0_8 = arith.constant 0 : index
    %22 = vector.load %arg3[%c0_7, %c0_8] : memref<1x64xf32, #tpu.memory_space<vmem>>, vector<1x64xf32>
    %23 = vector.broadcast %22 : vector<1x64xf32> to vector<16x64xf32>
    %24 = arith.addf %21, %23 : vector<16x64xf32>
    %25 = arith.truncf %24 : vector<16x64xf32> to vector<16x64xbf16>
    %c0_9 = arith.constant 0 : index
    %c0_10 = arith.constant 0 : index
    %26 = vector.load %arg6[%c0_9, %c0_10] : memref<16x64xbf16, #tpu.memory_space<vmem>>, vector<16x64xbf16>
    tpu.vector_store %arg6[%c0_9, %c0_10], %25 {strides = array<i32>} : memref<16x64xbf16, #tpu.memory_space<vmem>>, vector<16x64xbf16>,
    %27 = arith.truncf %24 : vector<16x64xf32> to vector<16x64xbf16>
    %c0_11 = arith.constant 0 : index
    %c0_12 = arith.constant 0 : index
    %28 = vector.load %arg4[%c0_11, %c0_12] : memref<64x192xbf16, #tpu.memory_space<vmem>>, vector<64x192xbf16>
    %cst_13 = arith.constant dense<0.000000e+00> : vector<16x192xf32>
    %29 = tpu.matmul %27, %28, %cst_13 {dimension_numbers = #tpu.dot_dimension_numbers<[1], [0], [0], [1], [0, 0, 1, 1], [], []>} : vector<16x64xbf16>, vector<64x192xbf16>, vector<16x192xf32> -> vector<16x192xf32>
    %c0_14 = arith.constant 0 : index
    %c0_15 = arith.constant 0 : index
    %30 = vector.load %arg5[%c0_14, %c0_15] : memref<1x192xf32, #tpu.memory_space<vmem>>, vector<1x192xf32>
    %31 = vector.broadcast %30 : vector<1x192xf32> to vector<16x192xf32>
    %32 = arith.addf %29, %31 : vector<16x192xf32>
    %33 = arith.truncf %32 : vector<16x192xf32> to vector<16x192xbf16>
    %c0_16 = arith.constant 0 : index
    %c0_17 = arith.constant 0 : index
    %34 = vector.load %arg7[%c0_16, %c0_17] : memref<16x192xbf16, #tpu.memory_space<vmem>>, vector<16x192xbf16>
    tpu.vector_store %arg7[%c0_16, %c0_17], %33 {strides = array<i32>} : memref<16x192xbf16, #tpu.memory_space<vmem>>, vector<16x192xbf16>,
    return
  }
  func.func @transform_0(%arg0: i32) -> (i32, i32) {
    %c0_i32 = arith.constant 0 : i32
    %c0_i32_0 = arith.constant 0 : i32
    return %arg0, %c0_i32 : i32, i32
  }
  func.func @transform_1(%arg0: i32) -> (i32, i32) {
    %c0_i32 = arith.constant 0 : i32
    %c0_i32_0 = arith.constant 0 : i32
    %c0_i32_1 = arith.constant 0 : i32
    return %c0_i32, %c0_i32_0 : i32, i32
  }
  func.func @transform_2(%arg0: i32) -> (i32, i32) {
    %c0_i32 = arith.constant 0 : i32
    %c0_i32_0 = arith.constant 0 : i32
    %c0_i32_1 = arith.constant 0 : i32
    return %c0_i32, %c0_i32_0 : i32, i32
  }
  func.func @transform_3(%arg0: i32) -> (i32, i32) {
    %c0_i32 = arith.constant 0 : i32
    %c0_i32_0 = arith.constant 0 : i32
    %c0_i32_1 = arith.constant 0 : i32
    return %c0_i32, %c0_i32_0 : i32, i32
  }
  func.func @transform_4(%arg0: i32) -> (i32, i32) {
    %c0_i32 = arith.constant 0 : i32
    %c0_i32_0 = arith.constant 0 : i32
    %c0_i32_1 = arith.constant 0 : i32
    return %c0_i32, %c0_i32_0 : i32, i32
  }
  func.func @transform_5(%arg0: i32) -> (i32, i32) {
    %c0_i32 = arith.constant 0 : i32
    %c0_i32_0 = arith.constant 0 : i32
    return %arg0, %c0_i32 : i32, i32
  }
  func.func @transform_6(%arg0: i32) -> (i32, i32) {
    %c0_i32 = arith.constant 0 : i32
    %c0_i32_0 = arith.constant 0 : i32
    return %arg0, %c0_i32 : i32, i32
  }
}

module attributes {stable_mosaic.version = 11 : i64} {
  func.func @kernel(%arg0: i32, %arg1: i32, %arg2: memref<16x64xbf16, #tpu.memory_space<vmem>>, %arg3: memref<1x64x128xbf16, #tpu.memory_space<vmem>>, %arg4: memref<1x1x128xf32, #tpu.memory_space<vmem>>, %arg5: memref<1x32x128xbf16, #tpu.memory_space<vmem>>, %arg6: memref<1x16x32xbf16, #tpu.memory_space<vmem>>, %arg7: memref<8x2x128xf32, #tpu.memory_space<vmem>>, %arg8: memref<8x2x32xf32, #tpu.memory_space<vmem>>) attributes {dimension_semantics = [#tpu.dimension_semantics<parallel>, #tpu.dimension_semantics<parallel>], iteration_bounds = array<i64: 1, 2>, scalar_prefetch = 0 : i64, scratch_operands = 2 : i64, tpu.core_type = #tpu.core_type<tc>, window_params = [{transform_indices = @transform_0, window_bounds = array<i64: 16, 64>}, {transform_indices = @transform_1, window_bounds = array<i64: 1, 64, 128>}, {transform_indices = @transform_2, window_bounds = array<i64: 1, 1, 128>}, {transform_indices = @transform_3, window_bounds = array<i64: 1, 32, 128>}, {transform_indices = @transform_4, window_bounds = array<i64: 1, 16, 32>}]} {
    %c0 = arith.constant 0 : index
    %c0_0 = arith.constant 0 : index
    %0 = vector.load %arg2[%c0, %c0_0] : memref<16x64xbf16, #tpu.memory_space<vmem>>, vector<16x64xbf16>
    %c0_1 = arith.constant 0 : index
    %c0_2 = arith.constant 0 : index
    %c0_3 = arith.constant 0 : index
    %1 = vector.load %arg3[%c0_1, %c0_2, %c0_3] : memref<1x64x128xbf16, #tpu.memory_space<vmem>>, vector<1x64x128xbf16>
    %2 = vector.shape_cast %1 : vector<1x64x128xbf16> to vector<64x128xbf16>
    %cst = arith.constant dense<0.000000e+00> : vector<16x128xf32>
    %3 = tpu.matmul %0, %2, %cst {dimension_numbers = #tpu.dot_dimension_numbers<[1], [0], [0], [1], [0, 0, 1, 1], [], []>} : vector<16x64xbf16>, vector<64x128xbf16>, vector<16x128xf32> -> vector<16x128xf32>
    %c0_4 = arith.constant 0 : index
    %c0_5 = arith.constant 0 : index
    %c0_6 = arith.constant 0 : index
    %4 = vector.load %arg4[%c0_4, %c0_5, %c0_6] : memref<1x1x128xf32, #tpu.memory_space<vmem>>, vector<1x1x128xf32>
    %5 = vector.shape_cast %4 : vector<1x1x128xf32> to vector<1x128xf32>
    %6 = vector.broadcast %5 : vector<1x128xf32> to vector<16x128xf32>
    %7 = arith.addf %3, %6 : vector<16x128xf32>
    %8 = vector.shape_cast %7 : vector<16x128xf32> to vector<2x8x128xf32>
    %9 = tpu.transpose %8, [1, 0, 2] : vector<2x8x128xf32> -> vector<8x2x128xf32>
    %c0_7 = arith.constant 0 : index
    %c0_8 = arith.constant 0 : index
    %c0_9 = arith.constant 0 : index
    %10 = vector.load %arg7[%c0_7, %c0_8, %c0_9] : memref<8x2x128xf32, #tpu.memory_space<vmem>>, vector<8x2x128xf32>
    tpu.vector_store %arg7[%c0_7, %c0_8, %c0_9], %9 {strides = array<i32>} : memref<8x2x128xf32, #tpu.memory_space<vmem>>, vector<8x2x128xf32>,
    %cst_10 = arith.constant 0.000000e+00 : f32
    %11 = vector.broadcast %cst_10 : f32 to vector<2x32xf32>
    %c0_i32 = arith.constant 0 : i32
    %c8_i32 = arith.constant 8 : i32
    %12 = arith.addi %c0_i32, %c8_i32 : i32
    %c1_i32 = arith.constant 1 : i32
    %13:2 = scf.for %arg9 = %c0_i32 to %12 step %c1_i32 iter_args(%arg10 = %11, %arg11 = %11) -> (vector<2x32xf32>, vector<2x32xf32>)  : i32 {
      %c0_i32_18 = arith.constant 0 : i32
      %21 = arith.cmpi eq, %arg1, %c0_i32_18 : i32
      %c7_i32 = arith.constant 7 : i32
      %22 = arith.subi %c7_i32, %arg9 : i32
      %23 = arith.select %21, %arg9, %22 : i32
      %24 = arith.index_cast %23 : i32 to index
      %c0_19 = arith.constant 0 : index
      %c0_20 = arith.constant 0 : index
      %25 = vector.load %arg7[%24, %c0_19, %c0_20] : memref<8x2x128xf32, #tpu.memory_space<vmem>>, vector<1x2x128xf32>
      %26 = vector.shape_cast %25 : vector<1x2x128xf32> to vector<2x128xf32>
      %27 = arith.truncf %arg10 : vector<2x32xf32> to vector<2x32xbf16>
      %c0_21 = arith.constant 0 : index
      %c0_22 = arith.constant 0 : index
      %c0_23 = arith.constant 0 : index
      %28 = vector.load %arg5[%c0_21, %c0_22, %c0_23] : memref<1x32x128xbf16, #tpu.memory_space<vmem>>, vector<1x32x128xbf16>
      %29 = vector.shape_cast %28 : vector<1x32x128xbf16> to vector<32x128xbf16>
      %cst_24 = arith.constant dense<0.000000e+00> : vector<2x128xf32>
      %30 = tpu.matmul %27, %29, %cst_24 {dimension_numbers = #tpu.dot_dimension_numbers<[1], [0], [0], [1], [0, 0, 1, 1], [], []>} : vector<2x32xbf16>, vector<32x128xbf16>, vector<2x128xf32> -> vector<2x128xf32>
      %31 = arith.addf %26, %30 : vector<2x128xf32>
      %32 = vector.extract_strided_slice %31 {offsets = [0, 0], sizes = [2, 32], strides = [1, 1]} : vector<2x128xf32> to vector<2x32xf32>
      %33 = arith.negf %32 : vector<2x32xf32>
      %34 = math.exp %33 : vector<2x32xf32>
      %cst_25 = arith.constant 1.000000e+00 : f32
      %35 = vector.broadcast %cst_25 : f32 to vector<2x32xf32>
      %36 = arith.addf %35, %34 : vector<2x32xf32>
      %37 = arith.divf %35, %36 : vector<2x32xf32>
      %38 = vector.extract_strided_slice %31 {offsets = [0, 32], sizes = [2, 32], strides = [1, 1]} : vector<2x128xf32> to vector<2x32xf32>
      %39 = arith.negf %38 : vector<2x32xf32>
      %40 = math.exp %39 : vector<2x32xf32>
      %cst_26 = arith.constant 1.000000e+00 : f32
      %41 = vector.broadcast %cst_26 : f32 to vector<2x32xf32>
      %42 = arith.addf %41, %40 : vector<2x32xf32>
      %43 = arith.divf %41, %42 : vector<2x32xf32>
      %44 = vector.extract_strided_slice %31 {offsets = [0, 64], sizes = [2, 32], strides = [1, 1]} : vector<2x128xf32> to vector<2x32xf32>
      %45 = math.tanh %44 : vector<2x32xf32>
      %46 = vector.extract_strided_slice %31 {offsets = [0, 96], sizes = [2, 32], strides = [1, 1]} : vector<2x128xf32> to vector<2x32xf32>
      %47 = arith.negf %46 : vector<2x32xf32>
      %48 = math.exp %47 : vector<2x32xf32>
      %cst_27 = arith.constant 1.000000e+00 : f32
      %49 = vector.broadcast %cst_27 : f32 to vector<2x32xf32>
      %50 = arith.addf %49, %48 : vector<2x32xf32>
      %51 = arith.divf %49, %50 : vector<2x32xf32>
      %52 = arith.mulf %43, %arg11 : vector<2x32xf32>
      %53 = arith.mulf %37, %45 : vector<2x32xf32>
      %54 = arith.addf %52, %53 : vector<2x32xf32>
      %55 = math.tanh %54 : vector<2x32xf32>
      %56 = arith.mulf %51, %55 : vector<2x32xf32>
      %57 = arith.index_cast %23 : i32 to index
      %c0_28 = arith.constant 0 : index
      %c0_29 = arith.constant 0 : index
      %58 = vector.load %arg8[%57, %c0_28, %c0_29] : memref<8x2x32xf32, #tpu.memory_space<vmem>>, vector<1x2x32xf32>
      %59 = vector.shape_cast %58 : vector<1x2x32xf32> to vector<2x32xf32>
      %60 = vector.shape_cast %56 : vector<2x32xf32> to vector<1x2x32xf32>
      tpu.vector_store %arg8[%57, %c0_28, %c0_29], %60 {strides = array<i32>} : memref<8x2x32xf32, #tpu.memory_space<vmem>>, vector<1x2x32xf32>,
      scf.yield %56, %54 : vector<2x32xf32>, vector<2x32xf32>
    }
    %c8_i32_11 = arith.constant 8 : i32
    %c0_12 = arith.constant 0 : index
    %c0_13 = arith.constant 0 : index
    %c0_14 = arith.constant 0 : index
    %14 = vector.load %arg8[%c0_12, %c0_13, %c0_14] : memref<8x2x32xf32, #tpu.memory_space<vmem>>, vector<8x2x32xf32>
    %15 = tpu.transpose %14, [1, 0, 2] : vector<8x2x32xf32> -> vector<2x8x32xf32>
    %16 = vector.shape_cast %15 : vector<2x8x32xf32> to vector<16x32xf32>
    %17 = arith.truncf %16 : vector<16x32xf32> to vector<16x32xbf16>
    %c0_15 = arith.constant 0 : index
    %c0_16 = arith.constant 0 : index
    %c0_17 = arith.constant 0 : index
    %18 = vector.load %arg6[%c0_15, %c0_16, %c0_17] : memref<1x16x32xbf16, #tpu.memory_space<vmem>>, vector<1x16x32xbf16>
    %19 = vector.shape_cast %18 : vector<1x16x32xbf16> to vector<16x32xbf16>
    %20 = vector.shape_cast %17 : vector<16x32xbf16> to vector<1x16x32xbf16>
    tpu.vector_store %arg6[%c0_15, %c0_16, %c0_17], %20 {strides = array<i32>} : memref<1x16x32xbf16, #tpu.memory_space<vmem>>, vector<1x16x32xbf16>,
    return
  }
  func.func @transform_0(%arg0: i32, %arg1: i32) -> (i32, i32) {
    %c0_i32 = arith.constant 0 : i32
    %c0_i32_0 = arith.constant 0 : i32
    return %arg0, %c0_i32 : i32, i32
  }
  func.func @transform_1(%arg0: i32, %arg1: i32) -> (i32, i32, i32) {
    %c0_i32 = arith.constant 0 : i32
    %c0_i32_0 = arith.constant 0 : i32
    %c0_i32_1 = arith.constant 0 : i32
    return %arg1, %c0_i32, %c0_i32_0 : i32, i32, i32
  }
  func.func @transform_2(%arg0: i32, %arg1: i32) -> (i32, i32, i32) {
    %c0_i32 = arith.constant 0 : i32
    %c0_i32_0 = arith.constant 0 : i32
    %c0_i32_1 = arith.constant 0 : i32
    return %arg1, %c0_i32, %c0_i32_0 : i32, i32, i32
  }
  func.func @transform_3(%arg0: i32, %arg1: i32) -> (i32, i32, i32) {
    %c0_i32 = arith.constant 0 : i32
    %c0_i32_0 = arith.constant 0 : i32
    %c0_i32_1 = arith.constant 0 : i32
    return %arg1, %c0_i32, %c0_i32_0 : i32, i32, i32
  }
  func.func @transform_4(%arg0: i32, %arg1: i32) -> (i32, i32, i32) {
    %c0_i32 = arith.constant 0 : i32
    %c0_i32_0 = arith.constant 0 : i32
    return %arg1, %arg0, %c0_i32 : i32, i32, i32
  }
}

module attributes {stable_mosaic.version = 11 : i64} {
  func.func @kernel(%arg0: i32, %arg1: memref<8x192xbf16, #tpu.memory_space<vmem>>, %arg2: memref<8x64xbf16, #tpu.memory_space<vmem>>, %arg3: memref<1x1x8xf32, #tpu.memory_space<vmem>>, %arg4: memref<64x64xbf16, #tpu.memory_space<vmem>>, %arg5: memref<1x64xf32, #tpu.memory_space<vmem>>, %arg6: memref<1x64xf32, #tpu.memory_space<vmem>>, %arg7: memref<1x64xf32, #tpu.memory_space<vmem>>, %arg8: memref<8x64xbf16, #tpu.memory_space<vmem>>) attributes {dimension_semantics = [#tpu.dimension_semantics<parallel>], iteration_bounds = array<i64: 2>, scalar_prefetch = 0 : i64, scratch_operands = 0 : i64, tpu.core_type = #tpu.core_type<tc>, window_params = [{transform_indices = @transform_0, window_bounds = array<i64: 8, 192>}, {transform_indices = @transform_1, window_bounds = array<i64: 8, 64>}, {transform_indices = @transform_2, window_bounds = array<i64: 1, 1, 8>}, {pipeline_mode = #tpu.pipeline_mode<synchronous>, transform_indices = @transform_3, window_bounds = array<i64: 64, 64>}, {pipeline_mode = #tpu.pipeline_mode<synchronous>, transform_indices = @transform_4, window_bounds = array<i64: 1, 64>}, {pipeline_mode = #tpu.pipeline_mode<synchronous>, transform_indices = @transform_5, window_bounds = array<i64: 1, 64>}, {pipeline_mode = #tpu.pipeline_mode<synchronous>, transform_indices = @transform_6, window_bounds = array<i64: 1, 64>}, {transform_indices = @transform_7, window_bounds = array<i64: 8, 64>}]} {
    %c0 = arith.constant 0 : index
    %c0_0 = arith.constant 0 : index
    %0 = vector.load %arg1[%c0, %c0_0] : memref<8x192xbf16, #tpu.memory_space<vmem>>, vector<8x192xbf16>
    %1 = vector.extract_strided_slice %0 {offsets = [0, 0], sizes = [8, 64], strides = [1, 1]} : vector<8x192xbf16> to vector<8x64xbf16>
    %2 = vector.shape_cast %1 : vector<8x64xbf16> to vector<8x4x16xbf16>
    %3 = tpu.transpose %2, [1, 0, 2] : vector<8x4x16xbf16> -> vector<4x8x16xbf16>
    %4 = vector.extract_strided_slice %0 {offsets = [0, 64], sizes = [8, 64], strides = [1, 1]} : vector<8x192xbf16> to vector<8x64xbf16>
    %5 = vector.shape_cast %4 : vector<8x64xbf16> to vector<8x4x16xbf16>
    %6 = tpu.transpose %5, [1, 0, 2] : vector<8x4x16xbf16> -> vector<4x8x16xbf16>
    %7 = vector.extract_strided_slice %0 {offsets = [0, 128], sizes = [8, 64], strides = [1, 1]} : vector<8x192xbf16> to vector<8x64xbf16>
    %8 = vector.shape_cast %7 : vector<8x64xbf16> to vector<8x4x16xbf16>
    %9 = tpu.transpose %8, [1, 0, 2] : vector<8x4x16xbf16> -> vector<4x8x16xbf16>
    %cst = arith.constant dense<0.000000e+00> : vector<4x8x8xf32>
    %10 = tpu.matmul %3, %6, %cst {dimension_numbers = #tpu.dot_dimension_numbers<[2], [2], [1], [1], [0, 0, 0, 1, 1, 1], [0], [0]>} : vector<4x8x16xbf16>, vector<4x8x16xbf16>, vector<4x8x8xf32> -> vector<4x8x8xf32>
    %cst_1 = arith.constant 2.500000e-01 : f32
    %11 = vector.broadcast %cst_1 : f32 to vector<4x8x8xf32>
    %12 = arith.mulf %10, %11 : vector<4x8x8xf32>
    %c0_2 = arith.constant 0 : index
    %c0_3 = arith.constant 0 : index
    %c0_4 = arith.constant 0 : index
    %13 = vector.load %arg3[%c0_2, %c0_3, %c0_4] : memref<1x1x8xf32, #tpu.memory_space<vmem>>, vector<1x1x8xf32>
    %cst_5 = arith.constant 1.000000e+00 : f32
    %14 = vector.broadcast %cst_5 : f32 to vector<1x1x8xf32>
    %15 = arith.subf %14, %13 : vector<1x1x8xf32>
    %cst_6 = arith.constant -1.000000e+09 : f32
    %16 = vector.broadcast %cst_6 : f32 to vector<1x1x8xf32>
    %17 = arith.mulf %15, %16 : vector<1x1x8xf32>
    %18 = vector.broadcast %17 : vector<1x1x8xf32> to vector<4x8x8xf32>
    %19 = arith.addf %12, %18 : vector<4x8x8xf32>
    %cst_7 = arith.constant dense<0xFF800000> : vector<4x8xf32>
    %20 = vector.multi_reduction <maximumf>, %19, %cst_7 [2] : vector<4x8x8xf32> to vector<4x8xf32>
    %cst_8 = arith.constant 0xFF800000 : f32
    %21 = vector.broadcast %cst_8 : f32 to vector<4x8xf32>
    %22 = arith.maximumf %21, %20 : vector<4x8xf32>
    %23 = vector.shape_cast %22 : vector<4x8xf32> to vector<4x8x1xf32>
    %24 = vector.broadcast %23 : vector<4x8x1xf32> to vector<4x8x8xf32>
    %25 = arith.subf %19, %24 : vector<4x8x8xf32>
    %26 = math.exp %25 : vector<4x8x8xf32>
    %cst_9 = arith.constant dense<0.000000e+00> : vector<4x8xf32>
    %27 = vector.multi_reduction <add>, %26, %cst_9 [2] : vector<4x8x8xf32> to vector<4x8xf32>
    %28 = vector.shape_cast %27 : vector<4x8xf32> to vector<4x8x1xf32>
    %29 = vector.broadcast %28 : vector<4x8x1xf32> to vector<4x8x8xf32>
    %30 = arith.divf %26, %29 : vector<4x8x8xf32>
    %31 = arith.truncf %30 : vector<4x8x8xf32> to vector<4x8x8xbf16>
    %cst_10 = arith.constant dense<0.000000e+00> : vector<4x8x16xf32>
    %32 = tpu.matmul %31, %9, %cst_10 {dimension_numbers = #tpu.dot_dimension_numbers<[2], [1], [1], [2], [0, 0, 0, 1, 1, 2], [0], [0]>} : vector<4x8x8xbf16>, vector<4x8x16xbf16>, vector<4x8x16xf32> -> vector<4x8x16xf32>
    %33 = tpu.transpose %32, [1, 0, 2] : vector<4x8x16xf32> -> vector<8x4x16xf32>
    %34 = vector.shape_cast %33 : vector<8x4x16xf32> to vector<8x64xf32>
    %35 = arith.truncf %34 : vector<8x64xf32> to vector<8x64xbf16>
    %c0_11 = arith.constant 0 : index
    %c0_12 = arith.constant 0 : index
    %36 = vector.load %arg4[%c0_11, %c0_12] : memref<64x64xbf16, #tpu.memory_space<vmem>>, vector<64x64xbf16>
    %cst_13 = arith.constant dense<0.000000e+00> : vector<8x64xf32>
    %37 = tpu.matmul %35, %36, %cst_13 {dimension_numbers = #tpu.dot_dimension_numbers<[1], [0], [0], [1], [0, 0, 1, 1], [], []>} : vector<8x64xbf16>, vector<64x64xbf16>, vector<8x64xf32> -> vector<8x64xf32>
    %c0_14 = arith.constant 0 : index
    %c0_15 = arith.constant 0 : index
    %38 = vector.load %arg5[%c0_14, %c0_15] : memref<1x64xf32, #tpu.memory_space<vmem>>, vector<1x64xf32>
    %39 = vector.broadcast %38 : vector<1x64xf32> to vector<8x64xf32>
    %40 = arith.addf %37, %39 : vector<8x64xf32>
    %c0_16 = arith.constant 0 : index
    %c0_17 = arith.constant 0 : index
    %41 = vector.load %arg2[%c0_16, %c0_17] : memref<8x64xbf16, #tpu.memory_space<vmem>>, vector<8x64xbf16>
    %42 = arith.extf %41 : vector<8x64xbf16> to vector<8x64xf32>
    %43 = arith.addf %42, %40 : vector<8x64xf32>
    %cst_18 = arith.constant dense<0.000000e+00> : vector<8xf32>
    %44 = vector.multi_reduction <add>, %43, %cst_18 [1] : vector<8x64xf32> to vector<8xf32>
    %45 = vector.shape_cast %44 : vector<8xf32> to vector<8x1xf32>
    %cst_19 = arith.constant 6.400000e+01 : f32
    %46 = vector.broadcast %cst_19 : f32 to vector<8x1xf32>
    %47 = arith.divf %45, %46 : vector<8x1xf32>
    %48 = vector.broadcast %47 : vector<8x1xf32> to vector<8x64xf32>
    %49 = arith.subf %43, %48 : vector<8x64xf32>
    %50 = arith.mulf %49, %49 : vector<8x64xf32>
    %cst_20 = arith.constant dense<0.000000e+00> : vector<8xf32>
    %51 = vector.multi_reduction <add>, %50, %cst_20 [1] : vector<8x64xf32> to vector<8xf32>
    %52 = vector.shape_cast %51 : vector<8xf32> to vector<8x1xf32>
    %cst_21 = arith.constant 6.400000e+01 : f32
    %53 = vector.broadcast %cst_21 : f32 to vector<8x1xf32>
    %54 = arith.divf %52, %53 : vector<8x1xf32>
    %55 = vector.broadcast %47 : vector<8x1xf32> to vector<8x64xf32>
    %56 = arith.subf %43, %55 : vector<8x64xf32>
    %cst_22 = arith.constant 9.99999974E-6 : f32
    %57 = vector.broadcast %cst_22 : f32 to vector<8x1xf32>
    %58 = arith.addf %54, %57 : vector<8x1xf32>
    %59 = math.rsqrt %58 : vector<8x1xf32>
    %60 = vector.broadcast %59 : vector<8x1xf32> to vector<8x64xf32>
    %61 = arith.mulf %56, %60 : vector<8x64xf32>
    %c0_23 = arith.constant 0 : index
    %c0_24 = arith.constant 0 : index
    %62 = vector.load %arg6[%c0_23, %c0_24] : memref<1x64xf32, #tpu.memory_space<vmem>>, vector<1x64xf32>
    %63 = vector.broadcast %62 : vector<1x64xf32> to vector<8x64xf32>
    %64 = arith.mulf %61, %63 : vector<8x64xf32>
    %c0_25 = arith.constant 0 : index
    %c0_26 = arith.constant 0 : index
    %65 = vector.load %arg7[%c0_25, %c0_26] : memref<1x64xf32, #tpu.memory_space<vmem>>, vector<1x64xf32>
    %66 = vector.broadcast %65 : vector<1x64xf32> to vector<8x64xf32>
    %67 = arith.addf %64, %66 : vector<8x64xf32>
    %68 = arith.truncf %67 : vector<8x64xf32> to vector<8x64xbf16>
    %c0_27 = arith.constant 0 : index
    %c0_28 = arith.constant 0 : index
    %69 = vector.load %arg8[%c0_27, %c0_28] : memref<8x64xbf16, #tpu.memory_space<vmem>>, vector<8x64xbf16>
    tpu.vector_store %arg8[%c0_27, %c0_28], %68 {strides = array<i32>} : memref<8x64xbf16, #tpu.memory_space<vmem>>, vector<8x64xbf16>,
    return
  }
  func.func @transform_0(%arg0: i32) -> (i32, i32) {
    %c0_i32 = arith.constant 0 : i32
    %c0_i32_0 = arith.constant 0 : i32
    return %arg0, %c0_i32 : i32, i32
  }
  func.func @transform_1(%arg0: i32) -> (i32, i32) {
    %c0_i32 = arith.constant 0 : i32
    %c0_i32_0 = arith.constant 0 : i32
    return %arg0, %c0_i32 : i32, i32
  }
  func.func @transform_2(%arg0: i32) -> (i32, i32, i32) {
    %c0_i32 = arith.constant 0 : i32
    %c0_i32_0 = arith.constant 0 : i32
    %c0_i32_1 = arith.constant 0 : i32
    return %arg0, %c0_i32, %c0_i32_0 : i32, i32, i32
  }
  func.func @transform_3(%arg0: i32) -> (i32, i32) {
    %c0_i32 = arith.constant 0 : i32
    %c0_i32_0 = arith.constant 0 : i32
    %c0_i32_1 = arith.constant 0 : i32
    return %c0_i32, %c0_i32_0 : i32, i32
  }
  func.func @transform_4(%arg0: i32) -> (i32, i32) {
    %c0_i32 = arith.constant 0 : i32
    %c0_i32_0 = arith.constant 0 : i32
    %c0_i32_1 = arith.constant 0 : i32
    return %c0_i32, %c0_i32_0 : i32, i32
  }
  func.func @transform_5(%arg0: i32) -> (i32, i32) {
    %c0_i32 = arith.constant 0 : i32
    %c0_i32_0 = arith.constant 0 : i32
    %c0_i32_1 = arith.constant 0 : i32
    return %c0_i32, %c0_i32_0 : i32, i32
  }
  func.func @transform_6(%arg0: i32) -> (i32, i32) {
    %c0_i32 = arith.constant 0 : i32
    %c0_i32_0 = arith.constant 0 : i32
    %c0_i32_1 = arith.constant 0 : i32
    return %c0_i32, %c0_i32_0 : i32, i32
  }
  func.func @transform_7(%arg0: i32) -> (i32, i32) {
    %c0_i32 = arith.constant 0 : i32
    %c0_i32_0 = arith.constant 0 : i32
    return %arg0, %c0_i32 : i32, i32
  }
}

module attributes {stable_mosaic.version = 11 : i64} {
  func.func @kernel(%arg0: i32, %arg1: memref<16x64xbf16, #tpu.memory_space<vmem>>, %arg2: memref<2x16x32xbf16, #tpu.memory_space<vmem>>, %arg3: memref<64x64xbf16, #tpu.memory_space<vmem>>, %arg4: memref<32x64xbf16, #tpu.memory_space<vmem>>, %arg5: memref<32x64xbf16, #tpu.memory_space<vmem>>, %arg6: memref<1x64xf32, #tpu.memory_space<vmem>>, %arg7: memref<64x256xbf16, #tpu.memory_space<vmem>>, %arg8: memref<1x256xf32, #tpu.memory_space<vmem>>, %arg9: memref<16x256xf32, #tpu.memory_space<vmem>>) attributes {dimension_semantics = [#tpu.dimension_semantics<parallel>], iteration_bounds = array<i64: 1>, scalar_prefetch = 0 : i64, scratch_operands = 0 : i64, tpu.core_type = #tpu.core_type<tc>, window_params = [{transform_indices = @transform_0, window_bounds = array<i64: 16, 64>}, {transform_indices = @transform_1, window_bounds = array<i64: 2, 16, 32>}, {pipeline_mode = #tpu.pipeline_mode<synchronous>, transform_indices = @transform_2, window_bounds = array<i64: 64, 64>}, {pipeline_mode = #tpu.pipeline_mode<synchronous>, transform_indices = @transform_3, window_bounds = array<i64: 32, 64>}, {pipeline_mode = #tpu.pipeline_mode<synchronous>, transform_indices = @transform_4, window_bounds = array<i64: 32, 64>}, {pipeline_mode = #tpu.pipeline_mode<synchronous>, transform_indices = @transform_5, window_bounds = array<i64: 1, 64>}, {pipeline_mode = #tpu.pipeline_mode<synchronous>, transform_indices = @transform_6, window_bounds = array<i64: 64, 256>}, {pipeline_mode = #tpu.pipeline_mode<synchronous>, transform_indices = @transform_7, window_bounds = array<i64: 1, 256>}, {transform_indices = @transform_8, window_bounds = array<i64: 16, 256>}]} {
    %c0 = arith.constant 0 : index
    %c0_0 = arith.constant 0 : index
    %0 = vector.load %arg1[%c0, %c0_0] : memref<16x64xbf16, #tpu.memory_space<vmem>>, vector<16x64xbf16>
    %c0_1 = arith.constant 0 : index
    %c0_2 = arith.constant 0 : index
    %1 = vector.load %arg3[%c0_1, %c0_2] : memref<64x64xbf16, #tpu.memory_space<vmem>>, vector<64x64xbf16>
    %cst = arith.constant dense<0.000000e+00> : vector<16x64xf32>
    %2 = tpu.matmul %0, %1, %cst {dimension_numbers = #tpu.dot_dimension_numbers<[1], [0], [0], [1], [0, 0, 1, 1], [], []>} : vector<16x64xbf16>, vector<64x64xbf16>, vector<16x64xf32> -> vector<16x64xf32>
    %c0_3 = arith.constant 0 : index
    %c0_4 = arith.constant 0 : index
    %c0_5 = arith.constant 0 : index
    %3 = vector.load %arg2[%c0_3, %c0_4, %c0_5] : memref<2x16x32xbf16, #tpu.memory_space<vmem>>, vector<1x16x32xbf16>
    %4 = vector.shape_cast %3 : vector<1x16x32xbf16> to vector<16x32xbf16>
    %c0_6 = arith.constant 0 : index
    %c0_7 = arith.constant 0 : index
    %5 = vector.load %arg4[%c0_6, %c0_7] : memref<32x64xbf16, #tpu.memory_space<vmem>>, vector<32x64xbf16>
    %cst_8 = arith.constant dense<0.000000e+00> : vector<16x64xf32>
    %6 = tpu.matmul %4, %5, %cst_8 {dimension_numbers = #tpu.dot_dimension_numbers<[1], [0], [0], [1], [0, 0, 1, 1], [], []>} : vector<16x32xbf16>, vector<32x64xbf16>, vector<16x64xf32> -> vector<16x64xf32>
    %7 = arith.addf %2, %6 : vector<16x64xf32>
    %c1 = arith.constant 1 : index
    %c0_9 = arith.constant 0 : index
    %c0_10 = arith.constant 0 : index
    %8 = vector.load %arg2[%c1, %c0_9, %c0_10] : memref<2x16x32xbf16, #tpu.memory_space<vmem>>, vector<1x16x32xbf16>
    %9 = vector.shape_cast %8 : vector<1x16x32xbf16> to vector<16x32xbf16>
    %c0_11 = arith.constant 0 : index
    %c0_12 = arith.constant 0 : index
    %10 = vector.load %arg5[%c0_11, %c0_12] : memref<32x64xbf16, #tpu.memory_space<vmem>>, vector<32x64xbf16>
    %cst_13 = arith.constant dense<0.000000e+00> : vector<16x64xf32>
    %11 = tpu.matmul %9, %10, %cst_13 {dimension_numbers = #tpu.dot_dimension_numbers<[1], [0], [0], [1], [0, 0, 1, 1], [], []>} : vector<16x32xbf16>, vector<32x64xbf16>, vector<16x64xf32> -> vector<16x64xf32>
    %12 = arith.addf %7, %11 : vector<16x64xf32>
    %c0_14 = arith.constant 0 : index
    %c0_15 = arith.constant 0 : index
    %13 = vector.load %arg6[%c0_14, %c0_15] : memref<1x64xf32, #tpu.memory_space<vmem>>, vector<1x64xf32>
    %14 = vector.broadcast %13 : vector<1x64xf32> to vector<16x64xf32>
    %15 = arith.addf %12, %14 : vector<16x64xf32>
    %cst_16 = arith.constant 0.000000e+00 : f32
    %16 = vector.broadcast %cst_16 : f32 to vector<16x64xf32>
    %17 = arith.maximumf %15, %16 : vector<16x64xf32>
    %18 = arith.truncf %17 : vector<16x64xf32> to vector<16x64xbf16>
    %c0_17 = arith.constant 0 : index
    %c0_18 = arith.constant 0 : index
    %19 = vector.load %arg7[%c0_17, %c0_18] : memref<64x256xbf16, #tpu.memory_space<vmem>>, vector<64x256xbf16>
    %cst_19 = arith.constant dense<0.000000e+00> : vector<16x256xf32>
    %20 = tpu.matmul %18, %19, %cst_19 {dimension_numbers = #tpu.dot_dimension_numbers<[1], [0], [0], [1], [0, 0, 1, 1], [], []>} : vector<16x64xbf16>, vector<64x256xbf16>, vector<16x256xf32> -> vector<16x256xf32>
    %c0_20 = arith.constant 0 : index
    %c0_21 = arith.constant 0 : index
    %21 = vector.load %arg8[%c0_20, %c0_21] : memref<1x256xf32, #tpu.memory_space<vmem>>, vector<1x256xf32>
    %22 = vector.broadcast %21 : vector<1x256xf32> to vector<16x256xf32>
    %23 = arith.addf %20, %22 : vector<16x256xf32>
    %24 = tpu.iota {dimensions = array<i32: 1>} : vector<16x256xi32>
    %c128_i32 = arith.constant 128 : i32
    %25 = vector.broadcast %c128_i32 : i32 to vector<16x256xi32>
    %26 = arith.cmpi slt, %24, %25 : vector<16x256xi32>
    %27 = math.tanh %23 : vector<16x256xf32>
    %28 = arith.select %26, %27, %23 : vector<16x256xi1>, vector<16x256xf32>
    %c0_22 = arith.constant 0 : index
    %c0_23 = arith.constant 0 : index
    %29 = vector.load %arg9[%c0_22, %c0_23] : memref<16x256xf32, #tpu.memory_space<vmem>>, vector<16x256xf32>
    tpu.vector_store %arg9[%c0_22, %c0_23], %28 {strides = array<i32>} : memref<16x256xf32, #tpu.memory_space<vmem>>, vector<16x256xf32>,
    return
  }
  func.func @transform_0(%arg0: i32) -> (i32, i32) {
    %c0_i32 = arith.constant 0 : i32
    %c0_i32_0 = arith.constant 0 : i32
    return %arg0, %c0_i32 : i32, i32
  }
  func.func @transform_1(%arg0: i32) -> (i32, i32, i32) {
    %c0_i32 = arith.constant 0 : i32
    %c0_i32_0 = arith.constant 0 : i32
    %c0_i32_1 = arith.constant 0 : i32
    return %c0_i32, %arg0, %c0_i32_0 : i32, i32, i32
  }
  func.func @transform_2(%arg0: i32) -> (i32, i32) {
    %c0_i32 = arith.constant 0 : i32
    %c0_i32_0 = arith.constant 0 : i32
    %c0_i32_1 = arith.constant 0 : i32
    return %c0_i32, %c0_i32_0 : i32, i32
  }
  func.func @transform_3(%arg0: i32) -> (i32, i32) {
    %c0_i32 = arith.constant 0 : i32
    %c0_i32_0 = arith.constant 0 : i32
    %c0_i32_1 = arith.constant 0 : i32
    return %c0_i32, %c0_i32_0 : i32, i32
  }
  func.func @transform_4(%arg0: i32) -> (i32, i32) {
    %c0_i32 = arith.constant 0 : i32
    %c0_i32_0 = arith.constant 0 : i32
    %c0_i32_1 = arith.constant 0 : i32
    return %c0_i32, %c0_i32_0 : i32, i32
  }
  func.func @transform_5(%arg0: i32) -> (i32, i32) {
    %c0_i32 = arith.constant 0 : i32
    %c0_i32_0 = arith.constant 0 : i32
    %c0_i32_1 = arith.constant 0 : i32
    return %c0_i32, %c0_i32_0 : i32, i32
  }
  func.func @transform_6(%arg0: i32) -> (i32, i32) {
    %c0_i32 = arith.constant 0 : i32
    %c0_i32_0 = arith.constant 0 : i32
    %c0_i32_1 = arith.constant 0 : i32
    return %c0_i32, %c0_i32_0 : i32, i32
  }
  func.func @transform_7(%arg0: i32) -> (i32, i32) {
    %c0_i32 = arith.constant 0 : i32
    %c0_i32_0 = arith.constant 0 : i32
    %c0_i32_1 = arith.constant 0 : i32
    return %c0_i32, %c0_i32_0 : i32, i32
  }
  func.func @transform_8(%arg0: i32) -> (i32, i32) {
    %c0_i32 = arith.constant 0 : i32
    %c0_i32_0 = arith.constant 0 : i32
    return %arg0, %c0_i32 : i32, i32
  }
}

module attributes {stable_mosaic.version = 11 : i64} {
  func.func @kernel(%arg0: i32, %arg1: memref<8x256xf32, #tpu.memory_space<vmem>>, %arg2: memref<1x8x8xf32, #tpu.memory_space<vmem>>) attributes {dimension_semantics = [#tpu.dimension_semantics<parallel>], iteration_bounds = array<i64: 2>, scalar_prefetch = 0 : i64, scratch_operands = 0 : i64, tpu.core_type = #tpu.core_type<tc>, window_params = [{transform_indices = @transform_0, window_bounds = array<i64: 8, 256>}, {transform_indices = @transform_1, window_bounds = array<i64: 1, 8, 8>}]} {
    %c0 = arith.constant 0 : index
    %c0_0 = arith.constant 0 : index
    %0 = vector.load %arg1[%c0, %c0_0] : memref<8x256xf32, #tpu.memory_space<vmem>>, vector<8x256xf32>
    %1 = vector.extract_strided_slice %0 {offsets = [0, 0], sizes = [8, 64], strides = [1, 1]} : vector<8x256xf32> to vector<8x64xf32>
    %2 = arith.truncf %1 : vector<8x64xf32> to vector<8x64xbf16>
    %3 = vector.extract_strided_slice %0 {offsets = [0, 64], sizes = [8, 64], strides = [1, 1]} : vector<8x256xf32> to vector<8x64xf32>
    %4 = arith.truncf %3 : vector<8x64xf32> to vector<8x64xbf16>
    %5 = vector.extract_strided_slice %0 {offsets = [0, 128], sizes = [8, 3], strides = [1, 1]} : vector<8x256xf32> to vector<8x3xf32>
    %6 = vector.extract_strided_slice %0 {offsets = [0, 131], sizes = [8, 3], strides = [1, 1]} : vector<8x256xf32> to vector<8x3xf32>
    %cst = arith.constant dense<0.000000e+00> : vector<8x8xf32>
    %7 = tpu.matmul %2, %4, %cst {dimension_numbers = #tpu.dot_dimension_numbers<[1], [1], [0], [0], [0, 0, 1, 0], [], []>} : vector<8x64xbf16>, vector<8x64xbf16>, vector<8x8xf32> -> vector<8x8xf32>
    %cst_1 = arith.constant 1.250000e-01 : f32
    %8 = vector.broadcast %cst_1 : f32 to vector<8x8xf32>
    %9 = arith.mulf %7, %8 : vector<8x8xf32>
    %cst_2 = arith.constant dense<0xFF800000> : vector<8xf32>
    %10 = vector.multi_reduction <maximumf>, %5, %cst_2 [1] : vector<8x3xf32> to vector<8xf32>
    %cst_3 = arith.constant 0xFF800000 : f32
    %11 = vector.broadcast %cst_3 : f32 to vector<8xf32>
    %12 = arith.maximumf %11, %10 : vector<8xf32>
    %13 = vector.shape_cast %12 : vector<8xf32> to vector<8x1xf32>
    %14 = vector.broadcast %13 : vector<8x1xf32> to vector<8x3xf32>
    %15 = arith.subf %5, %14 : vector<8x3xf32>
    %16 = math.exp %15 : vector<8x3xf32>
    %cst_4 = arith.constant dense<0.000000e+00> : vector<8xf32>
    %17 = vector.multi_reduction <add>, %16, %cst_4 [1] : vector<8x3xf32> to vector<8xf32>
    %18 = vector.shape_cast %17 : vector<8xf32> to vector<8x1xf32>
    %19 = vector.broadcast %18 : vector<8x1xf32> to vector<8x3xf32>
    %20 = arith.divf %16, %19 : vector<8x3xf32>
    %21 = vector.extract_strided_slice %20 {offsets = [0, 0], sizes = [8, 1], strides = [1, 1]} : vector<8x3xf32> to vector<8x1xf32>
    %cst_5 = arith.constant 1.000000e+00 : f32
    %22 = vector.broadcast %cst_5 : f32 to vector<8x1xf32>
    %23 = arith.subf %22, %21 : vector<8x1xf32>
    %cst_6 = arith.constant dense<0xFF800000> : vector<8xf32>
    %24 = vector.multi_reduction <maximumf>, %6, %cst_6 [1] : vector<8x3xf32> to vector<8xf32>
    %cst_7 = arith.constant 0xFF800000 : f32
    %25 = vector.broadcast %cst_7 : f32 to vector<8xf32>
    %26 = arith.maximumf %25, %24 : vector<8xf32>
    %27 = vector.shape_cast %26 : vector<8xf32> to vector<8x1xf32>
    %28 = vector.broadcast %27 : vector<8x1xf32> to vector<8x3xf32>
    %29 = arith.subf %6, %28 : vector<8x3xf32>
    %30 = math.exp %29 : vector<8x3xf32>
    %cst_8 = arith.constant dense<0.000000e+00> : vector<8xf32>
    %31 = vector.multi_reduction <add>, %30, %cst_8 [1] : vector<8x3xf32> to vector<8xf32>
    %32 = vector.shape_cast %31 : vector<8xf32> to vector<8x1xf32>
    %33 = vector.broadcast %32 : vector<8x1xf32> to vector<8x3xf32>
    %34 = arith.divf %30, %33 : vector<8x3xf32>
    %35 = vector.extract_strided_slice %34 {offsets = [0, 0], sizes = [8, 1], strides = [1, 1]} : vector<8x3xf32> to vector<8x1xf32>
    %cst_9 = arith.constant 1.000000e+00 : f32
    %36 = vector.broadcast %cst_9 : f32 to vector<8x1xf32>
    %37 = arith.subf %36, %35 : vector<8x1xf32>
    %38 = arith.negf %9 : vector<8x8xf32>
    %39 = math.exp %38 : vector<8x8xf32>
    %cst_10 = arith.constant 1.000000e+00 : f32
    %40 = vector.broadcast %cst_10 : f32 to vector<8x8xf32>
    %41 = arith.addf %40, %39 : vector<8x8xf32>
    %42 = arith.divf %40, %41 : vector<8x8xf32>
    %43 = vector.broadcast %23 : vector<8x1xf32> to vector<8x8xf32>
    %44 = arith.mulf %42, %43 : vector<8x8xf32>
    %45 = vector.shape_cast %37 : vector<8x1xf32> to vector<1x8xf32>
    %46 = vector.broadcast %45 : vector<1x8xf32> to vector<8x8xf32>
    %47 = arith.mulf %44, %46 : vector<8x8xf32>
    %48 = vector.shape_cast %47 : vector<8x8xf32> to vector<1x8x8xf32>
    %c0_11 = arith.constant 0 : index
    %c0_12 = arith.constant 0 : index
    %c0_13 = arith.constant 0 : index
    %49 = vector.load %arg2[%c0_11, %c0_12, %c0_13] : memref<1x8x8xf32, #tpu.memory_space<vmem>>, vector<1x8x8xf32>
    tpu.vector_store %arg2[%c0_11, %c0_12, %c0_13], %48 {strides = array<i32>} : memref<1x8x8xf32, #tpu.memory_space<vmem>>, vector<1x8x8xf32>,
    return
  }
  func.func @transform_0(%arg0: i32) -> (i32, i32) {
    %c0_i32 = arith.constant 0 : i32
    %c0_i32_0 = arith.constant 0 : i32
    return %arg0, %c0_i32 : i32, i32
  }
  func.func @transform_1(%arg0: i32) -> (i32, i32, i32) {
    %c0_i32 = arith.constant 0 : i32
    %c0_i32_0 = arith.constant 0 : i32
    %c0_i32_1 = arith.constant 0 : i32
    return %arg0, %c0_i32, %c0_i32_0 : i32, i32, i32
  }
}

</mosaic_0001>

<llo_original>
// kernel: acos_forward.7
$region0: #{acos_forward.7}
  #allocation0 [shape = 'u32[]', space=smem, size = 0x4, offset = 0x4, fixed_abs, tag = 'smem constant byte address 0x4 - core index']
  #allocation1 [shape = 'u32[144,128]{1,0:T(1,128)}', space=vmem, size = 0x12000, scoped, tag = 'internal scratch']
  #allocation2 [shape = 'f32[8,2,128]{2,1,0:T(2,128)}', space=vmem, size = 0x2000, scoped, tag = 'scratch operand']
  #allocation3 [shape = 'f32[8,2,32]{2,1,0:T(2,128)}', space=vmem, size = 0x2000, scoped, tag = 'scratch operand']
  %s0 = inlined_call_operand.vmem [shape: bf16[16,64], index: 0, kind: input, shape index: {}]
  %s1 = inlined_call_operand.vmem [shape: bf16[2,64,128], index: 1, kind: input, shape index: {}]
  %s2 = inlined_call_operand.vmem [shape: f32[2,1,128], index: 2, kind: input, shape index: {}]
  %s3 = inlined_call_operand.vmem [shape: bf16[2,32,128], index: 3, kind: input, shape index: {}]
  %s4 = inlined_call_operand.vmem [shape: bf16[2,16,32], index: 4, kind: output, shape index: {}]
  %s5 = sld [smem:[#allocation0]]
  $region56: #{acos_forward.7} parent=0
    _
  %s7 = ssub.s32 1, %s5
  %s8 = scalar_select 0, %s7, %s5
  loop: start=0, step=1, limit=4
  $region2: #{acos_forward.7} parent=0 // loop_pre_header
    _
  $region3: #{acos_forward.7} parent=0 // loop_header
    %s10 = sphi 0, %s14
    %p11 = scmp.ge.s32.totalorder %s10, 4
    %s17 = sphi 0, %s29
    %s18 = sphi 0, %s25
    %s19 = sphi 0, %s17
    %s20 = sphi 0, %s18
    %s21 = sphi 0, %s19
    %s22 = sphi 0, %s20
    %s32 = sphi 0, %s34
    %s35 = sphi 0, %s32
    %s36 = sphi 0, %s35
    %s52 = sphi 0, %s36
    %s58 = sphi 0, %s60
    %s61 = sphi 0, %s58
    %s62 = sphi 0, %s61
    %s78 = sphi 0, %s62
    %s84 = sphi 0, %s86
    %s87 = sphi 0, %s84
    %s88 = sphi 0, %s87
    %s104 = sphi 0, %s88
    %s110 = sphi 0, %s112
    %s113 = sphi 0, %s110
    %s114 = sphi 0, %s113
    %s130 = sphi 0, %s114
    %s138 = sphi 0, %s140
    %s141 = sphi 0, %s138
    %s142 = sphi 0, %s141
    %s158 = sphi 0, %s142
  $region4: #{acos_forward.7} parent=0 // loop_header_branch
    %13 = sbr.rel (%p11) target = $region8
  $region5: #{acos_forward.7} parent=0 // loop_body
    %s15 = ssub.s32 %s10, 1
    %s16 = ssub.s32 %s10, 2
    %s23 = sadd.s32 1, %s18
    %p24 = scmp.ge.s32.totalorder %s23, 2
    %s25 = scalar_select %p24, 0, %s23
    %s26 = sadd.s32 1, %s17
    %s27 = scalar_select %p24, %s26, %s17
    %p28 = scmp.ge.s32.totalorder %s27, 1
    %s29 = scalar_select %p28, 0, %s27
    %s30 = ssub.s32 %s17, %s29
    %p31 = scmp.eq.s32.totalorder %s30, 0
    %s33 = sadd.s32 %s32, 1
    %s34 = scalar_select %p31, %s32, %s33
    %p37 = pneg %p31
    %p38 = scmp.eq.s32.totalorder %s10, 1
    %p39 = por %p37, %p38
    %p40 = scmp.ne.s32.totalorder %s32, %s35
    %p41 = scmp.eq.s32.totalorder %s10, 0
    %p42 = por %p40, %p41
    %p43 = scmp.ne.s32.totalorder %s32, %s35
    %p44 = scmp.eq.s32.totalorder %s15, 1
    %p45 = por %p43, %p44
    %p46 = scmp.ne.s32.totalorder %s35, %s36
    %p47 = scmp.eq.s32.totalorder %s15, 0
    %p48 = por %p46, %p47
    %p49 = scmp.ne.s32.totalorder %s35, %s36
    %p50 = scmp.eq.s32.totalorder %s16, 1
    %p51 = por %p49, %p50
    %p53 = scmp.ne.s32.totalorder %s36, %s52
    %p54 = scmp.eq.s32.totalorder %s16, 0
    %p55 = por %p53, %p54
    %s56 = ssub.s32 %s18, %s25
    %p57 = scmp.eq.s32.totalorder %s56, 0
    %s59 = sadd.s32 %s58, 1
    %s60 = scalar_select %p57, %s58, %s59
    %p63 = pneg %p57
    %p64 = scmp.eq.s32.totalorder %s10, 1
    %p65 = por %p63, %p64
    %p66 = scmp.ne.s32.totalorder %s58, %s61
    %p67 = scmp.eq.s32.totalorder %s10, 0
    %p68 = por %p66, %p67
    %p69 = scmp.ne.s32.totalorder %s58, %s61
    %p70 = scmp.eq.s32.totalorder %s15, 1
    %p71 = por %p69, %p70
    %p72 = scmp.ne.s32.totalorder %s61, %s62
    %p73 = scmp.eq.s32.totalorder %s15, 0
    %p74 = por %p72, %p73
    %p75 = scmp.ne.s32.totalorder %s61, %s62
    %p76 = scmp.eq.s32.totalorder %s16, 1
    %p77 = por %p75, %p76
    %p79 = scmp.ne.s32.totalorder %s62, %s78
    %p80 = scmp.eq.s32.totalorder %s16, 0
    %p81 = por %p79, %p80
    %s82 = ssub.s32 %s18, %s25
    %p83 = scmp.eq.s32.totalorder %s82, 0
    %s85 = sadd.s32 %s84, 1
    %s86 = scalar_select %p83, %s84, %s85
    %p89 = pneg %p83
    %p90 = scmp.eq.s32.totalorder %s10, 1
    %p91 = por %p89, %p90
    %p92 = scmp.ne.s32.totalorder %s84, %s87
    %p93 = scmp.eq.s32.totalorder %s10, 0
    %p94 = por %p92, %p93
    %p95 = scmp.ne.s32.totalorder %s84, %s87
    %p96 = scmp.eq.s32.totalorder %s15, 1
    %p97 = por %p95, %p96
    %p98 = scmp.ne.s32.totalorder %s87, %s88
    %p99 = scmp.eq.s32.totalorder %s15, 0
    %p100 = por %p98, %p99
    %p101 = scmp.ne.s32.totalorder %s87, %s88
    %p102 = scmp.eq.s32.totalorder %s16, 1
    %p103 = por %p101, %p102
    %p105 = scmp.ne.s32.totalorder %s88, %s104
    %p106 = scmp.eq.s32.totalorder %s16, 0
    %p107 = por %p105, %p106
    %s108 = ssub.s32 %s18, %s25
    %p109 = scmp.eq.s32.totalorder %s108, 0
    %s111 = sadd.s32 %s110, 1
    %s112 = scalar_select %p109, %s110, %s111
    %p115 = pneg %p109
    %p116 = scmp.eq.s32.totalorder %s10, 1
    %p117 = por %p115, %p116
    %p118 = scmp.ne.s32.totalorder %s110, %s113
    %p119 = scmp.eq.s32.totalorder %s10, 0
    %p120 = por %p118, %p119
    %p121 = scmp.ne.s32.totalorder %s110, %s113
    %p122 = scmp.eq.s32.totalorder %s15, 1
    %p123 = por %p121, %p122
    %p124 = scmp.ne.s32.totalorder %s113, %s114
    %p125 = scmp.eq.s32.totalorder %s15, 0
    %p126 = por %p124, %p125
    %p127 = scmp.ne.s32.totalorder %s113, %s114
    %p128 = scmp.eq.s32.totalorder %s16, 1
    %p129 = por %p127, %p128
    %p131 = scmp.ne.s32.totalorder %s114, %s130
    %p132 = scmp.eq.s32.totalorder %s16, 0
    %p133 = por %p131, %p132
    %s134 = ssub.s32 %s18, %s25
    %s135 = ssub.s32 %s17, %s29
    %s136 = sor.u32 %s134, %s135
    %p137 = scmp.eq.s32.totalorder %s136, 0
    %s139 = sadd.s32 %s138, 1
    %s140 = scalar_select %p137, %s138, %s139
    %p143 = pneg %p137
    %p144 = scmp.eq.s32.totalorder %s10, 1
    %p145 = por %p143, %p144
    %p146 = scmp.ne.s32.totalorder %s138, %s141
    %p147 = scmp.eq.s32.totalorder %s10, 0
    %p148 = por %p146, %p147
    %p149 = scmp.ne.s32.totalorder %s138, %s141
    %p150 = scmp.eq.s32.totalorder %s15, 1
    %p151 = por %p149, %p150
    %p152 = scmp.ne.s32.totalorder %s141, %s142
    %p153 = scmp.eq.s32.totalorder %s15, 0
    %p154 = por %p152, %p153
    %p155 = scmp.ne.s32.totalorder %s141, %s142
    %p156 = scmp.eq.s32.totalorder %s16, 1
    %p157 = por %p155, %p156
    %p159 = scmp.ne.s32.totalorder %s142, %s158
    %p160 = scmp.eq.s32.totalorder %s16, 0
    %p161 = por %p159, %p160
    %p162 = scmp.le.s32.totalorder 1, %s10
    %p163 = scmp.lt.s32.totalorder %s10, 3
    %p164 = pnand %p162, %p163
    %p165 = pneg %p164
    // Predicated region
    $region9: #{acos_forward.7} parent=5 // pred_check
      _
    $region10: #{acos_forward.7} parent=5 // pred_check_branch
      %167 = sbr.rel (%p164) target = $region12
    $region11: #{acos_forward.7} parent=5 // pred_region
      %s168 = ssub.s32 %s10, 1
      // Predicated region
      $region13: #{acos_forward.7} parent=11 // pred_check
        %p169 = pneg %p48
      $region14: #{acos_forward.7} parent=11 // pred_check_branch
        %171 = sbr.rel (%p169) target = $region16
      $region15: #{acos_forward.7} parent=11 // pred_region
        %s172 = smul.u32 2, %s19
        %p173 = scmp.lt.s32.totalorder %s172, 1
        %s174 = scalar_select %p173, %s172, 1
        %s175 = smul.addr %s174, 4
        %s176 = scalar_lea.vmem %s0, %s175
        %s177 = smul.u32 2, %s19
      $region16: #{acos_forward.7} parent=11 // pred_fallthru
        _
    $region12: #{acos_forward.7} parent=5 // pred_fallthru
      _
    %p178 = scmp.lt.s32.totalorder %s10, 2
    // Predicated region
    $region17: #{acos_forward.7} parent=5 // pred_check
      %p179 = pneg %p178
    $region18: #{acos_forward.7} parent=5 // pred_check_branch
      %181 = sbr.rel (%p179) target = $region20
    $region19: #{acos_forward.7} parent=5 // pred_region
      // Predicated region
      $region21: #{acos_forward.7} parent=19 // pred_check
        %p182 = pneg %p68
      $region22: #{acos_forward.7} parent=19 // pred_check_branch
        %184 = sbr.rel (%p182) target = $region24
      $region23: #{acos_forward.7} parent=19 // pred_region
        %p185 = scmp.lt.s32.totalorder %s18, 1
        %s186 = scalar_select %p185, %s18, 1
        %s187 = smul.addr %s186, 8
        %s188 = smul.addr %s187, 4
        %s189 = scalar_lea.vmem %s1, %s188
      $region24: #{acos_forward.7} parent=19 // pred_fallthru
        _
      // Predicated region
      $region25: #{acos_forward.7} parent=19 // pred_check
        %p190 = pneg %p94
      $region26: #{acos_forward.7} parent=19 // pred_check_branch
        %192 = sbr.rel (%p190) target = $region28
      $region27: #{acos_forward.7} parent=19 // pred_region
        %p193 = scmp.lt.s32.totalorder %s18, 1
        %s194 = scalar_select %p193, %s18, 1
        %s195 = scalar_lea.vmem %s2, %s194
      $region28: #{acos_forward.7} parent=19 // pred_fallthru
        _
      // Predicated region
      $region29: #{acos_forward.7} parent=19 // pred_check
        %p196 = pneg %p120
      $region30: #{acos_forward.7} parent=19 // pred_check_branch
        %198 = sbr.rel (%p196) target = $region32
      $region31: #{acos_forward.7} parent=19 // pred_region
        %p199 = scmp.lt.s32.totalorder %s18, 1
        %s200 = scalar_select %p199, %s18, 1
        %s201 = smul.addr %s200, 4
        %s202 = smul.addr %s201, 4
        %s203 = scalar_lea.vmem %s3, %s202
      $region32: #{acos_forward.7} parent=19 // pred_fallthru
        _
    $region20: #{acos_forward.7} parent=5 // pred_fallthru
      _
    %p204 = scmp.le.s32.totalorder 1, %s10
    %p205 = scmp.lt.s32.totalorder %s10, 3
    %p206 = pnand %p204, %p205
    %p207 = pneg %p206
    // Predicated region
    $region33: #{acos_forward.7} parent=5 // pred_check
      _
    $region34: #{acos_forward.7} parent=5 // pred_check_branch
      %209 = sbr.rel (%p206) target = $region36
    $region35: #{acos_forward.7} parent=5 // pred_region
      %s210 = ssub.s32 %s10, 1
      %s211 = smul.u32 2, %s19
      %p212 = scmp.lt.s32.totalorder %s211, 1
      %s213 = scalar_select %p212, %s211, 1
      %s214 = smul.addr %s213, 4
      %s215 = scalar_lea.vmem %s0, %s214
      %p216 = pneg %p48
      %p217 = pneg %p45
      %p218 = scmp.lt.s32.totalorder %s20, 1
      %s219 = scalar_select %p218, %s20, 1
      %s220 = smul.addr %s219, 8
      %s221 = smul.addr %s220, 4
      %s222 = scalar_lea.vmem %s1, %s221
      %p223 = pneg %p74
      %p224 = pneg %p71
      %p225 = scmp.lt.s32.totalorder %s20, 1
      %s226 = scalar_select %p225, %s20, 1
      %s227 = scalar_lea.vmem %s2, %s226
      %p228 = pneg %p100
      %p229 = pneg %p97
      %p230 = scmp.lt.s32.totalorder %s20, 1
      %s231 = scalar_select %p230, %s20, 1
      %s232 = smul.addr %s231, 4
      %s233 = smul.addr %s232, 4
      %s234 = scalar_lea.vmem %s3, %s233
      %p235 = pneg %p126
      %p236 = pneg %p123
      %p237 = pneg %p154
      %p238 = pneg %p151
      %s239 = smul.u32 2, %s19
      %p240 = scmp.lt.s32.totalorder %s20, 1
      %s241 = scalar_select %p240, %s20, 1
      %p242 = scmp.lt.s32.totalorder %s239, 1
      %s243 = scalar_select %p242, %s239, 1
      %s244 = smul.addr %s241, 2
      %s245 = sadd.s32 %s243, %s244
      %s246 = smul.addr %s245, 4
      %s247 = scalar_lea.vmem %s4, %s246
      %s248 = smul.u32 2, %s19
      %p249 = scmp.lt.s32.totalorder %s248, 1
      %s250 = scalar_select %p249, %s248, 1
      %s251 = smul.addr %s250, 4
      %s252 = scalar_lea.vmem %s0, %s251
      %s253 = smul.u32 2, %s19
      %p254 = scmp.lt.s32.totalorder %s20, 1
      %s255 = scalar_select %p254, %s20, 1
      %s256 = smul.addr %s255, 8
      %s257 = smul.addr %s256, 4
      %s258 = scalar_lea.vmem %s1, %s257
      %p259 = scmp.lt.s32.totalorder %s20, 1
      %s260 = scalar_select %p259, %s20, 1
      %s261 = scalar_lea.vmem %s2, %s260
      %p262 = scmp.lt.s32.totalorder %s20, 1
      %s263 = scalar_select %p262, %s20, 1
      %s264 = smul.addr %s263, 4
      %s265 = smul.addr %s264, 4
      %s266 = scalar_lea.vmem %s3, %s265
      %s267 = smul.u32 2, %s19
      %p268 = scmp.lt.s32.totalorder %s20, 1
      %s269 = scalar_select %p268, %s20, 1
      %p270 = scmp.lt.s32.totalorder %s267, 1
      %s271 = scalar_select %p270, %s267, 1
      %s272 = smul.addr %s269, 2
      %s273 = sadd.s32 %s271, %s272
      %s274 = smul.addr %s273, 4
      %s275 = scalar_lea.vmem %s4, %s274
      %s276 = smul.u32 2, %s19
      %v278 = vld [vmem:[%s252] sm:$0xf]
      %v279 = vld [vmem:[%s252 + $0x4] sm:$0xf]
      %v280 = vld [vmem:[%s258] sm:$0xf]
      %v281 = vld [vmem:[%s258 + $0x4] sm:$0xf]
      %v282 = vld [vmem:[%s258 + $0x8] sm:$0xf]
      %v283 = vld [vmem:[%s258 + $0xc] sm:$0xf]
      %v284 = vld [vmem:[%s258 + $0x10] sm:$0xf]
      %v285 = vld [vmem:[%s258 + $0x14] sm:$0xf]
      %v286 = vld [vmem:[%s258 + $0x18] sm:$0xf]
      %v287 = vld [vmem:[%s258 + $0x1c] sm:$0xf]
      %v288 = vld [vmem:[%s261] sm:$0x1]
      %v290 = vlaneseq
      %v291 = vshrl.u32 %v290, 7
      %v292 = vsub.s32 0, %v291
      %v293 = vrot.slane %v288, %v292
      %v297 = vunpack.c.l.b16 %v278
      %v298 = vunpack.c.l.b16 %v279
      %v299 = vpack.c.b16 %v298, %v297
      %v308 = vunpack.c.l.b16 %v280
      %v309 = vunpack.c.l.b16 %v281
      %v310 = vunpack.c.l.b16 %v282
      %v311 = vunpack.c.l.b16 %v283
      %v312 = vunpack.c.l.b16 %v284
      %v313 = vunpack.c.l.b16 %v285
      %v314 = vunpack.c.l.b16 %v286
      %v315 = vunpack.c.l.b16 %v287
      %v316 = vpack.c.b16 %v309, %v308
      %v317 = vpack.c.b16 %v311, %v310
      %v318 = vpack.c.b16 %v313, %v312
      %v319 = vpack.c.b16 %v315, %v314
      %vm324 = vcmask 523264
      %v326 = vsel %vm324, %v299, 0
      %328 = vmatprep.subr.bf16.mxu0 0
      %329 = vmatpush1.bf16.msra.mxu0 0
      %330 = vmatprep.subr.bf16.mxu0 0
      %331 = vmatpush1.bf16.msra.mxu0 0
      %332 = vmatprep.subr.bf16.mxu0 0
      %333 = vmatpush1.bf16.msra.mxu0 0
      %334 = vmatprep.subr.bf16.mxu0 0
      %335 = vmatpush1.bf16.msra.mxu0 0
      %336 = vmatprep.subr.bf16.mxu0 0
      %337 = vmatpush1.bf16.msra.mxu0 %v319
      %338 = vmatprep.subr.bf16.mxu0 0
      %339 = vmatpush1.bf16.msra.mxu0 %v318
      %340 = vmatprep.subr.bf16.mxu0 0
      %341 = vmatpush1.bf16.msra.mxu0 %v317
      %342 = vmatprep.subr.bf16.mxu0 0
      %343 = vmatpush1.bf16.msra.mxu0 %v316
      %344 = vmatprep.subr.bf16.mxu0 0
      %345 = vmatpush2.bf16.msra.mxu0 0
      %346 = vmatprep.subr.bf16.mxu0 0
      %347 = vmatpush2.bf16.msra.mxu0 0
      %348 = vmatprep.subr.bf16.mxu0 0
      %349 = vmatpush2.bf16.msra.mxu0 0
      %350 = vmatprep.subr.bf16.mxu0 0
      %351 = vmatpush2.bf16.msra.mxu0 0
      %352 = vmatprep.subr.bf16.mxu0 0
      %353 = vmatpush2.bf16.msra.mxu0 0
      %354 = vmatprep.subr.bf16.mxu0 0
      %355 = vmatpush2.bf16.msra.mxu0 0
      %356 = vmatprep.subr.bf16.mxu0 0
      %357 = vmatpush2.bf16.msra.mxu0 0
      %358 = vmatprep.subr.bf16.mxu0 0
      %359 = vmatpush2.bf16.msra.mxu0 0
      %360 = vmatprep.mubr.bf16.mxu0 0
      %361 = vmatmul.mubr.bf16.gmra.mxu0 %v326
      %v362 = vpop.f32.mrf.mxu0
      %v363 = vadd.f32 %v293, %v362
      %v364 = vpop.f32.mrf.mxu0
      %v365 = vpop.f32.mrf.mxu0
      %v366 = vadd.f32 %v293, %v365
      %v367 = vpop.f32.mrf.mxu0
      %368 = vdwg.mxu0
      %v369 = vcombine.high %v363, 0.0
      %v371 = vunpack.c.l.s4 1983009808
      %v372 = vunpack.c.0.s8 %v371
      %v373 = vlaneseq
      %v374 = vshrl.u32 %v373, 7
      %v375 = vsub.s32 %v372, %v374
      %v376 = vrot.slane %v363, %v375
      %v378 = vunpack.c.l.s4 1983009808
      %v379 = vunpack.c.0.s8 %v378
      %v380 = vlaneseq
      %v381 = vshrl.u32 %v380, 7
      %v382 = vsub.s32 %v379, %v381
      %v383 = vrot.slane %v369, %v382
      %v384 = vcombine.high %v366, 0.0
      %v386 = vunpack.c.l.s4 1983009808
      %v387 = vunpack.c.0.s8 %v386
      %v388 = vlaneseq
      %v389 = vshrl.u32 %v388, 7
      %v390 = vsub.s32 %v387, %v389
      %v391 = vrot.slane %v366, %v390
      %v393 = vunpack.c.l.s4 1983009808
      %v394 = vunpack.c.0.s8 %v393
      %v395 = vlaneseq
      %v396 = vshrl.u32 %v395, 7
      %v397 = vsub.s32 %v394, %v396
      %v398 = vrot.slane %v384, %v397
      %v399 = vcombine.low %v376, %v391
      %v400 = vcombine.high %v376, %v391
      %v402 = vunpack.c.l.s4 1934713408
      %v403 = vunpack.c.0.s8 %v402
      %v404 = vlaneseq
      %v405 = vshrl.u32 %v404, 7
      %v406 = vsub.s32 %v403, %v405
      %v407 = vrot.slane %v399, %v406
      %v409 = vunpack.c.l.s4 1934713408
      %v410 = vunpack.c.0.s8 %v409
      %v411 = vlaneseq
      %v412 = vshrl.u32 %v411, 7
      %v413 = vsub.s32 %v410, %v412
      %v414 = vrot.slane %v400, %v413
      %v415 = vcombine.low %v383, %v398
      %v416 = vcombine.high %v383, %v398
      %v418 = vunpack.c.l.s4 1934713408
      %v419 = vunpack.c.0.s8 %v418
      %v420 = vlaneseq
      %v421 = vshrl.u32 %v420, 7
      %v422 = vsub.s32 %v419, %v421
      %v423 = vrot.slane %v415, %v422
      %v425 = vunpack.c.l.s4 1934713408
      %v426 = vunpack.c.0.s8 %v425
      %v427 = vlaneseq
      %v428 = vshrl.u32 %v427, 7
      %v429 = vsub.s32 %v426, %v428
      %v430 = vrot.slane %v416, %v429
      %v431 = vcombine.high %v407, 0.0
      %v432 = vcombine.high %v414, 0.0
      %v433 = vcombine.high %v423, 0.0
      %v434 = vcombine.high %v430, 0.0
      %435 = vst [vmem:[#allocation2] sm:$0x3] %v407
      %436 = vst [vmem:[#allocation2 + $0x2] sm:$0x3] %v431
      %437 = vst [vmem:[#allocation2 + $0x4] sm:$0x3] %v414
      %438 = vst [vmem:[#allocation2 + $0x6] sm:$0x3] %v432
      %439 = vst [vmem:[#allocation2 + $0x8] sm:$0x3] %v423
      %440 = vst [vmem:[#allocation2 + $0xa] sm:$0x3] %v433
      %441 = vst [vmem:[#allocation2 + $0xc] sm:$0x3] %v430
      %442 = vst [vmem:[#allocation2 + $0xe] sm:$0x3] %v434
      loop: start=0, step=1, limit=8
      $region37: #{acos_forward.7} parent=35 // loop_pre_header
        _
      $region38: #{acos_forward.7} parent=35 // loop_header
        %s444 = sphi 0, %s448
        %p445 = scmp.ge.s32.totalorder %s444, 8
        %v449 = vphi 0.0, %v545
        %v450 = vphi 0.0, %v539
      $region39: #{acos_forward.7} parent=35 // loop_header_branch
        %447 = sbr.rel (%p445) target = $region43
      $region40: #{acos_forward.7} parent=35 // loop_body
        %p451 = scmp.eq.s32.totalorder %s20, 0
        %s452 = ssub.s32 7, %s444
        %s453 = scalar_select %p451, %s444, %s452
        %s454 = smul.u32 %s453, 2
        %s455 = scalar_lea.vmem [#allocation2], %s454
        %v456 = vld [vmem:[%s455] sm:$0x3]
        %v457 = vpack.c.bf16 %v449, %v449
        %v458 = vld [vmem:[%s266] sm:$0xf]
        %v459 = vld [vmem:[%s266 + $0x4] sm:$0xf]
        %v460 = vld [vmem:[%s266 + $0x8] sm:$0xf]
        %v461 = vld [vmem:[%s266 + $0xc] sm:$0xf]
        %463 = vrot.lane.b32.xlu0 %v457, 32
        %v464 = vpop.permute.xlu0 %463
        %v469 = vunpack.c.l.b16 %v458
        %v470 = vunpack.c.l.b16 %v459
        %v471 = vunpack.c.l.b16 %v460
        %v472 = vunpack.c.l.b16 %v461
        %v473 = vpack.c.b16 %v470, %v469
        %v474 = vpack.c.b16 %v472, %v471
        %vm477 = vcmask 261120
        %v479 = vsel %vm477, %v464, 0
        %481 = vmatprep.subr.bf16.mxu0 0
        %482 = vmatpush1.bf16.msra.mxu0 0
        %483 = vmatprep.subr.bf16.mxu0 0
        %484 = vmatpush1.bf16.msra.mxu0 0
        %485 = vmatprep.subr.bf16.mxu0 0
        %486 = vmatpush1.bf16.msra.mxu0 0
        %487 = vmatprep.subr.bf16.mxu0 0
        %488 = vmatpush1.bf16.msra.mxu0 0
        %489 = vmatprep.subr.bf16.mxu0 0
        %490 = vmatpush1.bf16.msra.mxu0 0
        %491 = vmatprep.subr.bf16.mxu0 0
        %492 = vmatpush1.bf16.msra.mxu0 0
        %493 = vmatprep.subr.bf16.mxu0 0
        %494 = vmatpush1.bf16.msra.mxu0 %v474
        %495 = vmatprep.subr.bf16.mxu0 0
        %496 = vmatpush1.bf16.msra.mxu0 %v473
        %497 = vmatprep.subr.bf16.mxu0 0
        %498 = vmatpush2.bf16.msra.mxu0 0
        %499 = vmatprep.subr.bf16.mxu0 0
        %500 = vmatpush2.bf16.msra.mxu0 0
        %501 = vmatprep.subr.bf16.mxu0 0
        %502 = vmatpush2.bf16.msra.mxu0 0
        %503 = vmatprep.subr.bf16.mxu0 0
        %504 = vmatpush2.bf16.msra.mxu0 0
        %505 = vmatprep.subr.bf16.mxu0 0
        %506 = vmatpush2.bf16.msra.mxu0 0
        %507 = vmatprep.subr.bf16.mxu0 0
        %508 = vmatpush2.bf16.msra.mxu0 0
        %509 = vmatprep.subr.bf16.mxu0 0
        %510 = vmatpush2.bf16.msra.mxu0 0
        %511 = vmatprep.subr.bf16.mxu0 0
        %512 = vmatpush2.bf16.msra.mxu0 0
        %513 = vmatprep.mubr.bf16.mxu0 0
        %514 = vmatmul.mubr.bf16.gmra.mxu0 %v479
        %v515 = vpop.f32.mrf.mxu0
        %v516 = vadd.f32 0.0, %v515
        %v517 = vpop.f32.mrf.mxu0
        %v518 = vpop.f32.mrf.mxu0
        %v519 = vpop.f32.mrf.mxu0
        %520 = vdwg.mxu0
        %v521 = vadd.f32 %v456, %v516
        %v522 = vxor.u32 %v521, 2147483648
        %v523 = vmul.f32 %v522, 1.442695
        %v524 = vpow.pop %v523
        %v525 = vadd.f32 %v524, 1.0
        %v526 = vrcp.pop %v525
        %v527 = vmul.f32 1.0, %v526
        %v528 = vtanh.pop %v521
        %v529 = vmul.f32 %v527, %v450
        %531 = vrot.lane.b32.xlu0 %v528, 64
        %v532 = vpop.permute.xlu0 %531
        %v534 = vmul.f32 %v527, %v532
        %536 = vrot.lane.b32.xlu0 %v534, 32
        %v537 = vpop.permute.xlu0 %536
        %v539 = vadd.f32 %v529, %v537
        %v540 = vtanh.pop %v539
        %542 = vrot.lane.b32.xlu0 %v540, 64
        %v543 = vpop.permute.xlu0 %542
        %v545 = vmul.f32 %v527, %v543
        %547 = vrot.lane.b32.xlu0 %v545, 32
        %v548 = vpop.permute.xlu0 %547
        %s550 = scalar_lea.vmem [#allocation3], %s454
        %vm551 = vcmask 254976
        %552 = vst.msk [vmem:[%s550] sm:$0x3] %vm551, %v548
      $region41: #{acos_forward.7} parent=35 // loop_footer
        %s448 = sadd.s32 1, %s444
      $region42: #{acos_forward.7} parent=35 // loop_footer_branch
        %443 = sbr.rel target = $region38
      $region43: #{acos_forward.7} parent=35 // loop_exit
        _
      %v553 = vld [vmem:[#allocation3] sm:$0x3]
      %v554 = vld [vmem:[#allocation3 + $0x2] sm:$0x3]
      %v555 = vld [vmem:[#allocation3 + $0x4] sm:$0x3]
      %v556 = vld [vmem:[#allocation3 + $0x6] sm:$0x3]
      %v557 = vld [vmem:[#allocation3 + $0x8] sm:$0x3]
      %v558 = vld [vmem:[#allocation3 + $0xa] sm:$0x3]
      %v559 = vld [vmem:[#allocation3 + $0xc] sm:$0x3]
      %v560 = vld [vmem:[#allocation3 + $0xe] sm:$0x3]
      %v561 = vcombine.low %v553, %v555
      %v563 = vunpack.c.l.s4 1983009808
      %v564 = vunpack.c.0.s8 %v563
      %v565 = vlaneseq
      %v566 = vshrl.u32 %v565, 7
      %v567 = vsub.s32 %v564, %v566
      %v568 = vrot.slane %v561, %v567
      %v569 = vcombine.low %v554, %v556
      %v571 = vunpack.c.l.s4 1983009808
      %v572 = vunpack.c.0.s8 %v571
      %v573 = vlaneseq
      %v574 = vshrl.u32 %v573, 7
      %v575 = vsub.s32 %v572, %v574
      %v576 = vrot.slane %v569, %v575
      %v577 = vcombine.low %v557, %v559
      %v579 = vunpack.c.l.s4 1983009808
      %v580 = vunpack.c.0.s8 %v579
      %v581 = vlaneseq
      %v582 = vshrl.u32 %v581, 7
      %v583 = vsub.s32 %v580, %v582
      %v584 = vrot.slane %v577, %v583
      %v585 = vcombine.low %v558, %v560
      %v587 = vunpack.c.l.s4 1983009808
      %v588 = vunpack.c.0.s8 %v587
      %v589 = vlaneseq
      %v590 = vshrl.u32 %v589, 7
      %v591 = vsub.s32 %v588, %v590
      %v592 = vrot.slane %v585, %v591
      %v593 = vcombine.low %v568, %v576
      %v595 = vunpack.c.l.s4 1934713408
      %v596 = vunpack.c.0.s8 %v595
      %v597 = vlaneseq
      %v598 = vshrl.u32 %v597, 7
      %v599 = vsub.s32 %v596, %v598
      %v600 = vrot.slane %v593, %v599
      %v601 = vcombine.low %v584, %v592
      %v603 = vunpack.c.l.s4 1934713408
      %v604 = vunpack.c.0.s8 %v603
      %v605 = vlaneseq
      %v606 = vshrl.u32 %v605, 7
      %v607 = vsub.s32 %v604, %v606
      %v608 = vrot.slane %v601, %v607
      %v609 = vcombine.low %v600, %v608
      %v610 = vcombine.high %v600, %v608
      %v611 = vpack.c.bf16 %v610, %v609
      %v613 = vunpack.c.l.b16 %v611
      %v614 = vunpack.c.h.b16 %v611
      %v615 = vpack.c.b16 %v613, %v613
      %v616 = vpack.c.b16 %v614, %v614
      %vm619 = vcmask 257024
      %620 = vst.msk [vmem:[%s275] sm:$0xf] %vm619, %v615
      %621 = vst.msk [vmem:[%s275 + $0x4] sm:$0xf] %vm619, %v616
      %s622 = smul.u32 2, %s19
      %p623 = scmp.lt.s32.totalorder %s20, 1
      %s624 = scalar_select %p623, %s20, 1
      %p625 = scmp.lt.s32.totalorder %s622, 1
      %s626 = scalar_select %p625, %s622, 1
      %s627 = smul.addr %s624, 2
      %s628 = sadd.s32 %s626, %s627
      %s629 = smul.addr %s628, 4
      %s630 = scalar_lea.vmem %s4, %s629
      // Predicated region
      $region44: #{acos_forward.7} parent=35 // pred_check
        %p631 = pneg %p151
      $region45: #{acos_forward.7} parent=35 // pred_check_branch
        %633 = sbr.rel (%p631) target = $region47
      $region46: #{acos_forward.7} parent=35 // pred_region
        %s634 = smul.u32 2, %s19
      $region47: #{acos_forward.7} parent=35 // pred_fallthru
        _
    $region36: #{acos_forward.7} parent=5 // pred_fallthru
      _
    %p635 = scmp.le.s32.totalorder 2, %s10
    // Predicated region
    $region48: #{acos_forward.7} parent=5 // pred_check
      %p636 = pneg %p635
    $region49: #{acos_forward.7} parent=5 // pred_check_branch
      %638 = sbr.rel (%p636) target = $region51
    $region50: #{acos_forward.7} parent=5 // pred_region
      %s639 = ssub.s32 %s10, 2
      // Predicated region
      $region52: #{acos_forward.7} parent=50 // pred_check
        %p640 = pneg %p157
      $region53: #{acos_forward.7} parent=50 // pred_check_branch
        %642 = sbr.rel (%p640) target = $region55
      $region54: #{acos_forward.7} parent=50 // pred_region
        %s643 = smul.u32 2, %s21
        %p644 = scmp.lt.s32.totalorder %s22, 1
        %s645 = scalar_select %p644, %s22, 1
        %p646 = scmp.lt.s32.totalorder %s643, 1
        %s647 = scalar_select %p646, %s643, 1
        %s648 = smul.addr %s645, 2
        %s649 = sadd.s32 %s647, %s648
        %s650 = smul.addr %s649, 4
        %s651 = scalar_lea.vmem %s4, %s650
      $region55: #{acos_forward.7} parent=50 // pred_fallthru
        _
    $region51: #{acos_forward.7} parent=5 // pred_fallthru
      _
  $region6: #{acos_forward.7} parent=0 // loop_footer
    %s14 = sadd.s32 1, %s10
  $region7: #{acos_forward.7} parent=0 // loop_footer_branch
    %9 = sbr.rel target = $region3
  $region8: #{acos_forward.7} parent=0 // loop_exit
    _

// kernel: acos_forward.5
$region0: #{acos_forward.5}
  #allocation0 [shape = 'u32[]', space=smem, size = 0x4, offset = 0x4, fixed_abs, tag = 'smem constant byte address 0x4 - core index']
  #allocation1 [shape = 'u32[144,128]{1,0:T(1,128)}', space=vmem, size = 0x12000, scoped, tag = 'internal scratch']
  %s0 = inlined_call_operand.vmem [shape: f32[16,64], index: 0, kind: input, shape index: {}]
  %s1 = inlined_call_operand.vmem [shape: f32[1,64], index: 1, kind: input, shape index: {}]
  %s2 = inlined_call_operand.vmem [shape: f32[1,64], index: 2, kind: input, shape index: {}]
  %s3 = inlined_call_operand.vmem [shape: bf16[64,192], index: 3, kind: input, shape index: {}]
  %s4 = inlined_call_operand.vmem [shape: f32[1,192], index: 4, kind: input, shape index: {}]
  %s5 = inlined_call_operand.vmem [shape: bf16[16,64], index: 5, kind: output, shape index: {0}]
  %s6 = inlined_call_operand.vmem [shape: bf16[16,192], index: 6, kind: output, shape index: {1}]
  %7 = xla_tuple %s5, %s6
  %s8 = sld [smem:[#allocation0]]
  $region38: #{acos_forward.5} parent=0
    _
  %s10 = ssub.s32 1, %s8
  %s11 = scalar_select 0, %s10, %s8
  // Predicated region
  $region2: #{acos_forward.5} parent=0 // pred_check
    _
  $region3: #{acos_forward.5} parent=0 // pred_check_branch
    %13 = sbr.rel (0) target = $region5
  $region4: #{acos_forward.5} parent=0 // pred_region
    _
  $region5: #{acos_forward.5} parent=0 // pred_fallthru
    _
  // Predicated region
  $region6: #{acos_forward.5} parent=0 // pred_check
    _
  $region7: #{acos_forward.5} parent=0 // pred_check_branch
    %15 = sbr.rel (0) target = $region9
  $region8: #{acos_forward.5} parent=0 // pred_region
    _
  $region9: #{acos_forward.5} parent=0 // pred_fallthru
    _
  // Predicated region
  $region10: #{acos_forward.5} parent=0 // pred_check
    _
  $region11: #{acos_forward.5} parent=0 // pred_check_branch
    %17 = sbr.rel (0) target = $region13
  $region12: #{acos_forward.5} parent=0 // pred_region
    _
  $region13: #{acos_forward.5} parent=0 // pred_fallthru
    _
  // Predicated region
  $region14: #{acos_forward.5} parent=0 // pred_check
    _
  $region15: #{acos_forward.5} parent=0 // pred_check_branch
    %19 = sbr.rel (0) target = $region17
  $region16: #{acos_forward.5} parent=0 // pred_region
    _
  $region17: #{acos_forward.5} parent=0 // pred_fallthru
    _
  // Predicated region
  $region18: #{acos_forward.5} parent=0 // pred_check
    _
  $region19: #{acos_forward.5} parent=0 // pred_check_branch
    %21 = sbr.rel (0) target = $region21
  $region20: #{acos_forward.5} parent=0 // pred_region
    _
  $region21: #{acos_forward.5} parent=0 // pred_fallthru
    _
  %v23 = vld [vmem:[%s0] sm:$0xff]
  %v24 = vld [vmem:[%s0 + $0x8] sm:$0xff]
  %vm25 = vcmask 523264
  %v26 = vsel %vm25, %v23, 0.0
  %27 = vadd.xlane.f32.xlu0 %v26
  %v28 = vpop.xlane.xlu0 %27
  %v29 = vsel %vm25, %v24, 0.0
  %30 = vadd.xlane.f32.xlu0 %v29
  %v31 = vpop.xlane.xlu0 %30
  %v32 = vrcp.pop 64.0
  %v33 = vmul.f32 %v28, %v32
  %v34 = vmul.f32 %v31, %v32
  %v35 = vsub.f32 %v23, %v33
  %v36 = vsub.f32 %v24, %v34
  %v37 = vmul.f32 %v35, %v35
  %v38 = vmul.f32 %v36, %v36
  %v39 = vsel %vm25, %v37, 0.0
  %40 = vadd.xlane.f32.xlu0 %v39
  %v41 = vpop.xlane.xlu0 %40
  %v42 = vsel %vm25, %v38, 0.0
  %43 = vadd.xlane.f32.xlu0 %v42
  %v44 = vpop.xlane.xlu0 %43
  %v45 = vmul.f32 %v41, %v32
  %v46 = vmul.f32 %v44, %v32
  %v47 = vadd.f32 %v45, 1e-05
  %v48 = vadd.f32 %v46, 1e-05
  %v49 = vrsqrt.pop %v47
  %v50 = vrsqrt.pop %v48
  %v51 = vmul.f32 %v35, %v49
  %v52 = vmul.f32 %v36, %v50
  %v53 = vld [vmem:[%s1] sm:$0x1]
  %v55 = vlaneseq
  %v56 = vshrl.u32 %v55, 7
  %v57 = vsub.s32 0, %v56
  %v58 = vrot.slane %v53, %v57
  %v60 = vmul.f32 %v51, %v58
  %v61 = vmul.f32 %v52, %v58
  %v62 = vld [vmem:[%s2] sm:$0x1]
  %v64 = vlaneseq
  %v65 = vshrl.u32 %v64, 7
  %v66 = vsub.s32 0, %v65
  %v67 = vrot.slane %v62, %v66
  %v69 = vadd.f32 %v60, %v67
  %v70 = vadd.f32 %v61, %v67
  %v71 = vpack.c.bf16 %v70, %v69
  %v73 = vunpack.c.l.b16 %v71
  %v74 = vunpack.c.h.b16 %v71
  %v75 = vpack.c.b16 %v73, %v73
  %v76 = vpack.c.b16 %v74, %v74
  %vm79 = vcmask 519168
  %80 = vst.msk [vmem:[%s5] sm:$0xf] %vm79, %v75
  %81 = vst.msk [vmem:[%s5 + $0x4] sm:$0xf] %vm79, %v76
  %v82 = vld [vmem:[%s3] sm:$0xff]
  %v83 = vld [vmem:[%s3 + $0x8] sm:$0xff]
  %v84 = vld [vmem:[%s3 + $0x10] sm:$0xff]
  %v85 = vld [vmem:[%s3 + $0x18] sm:$0xff]
  %v86 = vld [vmem:[%s3 + $0x20] sm:$0xff]
  %v87 = vld [vmem:[%s3 + $0x28] sm:$0xff]
  %v88 = vld [vmem:[%s3 + $0x30] sm:$0xff]
  %v89 = vld [vmem:[%s3 + $0x38] sm:$0xff]
  %v90 = vld [vmem:[%s4] sm:$0x3]
  %v92 = vlaneseq
  %v93 = vshrl.u32 %v92, 7
  %v94 = vsub.s32 0, %v93
  %v95 = vrot.slane %v90, %v94
  %v96 = vlaneseq
  %v97 = vshrl.u32 %v96, 7
  %v98 = vsub.s32 1, %v97
  %v99 = vrot.slane %v90, %v98
  %v110 = vunpack.c.l.b16 %v82
  %v111 = vunpack.c.h.b16 %v82
  %v112 = vunpack.c.l.b16 %v83
  %v113 = vunpack.c.h.b16 %v83
  %v114 = vunpack.c.l.b16 %v84
  %v115 = vunpack.c.h.b16 %v84
  %v116 = vunpack.c.l.b16 %v85
  %v117 = vunpack.c.h.b16 %v85
  %v118 = vunpack.c.l.b16 %v86
  %v119 = vunpack.c.h.b16 %v86
  %v120 = vunpack.c.l.b16 %v87
  %v121 = vunpack.c.h.b16 %v87
  %v122 = vunpack.c.l.b16 %v88
  %v123 = vunpack.c.h.b16 %v88
  %v124 = vunpack.c.l.b16 %v89
  %v125 = vunpack.c.h.b16 %v89
  %v126 = vpack.c.b16 %v112, %v110
  %v127 = vpack.c.b16 %v113, %v111
  %v128 = vpack.c.b16 %v116, %v114
  %v129 = vpack.c.b16 %v117, %v115
  %v130 = vpack.c.b16 %v120, %v118
  %v131 = vpack.c.b16 %v121, %v119
  %v132 = vpack.c.b16 %v124, %v122
  %v133 = vpack.c.b16 %v125, %v123
  %v143 = vsel %vm25, %v71, 0
  %145 = vmatprep.subr.bf16.mxu0 0
  %146 = vmatpush1.bf16.msra.mxu0 0
  %147 = vmatprep.subr.bf16.mxu0 0
  %148 = vmatpush1.bf16.msra.mxu0 0
  %149 = vmatprep.subr.bf16.mxu0 0
  %150 = vmatpush1.bf16.msra.mxu0 0
  %151 = vmatprep.subr.bf16.mxu0 0
  %152 = vmatpush1.bf16.msra.mxu0 0
  %153 = vmatprep.subr.bf16.mxu0 %v133
  %154 = vmatpush1.bf16.msra.mxu0 %v132
  %155 = vmatprep.subr.bf16.mxu0 %v131
  %156 = vmatpush1.bf16.msra.mxu0 %v130
  %157 = vmatprep.subr.bf16.mxu0 %v129
  %158 = vmatpush1.bf16.msra.mxu0 %v128
  %159 = vmatprep.subr.bf16.mxu0 %v127
  %160 = vmatpush1.bf16.msra.mxu0 %v126
  %161 = vmatprep.subr.bf16.mxu0 0
  %162 = vmatpush2.bf16.msra.mxu0 0
  %163 = vmatprep.subr.bf16.mxu0 0
  %164 = vmatpush2.bf16.msra.mxu0 0
  %165 = vmatprep.subr.bf16.mxu0 0
  %166 = vmatpush2.bf16.msra.mxu0 0
  %167 = vmatprep.subr.bf16.mxu0 0
  %168 = vmatpush2.bf16.msra.mxu0 0
  %169 = vmatprep.subr.bf16.mxu0 0
  %170 = vmatpush2.bf16.msra.mxu0 0
  %171 = vmatprep.subr.bf16.mxu0 0
  %172 = vmatpush2.bf16.msra.mxu0 0
  %173 = vmatprep.subr.bf16.mxu0 0
  %174 = vmatpush2.bf16.msra.mxu0 0
  %175 = vmatprep.subr.bf16.mxu0 0
  %176 = vmatpush2.bf16.msra.mxu0 0
  %177 = vmatprep.mubr.bf16.mxu0 0
  %178 = vmatmul.mubr.bf16.gmra.mxu0 %v143
  %v179 = vpop.f32.mrf.mxu0
  %v180 = vadd.f32 %v95, %v179
  %v181 = vpop.f32.mrf.mxu0
  %v182 = vadd.f32 %v99, %v181
  %v183 = vpop.f32.mrf.mxu0
  %v184 = vadd.f32 %v95, %v183
  %v185 = vpop.f32.mrf.mxu0
  %v186 = vadd.f32 %v99, %v185
  %187 = vdwg.mxu0
  %v188 = vpack.c.bf16 %v184, %v180
  %v189 = vpack.c.bf16 %v186, %v182
  %v192 = vunpack.c.l.b16 %v188
  %v193 = vunpack.c.l.b16 %v189
  %v194 = vunpack.c.h.b16 %v188
  %v195 = vunpack.c.h.b16 %v189
  %v196 = vpack.c.b16 %v193, %v192
  %v197 = vpack.c.b16 %v195, %v194
  %vm200 = vcmask 1043456
  %vm201 = vcmask 523268
  %vm202 = vmor %vm201, %vm200
  %203 = vst.msk [vmem:[%s6] sm:$0xff] %vm202, %v196
  %204 = vst.msk [vmem:[%s6 + $0x8] sm:$0xff] %vm202, %v197
  // Predicated region
  $region22: #{acos_forward.5} parent=0 // pred_check
    _
  $region23: #{acos_forward.5} parent=0 // pred_check_branch
    %206 = sbr.rel (0) target = $region25
  $region24: #{acos_forward.5} parent=0 // pred_region
    _
  $region25: #{acos_forward.5} parent=0 // pred_fallthru
    _
  // Predicated region
  $region26: #{acos_forward.5} parent=0 // pred_check
    _
  $region27: #{acos_forward.5} parent=0 // pred_check_branch
    %208 = sbr.rel (0) target = $region29
  $region28: #{acos_forward.5} parent=0 // pred_region
    _
  $region29: #{acos_forward.5} parent=0 // pred_fallthru
    _
  // Predicated region
  $region30: #{acos_forward.5} parent=0 // pred_check
    _
  $region31: #{acos_forward.5} parent=0 // pred_check_branch
    %210 = sbr.rel (0) target = $region33
  $region32: #{acos_forward.5} parent=0 // pred_region
    _
  $region33: #{acos_forward.5} parent=0 // pred_fallthru
    _
  // Predicated region
  $region34: #{acos_forward.5} parent=0 // pred_check
    _
  $region35: #{acos_forward.5} parent=0 // pred_check_branch
    %212 = sbr.rel (0) target = $region37
  $region36: #{acos_forward.5} parent=0 // pred_region
    _
  $region37: #{acos_forward.5} parent=0 // pred_fallthru
    _

// kernel: acos_forward.8
$region0: #{acos_forward.8}
  #allocation0 [shape = 'u32[]', space=smem, size = 0x4, offset = 0x4, fixed_abs, tag = 'smem constant byte address 0x4 - core index']
  #allocation1 [shape = 'u32[144,128]{1,0:T(1,128)}', space=vmem, size = 0x12000, scoped, tag = 'internal scratch']
  %s0 = inlined_call_operand.vmem [shape: bf16[16,64], index: 0, kind: input, shape index: {}]
  %s1 = inlined_call_operand.vmem [shape: bf16[2,16,32], index: 1, kind: input, shape index: {}]
  %s2 = inlined_call_operand.vmem [shape: bf16[64,64], index: 2, kind: input, shape index: {}]
  %s3 = inlined_call_operand.vmem [shape: bf16[32,64], index: 3, kind: input, shape index: {}]
  %s4 = inlined_call_operand.vmem [shape: bf16[32,64], index: 4, kind: input, shape index: {}]
  %s5 = inlined_call_operand.vmem [shape: f32[1,64], index: 5, kind: input, shape index: {}]
  %s6 = inlined_call_operand.vmem [shape: bf16[64,256], index: 6, kind: input, shape index: {}]
  %s7 = inlined_call_operand.vmem [shape: f32[1,256], index: 7, kind: input, shape index: {}]
  %s8 = inlined_call_operand.vmem [shape: f32[16,256], index: 8, kind: output, shape index: {}]
  %s9 = sld [smem:[#allocation0]]
  $region42: #{acos_forward.8} parent=0
    _
  %s11 = ssub.s32 1, %s9
  %s12 = scalar_select 0, %s11, %s9
  // Predicated region
  $region2: #{acos_forward.8} parent=0 // pred_check
    _
  $region3: #{acos_forward.8} parent=0 // pred_check_branch
    %14 = sbr.rel (0) target = $region5
  $region4: #{acos_forward.8} parent=0 // pred_region
    _
  $region5: #{acos_forward.8} parent=0 // pred_fallthru
    _
  // Predicated region
  $region6: #{acos_forward.8} parent=0 // pred_check
    _
  $region7: #{acos_forward.8} parent=0 // pred_check_branch
    %16 = sbr.rel (0) target = $region9
  $region8: #{acos_forward.8} parent=0 // pred_region
    _
  $region9: #{acos_forward.8} parent=0 // pred_fallthru
    _
  // Predicated region
  $region10: #{acos_forward.8} parent=0 // pred_check
    _
  $region11: #{acos_forward.8} parent=0 // pred_check_branch
    %18 = sbr.rel (0) target = $region13
  $region12: #{acos_forward.8} parent=0 // pred_region
    _
  $region13: #{acos_forward.8} parent=0 // pred_fallthru
    _
  // Predicated region
  $region14: #{acos_forward.8} parent=0 // pred_check
    _
  $region15: #{acos_forward.8} parent=0 // pred_check_branch
    %20 = sbr.rel (0) target = $region17
  $region16: #{acos_forward.8} parent=0 // pred_region
    _
  $region17: #{acos_forward.8} parent=0 // pred_fallthru
    _
  // Predicated region
  $region18: #{acos_forward.8} parent=0 // pred_check
    _
  $region19: #{acos_forward.8} parent=0 // pred_check_branch
    %22 = sbr.rel (0) target = $region21
  $region20: #{acos_forward.8} parent=0 // pred_region
    _
  $region21: #{acos_forward.8} parent=0 // pred_fallthru
    _
  // Predicated region
  $region22: #{acos_forward.8} parent=0 // pred_check
    _
  $region23: #{acos_forward.8} parent=0 // pred_check_branch
    %24 = sbr.rel (0) target = $region25
  $region24: #{acos_forward.8} parent=0 // pred_region
    _
  $region25: #{acos_forward.8} parent=0 // pred_fallthru
    _
  // Predicated region
  $region26: #{acos_forward.8} parent=0 // pred_check
    _
  $region27: #{acos_forward.8} parent=0 // pred_check_branch
    %26 = sbr.rel (0) target = $region29
  $region28: #{acos_forward.8} parent=0 // pred_region
    _
  $region29: #{acos_forward.8} parent=0 // pred_fallthru
    _
  // Predicated region
  $region30: #{acos_forward.8} parent=0 // pred_check
    _
  $region31: #{acos_forward.8} parent=0 // pred_check_branch
    %28 = sbr.rel (0) target = $region33
  $region32: #{acos_forward.8} parent=0 // pred_region
    _
  $region33: #{acos_forward.8} parent=0 // pred_fallthru
    _
  %v30 = vld [vmem:[%s0] sm:$0xf]
  %v31 = vld [vmem:[%s0 + $0x4] sm:$0xf]
  %v32 = vld [vmem:[%s2] sm:$0xf]
  %v33 = vld [vmem:[%s2 + $0x4] sm:$0xf]
  %v34 = vld [vmem:[%s2 + $0x8] sm:$0xf]
  %v35 = vld [vmem:[%s2 + $0xc] sm:$0xf]
  %v36 = vld [vmem:[%s2 + $0x10] sm:$0xf]
  %v37 = vld [vmem:[%s2 + $0x14] sm:$0xf]
  %v38 = vld [vmem:[%s2 + $0x18] sm:$0xf]
  %v39 = vld [vmem:[%s2 + $0x1c] sm:$0xf]
  %v40 = vld [vmem:[%s1] sm:$0xf]
  %v41 = vld [vmem:[%s1 + $0x4] sm:$0xf]
  %v42 = vld [vmem:[%s3] sm:$0xf]
  %v43 = vld [vmem:[%s3 + $0x4] sm:$0xf]
  %v44 = vld [vmem:[%s3 + $0x8] sm:$0xf]
  %v45 = vld [vmem:[%s3 + $0xc] sm:$0xf]
  %v48 = vunpack.c.l.b16 %v40
  %v49 = vunpack.c.l.b16 %v41
  %v50 = vpack.c.b16 %v49, %v48
  %v55 = vunpack.c.l.b16 %v42
  %v56 = vunpack.c.l.b16 %v43
  %v57 = vunpack.c.l.b16 %v44
  %v58 = vunpack.c.l.b16 %v45
  %v59 = vpack.c.b16 %v56, %v55
  %v60 = vpack.c.b16 %v58, %v57
  %vm63 = vcmask 261120
  %v65 = vsel %vm63, %v50, 0
  %67 = vmatprep.subr.bf16.mxu0 0
  %68 = vmatpush1.bf16.msra.mxu0 0
  %69 = vmatprep.subr.bf16.mxu0 0
  %70 = vmatpush1.bf16.msra.mxu0 0
  %71 = vmatprep.subr.bf16.mxu0 0
  %72 = vmatpush1.bf16.msra.mxu0 0
  %73 = vmatprep.subr.bf16.mxu0 0
  %74 = vmatpush1.bf16.msra.mxu0 0
  %75 = vmatprep.subr.bf16.mxu0 0
  %76 = vmatpush1.bf16.msra.mxu0 0
  %77 = vmatprep.subr.bf16.mxu0 0
  %78 = vmatpush1.bf16.msra.mxu0 0
  %79 = vmatprep.subr.bf16.mxu0 0
  %80 = vmatpush1.bf16.msra.mxu0 %v60
  %81 = vmatprep.subr.bf16.mxu0 0
  %82 = vmatpush1.bf16.msra.mxu0 %v59
  %83 = vmatprep.subr.bf16.mxu0 0
  %84 = vmatpush2.bf16.msra.mxu0 0
  %85 = vmatprep.subr.bf16.mxu0 0
  %86 = vmatpush2.bf16.msra.mxu0 0
  %87 = vmatprep.subr.bf16.mxu0 0
  %88 = vmatpush2.bf16.msra.mxu0 0
  %89 = vmatprep.subr.bf16.mxu0 0
  %90 = vmatpush2.bf16.msra.mxu0 0
  %91 = vmatprep.subr.bf16.mxu0 0
  %92 = vmatpush2.bf16.msra.mxu0 0
  %93 = vmatprep.subr.bf16.mxu0 0
  %94 = vmatpush2.bf16.msra.mxu0 0
  %95 = vmatprep.subr.bf16.mxu0 0
  %96 = vmatpush2.bf16.msra.mxu0 0
  %97 = vmatprep.subr.bf16.mxu0 0
  %98 = vmatpush2.bf16.msra.mxu0 0
  %99 = vmatprep.mubr.bf16.mxu0 0
  %100 = vmatmul.mubr.bf16.gmra.mxu0 %v65
  %v101 = vpop.f32.mrf.mxu0
  %v102 = vadd.f32 0.0, %v101
  %v103 = vpop.f32.mrf.mxu0
  %v104 = vpop.f32.mrf.mxu0
  %v105 = vadd.f32 0.0, %v104
  %v106 = vpop.f32.mrf.mxu0
  %107 = vdwg.mxu0
  %v110 = vunpack.c.l.b16 %v30
  %v111 = vunpack.c.l.b16 %v31
  %v112 = vpack.c.b16 %v111, %v110
  %v121 = vunpack.c.l.b16 %v32
  %v122 = vunpack.c.l.b16 %v33
  %v123 = vunpack.c.l.b16 %v34
  %v124 = vunpack.c.l.b16 %v35
  %v125 = vunpack.c.l.b16 %v36
  %v126 = vunpack.c.l.b16 %v37
  %v127 = vunpack.c.l.b16 %v38
  %v128 = vunpack.c.l.b16 %v39
  %v129 = vpack.c.b16 %v122, %v121
  %v130 = vpack.c.b16 %v124, %v123
  %v131 = vpack.c.b16 %v126, %v125
  %v132 = vpack.c.b16 %v128, %v127
  %vm137 = vcmask 523264
  %v139 = vsel %vm137, %v112, 0
  %141 = vmatprep.subr.bf16.mxu0 0
  %142 = vmatpush1.bf16.msra.mxu0 0
  %143 = vmatprep.subr.bf16.mxu0 0
  %144 = vmatpush1.bf16.msra.mxu0 0
  %145 = vmatprep.subr.bf16.mxu0 0
  %146 = vmatpush1.bf16.msra.mxu0 0
  %147 = vmatprep.subr.bf16.mxu0 0
  %148 = vmatpush1.bf16.msra.mxu0 0
  %149 = vmatprep.subr.bf16.mxu0 0
  %150 = vmatpush1.bf16.msra.mxu0 %v132
  %151 = vmatprep.subr.bf16.mxu0 0
  %152 = vmatpush1.bf16.msra.mxu0 %v131
  %153 = vmatprep.subr.bf16.mxu0 0
  %154 = vmatpush1.bf16.msra.mxu0 %v130
  %155 = vmatprep.subr.bf16.mxu0 0
  %156 = vmatpush1.bf16.msra.mxu0 %v129
  %157 = vmatprep.subr.bf16.mxu0 0
  %158 = vmatpush2.bf16.msra.mxu0 0
  %159 = vmatprep.subr.bf16.mxu0 0
  %160 = vmatpush2.bf16.msra.mxu0 0
  %161 = vmatprep.subr.bf16.mxu0 0
  %162 = vmatpush2.bf16.msra.mxu0 0
  %163 = vmatprep.subr.bf16.mxu0 0
  %164 = vmatpush2.bf16.msra.mxu0 0
  %165 = vmatprep.subr.bf16.mxu0 0
  %166 = vmatpush2.bf16.msra.mxu0 0
  %167 = vmatprep.subr.bf16.mxu0 0
  %168 = vmatpush2.bf16.msra.mxu0 0
  %169 = vmatprep.subr.bf16.mxu0 0
  %170 = vmatpush2.bf16.msra.mxu0 0
  %171 = vmatprep.subr.bf16.mxu0 0
  %172 = vmatpush2.bf16.msra.mxu0 0
  %173 = vmatprep.mubr.bf16.mxu0 0
  %174 = vmatmul.mubr.bf16.gmra.mxu0 %v139
  %v175 = vpop.f32.mrf.mxu0
  %v176 = vadd.f32 %v102, %v175
  %v177 = vpop.f32.mrf.mxu0
  %v178 = vpop.f32.mrf.mxu0
  %v179 = vadd.f32 %v105, %v178
  %v180 = vpop.f32.mrf.mxu0
  %181 = vdwg.mxu0
  %s182 = scalar_lea.vmem %s1, 8
  %v183 = vld [vmem:[%s182] sm:$0xf]
  %v184 = vld [vmem:[%s182 + $0x4] sm:$0xf]
  %v185 = vld [vmem:[%s4] sm:$0xf]
  %v186 = vld [vmem:[%s4 + $0x4] sm:$0xf]
  %v187 = vld [vmem:[%s4 + $0x8] sm:$0xf]
  %v188 = vld [vmem:[%s4 + $0xc] sm:$0xf]
  %v191 = vunpack.c.l.b16 %v183
  %v192 = vunpack.c.l.b16 %v184
  %v193 = vpack.c.b16 %v192, %v191
  %v198 = vunpack.c.l.b16 %v185
  %v199 = vunpack.c.l.b16 %v186
  %v200 = vunpack.c.l.b16 %v187
  %v201 = vunpack.c.l.b16 %v188
  %v202 = vpack.c.b16 %v199, %v198
  %v203 = vpack.c.b16 %v201, %v200
  %v207 = vsel %vm63, %v193, 0
  %209 = vmatprep.subr.bf16.mxu0 0
  %210 = vmatpush1.bf16.msra.mxu0 0
  %211 = vmatprep.subr.bf16.mxu0 0
  %212 = vmatpush1.bf16.msra.mxu0 0
  %213 = vmatprep.subr.bf16.mxu0 0
  %214 = vmatpush1.bf16.msra.mxu0 0
  %215 = vmatprep.subr.bf16.mxu0 0
  %216 = vmatpush1.bf16.msra.mxu0 0
  %217 = vmatprep.subr.bf16.mxu0 0
  %218 = vmatpush1.bf16.msra.mxu0 0
  %219 = vmatprep.subr.bf16.mxu0 0
  %220 = vmatpush1.bf16.msra.mxu0 0
  %221 = vmatprep.subr.bf16.mxu0 0
  %222 = vmatpush1.bf16.msra.mxu0 %v203
  %223 = vmatprep.subr.bf16.mxu0 0
  %224 = vmatpush1.bf16.msra.mxu0 %v202
  %225 = vmatprep.subr.bf16.mxu0 0
  %226 = vmatpush2.bf16.msra.mxu0 0
  %227 = vmatprep.subr.bf16.mxu0 0
  %228 = vmatpush2.bf16.msra.mxu0 0
  %229 = vmatprep.subr.bf16.mxu0 0
  %230 = vmatpush2.bf16.msra.mxu0 0
  %231 = vmatprep.subr.bf16.mxu0 0
  %232 = vmatpush2.bf16.msra.mxu0 0
  %233 = vmatprep.subr.bf16.mxu0 0
  %234 = vmatpush2.bf16.msra.mxu0 0
  %235 = vmatprep.subr.bf16.mxu0 0
  %236 = vmatpush2.bf16.msra.mxu0 0
  %237 = vmatprep.subr.bf16.mxu0 0
  %238 = vmatpush2.bf16.msra.mxu0 0
  %239 = vmatprep.subr.bf16.mxu0 0
  %240 = vmatpush2.bf16.msra.mxu0 0
  %241 = vmatprep.mubr.bf16.mxu0 0
  %242 = vmatmul.mubr.bf16.gmra.mxu0 %v207
  %v243 = vpop.f32.mrf.mxu0
  %v244 = vadd.f32 0.0, %v243
  %v245 = vpop.f32.mrf.mxu0
  %v246 = vpop.f32.mrf.mxu0
  %v247 = vadd.f32 0.0, %v246
  %v248 = vpop.f32.mrf.mxu0
  %249 = vdwg.mxu0
  %v250 = vadd.f32 %v176, %v244
  %v251 = vadd.f32 %v179, %v247
  %v252 = vld [vmem:[%s5] sm:$0x1]
  %v254 = vlaneseq
  %v255 = vshrl.u32 %v254, 7
  %v256 = vsub.s32 0, %v255
  %v257 = vrot.slane %v252, %v256
  %v259 = vadd.f32 %v250, %v257
  %v260 = vadd.f32 %v251, %v257
  %v261 = vmax.f32 %v259, 0.0
  %v262 = vmax.f32 %v260, 0.0
  %v263 = vpack.c.bf16 %v262, %v261
  %v264 = vld [vmem:[%s6] sm:$0xff]
  %v265 = vld [vmem:[%s6 + $0x8] sm:$0xff]
  %v266 = vld [vmem:[%s6 + $0x10] sm:$0xff]
  %v267 = vld [vmem:[%s6 + $0x18] sm:$0xff]
  %v268 = vld [vmem:[%s6 + $0x20] sm:$0xff]
  %v269 = vld [vmem:[%s6 + $0x28] sm:$0xff]
  %v270 = vld [vmem:[%s6 + $0x30] sm:$0xff]
  %v271 = vld [vmem:[%s6 + $0x38] sm:$0xff]
  %v272 = vld [vmem:[%s7] sm:$0x3]
  %v274 = vlaneseq
  %v275 = vshrl.u32 %v274, 7
  %v276 = vsub.s32 0, %v275
  %v277 = vrot.slane %v272, %v276
  %v278 = vlaneseq
  %v279 = vshrl.u32 %v278, 7
  %v280 = vsub.s32 1, %v279
  %v281 = vrot.slane %v272, %v280
  %v292 = vunpack.c.l.b16 %v264
  %v293 = vunpack.c.h.b16 %v264
  %v294 = vunpack.c.l.b16 %v265
  %v295 = vunpack.c.h.b16 %v265
  %v296 = vunpack.c.l.b16 %v266
  %v297 = vunpack.c.h.b16 %v266
  %v298 = vunpack.c.l.b16 %v267
  %v299 = vunpack.c.h.b16 %v267
  %v300 = vunpack.c.l.b16 %v268
  %v301 = vunpack.c.h.b16 %v268
  %v302 = vunpack.c.l.b16 %v269
  %v303 = vunpack.c.h.b16 %v269
  %v304 = vunpack.c.l.b16 %v270
  %v305 = vunpack.c.h.b16 %v270
  %v306 = vunpack.c.l.b16 %v271
  %v307 = vunpack.c.h.b16 %v271
  %v308 = vpack.c.b16 %v294, %v292
  %v309 = vpack.c.b16 %v295, %v293
  %v310 = vpack.c.b16 %v298, %v296
  %v311 = vpack.c.b16 %v299, %v297
  %v312 = vpack.c.b16 %v302, %v300
  %v313 = vpack.c.b16 %v303, %v301
  %v314 = vpack.c.b16 %v306, %v304
  %v315 = vpack.c.b16 %v307, %v305
  %v325 = vsel %vm137, %v263, 0
  %327 = vmatprep.subr.bf16.mxu0 0
  %328 = vmatpush1.bf16.msra.mxu0 0
  %329 = vmatprep.subr.bf16.mxu0 0
  %330 = vmatpush1.bf16.msra.mxu0 0
  %331 = vmatprep.subr.bf16.mxu0 0
  %332 = vmatpush1.bf16.msra.mxu0 0
  %333 = vmatprep.subr.bf16.mxu0 0
  %334 = vmatpush1.bf16.msra.mxu0 0
  %335 = vmatprep.subr.bf16.mxu0 %v315
  %336 = vmatpush1.bf16.msra.mxu0 %v314
  %337 = vmatprep.subr.bf16.mxu0 %v313
  %338 = vmatpush1.bf16.msra.mxu0 %v312
  %339 = vmatprep.subr.bf16.mxu0 %v311
  %340 = vmatpush1.bf16.msra.mxu0 %v310
  %341 = vmatprep.subr.bf16.mxu0 %v309
  %342 = vmatpush1.bf16.msra.mxu0 %v308
  %343 = vmatprep.subr.bf16.mxu0 0
  %344 = vmatpush2.bf16.msra.mxu0 0
  %345 = vmatprep.subr.bf16.mxu0 0
  %346 = vmatpush2.bf16.msra.mxu0 0
  %347 = vmatprep.subr.bf16.mxu0 0
  %348 = vmatpush2.bf16.msra.mxu0 0
  %349 = vmatprep.subr.bf16.mxu0 0
  %350 = vmatpush2.bf16.msra.mxu0 0
  %351 = vmatprep.subr.bf16.mxu0 0
  %352 = vmatpush2.bf16.msra.mxu0 0
  %353 = vmatprep.subr.bf16.mxu0 0
  %354 = vmatpush2.bf16.msra.mxu0 0
  %355 = vmatprep.subr.bf16.mxu0 0
  %356 = vmatpush2.bf16.msra.mxu0 0
  %357 = vmatprep.subr.bf16.mxu0 0
  %358 = vmatpush2.bf16.msra.mxu0 0
  %359 = vmatprep.mubr.bf16.mxu0 0
  %360 = vmatmul.mubr.bf16.gmra.mxu0 %v325
  %v361 = vpop.f32.mrf.mxu0
  %v362 = vadd.f32 %v277, %v361
  %v363 = vpop.f32.mrf.mxu0
  %v364 = vadd.f32 %v281, %v363
  %v365 = vpop.f32.mrf.mxu0
  %v366 = vadd.f32 %v277, %v365
  %v367 = vpop.f32.mrf.mxu0
  %v368 = vadd.f32 %v281, %v367
  %369 = vdwg.mxu0
  %v370 = vlaneseq
  %v371 = vand.u32 %v370, 127
  %v372 = vadd.s32 %v371, 128
  %vm373 = vcmp.lt.s32.totalorder %v371, 128
  %vm374 = vcmp.lt.s32.totalorder %v372, 128
  %v375 = vtanh.pop %v362
  %v376 = vtanh.pop %v364
  %v377 = vtanh.pop %v366
  %v378 = vtanh.pop %v368
  %v379 = vsel %vm373, %v375, %v362
  %v380 = vsel %vm374, %v376, %v364
  %v381 = vsel %vm373, %v377, %v366
  %v382 = vsel %vm374, %v378, %v368
  %383 = vst [vmem:[%s8] sm:$0xff] %v379
  %384 = vst [vmem:[%s8 + $0x8] sm:$0xff] %v380
  %385 = vst [vmem:[%s8 + $0x10] sm:$0xff] %v381
  %386 = vst [vmem:[%s8 + $0x18] sm:$0xff] %v382
  // Predicated region
  $region34: #{acos_forward.8} parent=0 // pred_check
    _
  $region35: #{acos_forward.8} parent=0 // pred_check_branch
    %388 = sbr.rel (0) target = $region37
  $region36: #{acos_forward.8} parent=0 // pred_region
    _
  $region37: #{acos_forward.8} parent=0 // pred_fallthru
    _
  // Predicated region
  $region38: #{acos_forward.8} parent=0 // pred_check
    _
  $region39: #{acos_forward.8} parent=0 // pred_check_branch
    %390 = sbr.rel (0) target = $region41
  $region40: #{acos_forward.8} parent=0 // pred_region
    _
  $region41: #{acos_forward.8} parent=0 // pred_fallthru
    _

// kernel: acos_forward.6
$region0: #{acos_forward.6}
  #allocation0 [shape = 'u32[]', space=smem, size = 0x4, offset = 0x4, fixed_abs, tag = 'smem constant byte address 0x4 - core index']
  #allocation1 [shape = 'u32[144,128]{1,0:T(1,128)}', space=vmem, size = 0x12000, scoped, tag = 'internal scratch']
  %s0 = inlined_call_operand.vmem [shape: bf16[16,192], index: 0, kind: input, shape index: {}]
  %s1 = inlined_call_operand.vmem [shape: bf16[16,64], index: 1, kind: input, shape index: {}]
  %s2 = inlined_call_operand.vmem [shape: f32[2,1,8], index: 2, kind: input, shape index: {}]
  %s3 = inlined_call_operand.vmem [shape: bf16[64,64], index: 3, kind: input, shape index: {}]
  %s4 = inlined_call_operand.vmem [shape: f32[1,64], index: 4, kind: input, shape index: {}]
  %s5 = inlined_call_operand.vmem [shape: f32[1,64], index: 5, kind: input, shape index: {}]
  %s6 = inlined_call_operand.vmem [shape: f32[1,64], index: 6, kind: input, shape index: {}]
  %s7 = inlined_call_operand.vmem [shape: bf16[16,64], index: 7, kind: output, shape index: {}]
  %s8 = sld [smem:[#allocation0]]
  $region61: #{acos_forward.6} parent=0
    _
  %s10 = ssub.s32 1, %s8
  %s11 = scalar_select 0, %s10, %s8
  loop: start=0, step=1, limit=4
  $region2: #{acos_forward.6} parent=0 // loop_pre_header
    _
  $region3: #{acos_forward.6} parent=0 // loop_header
    %s13 = sphi 0, %s17
    %p14 = scmp.ge.s32.totalorder %s13, 4
    %s23 = sphi 0, %s25
    %s26 = sphi 0, %s23
    %s27 = sphi 0, %s26
    %s43 = sphi 0, %s27
    %s49 = sphi 0, %s51
    %s52 = sphi 0, %s49
    %s53 = sphi 0, %s52
    %s69 = sphi 0, %s53
    %s75 = sphi 0, %s77
    %s78 = sphi 0, %s75
    %s79 = sphi 0, %s78
    %s95 = sphi 0, %s79
    %s99 = sphi 0, %s99
    %s101 = sphi 0, %s99
    %s102 = sphi 0, %s101
    %s116 = sphi 0, %s102
    %s120 = sphi 0, %s120
    %s122 = sphi 0, %s120
    %s123 = sphi 0, %s122
    %s137 = sphi 0, %s123
    %s141 = sphi 0, %s141
    %s143 = sphi 0, %s141
    %s144 = sphi 0, %s143
    %s158 = sphi 0, %s144
    %s162 = sphi 0, %s162
    %s164 = sphi 0, %s162
    %s165 = sphi 0, %s164
    %s179 = sphi 0, %s165
    %s185 = sphi 0, %s187
    %s188 = sphi 0, %s185
    %s189 = sphi 0, %s188
    %s205 = sphi 0, %s189
  $region4: #{acos_forward.6} parent=0 // loop_header_branch
    %16 = sbr.rel (%p14) target = $region8
  $region5: #{acos_forward.6} parent=0 // loop_body
    %s18 = ssub.s32 %s13, 1
    %s19 = ssub.s32 %s13, 2
    %s20 = sadd.s32 %s13, 1
    %s21 = ssub.s32 %s13, %s20
    %p22 = scmp.eq.s32.totalorder %s21, 0
    %s24 = sadd.s32 %s23, 1
    %s25 = scalar_select %p22, %s23, %s24
    %p28 = pneg %p22
    %p29 = scmp.eq.s32.totalorder %s13, 1
    %p30 = por %p28, %p29
    %p31 = scmp.ne.s32.totalorder %s23, %s26
    %p32 = scmp.eq.s32.totalorder %s13, 0
    %p33 = por %p31, %p32
    %p34 = scmp.ne.s32.totalorder %s23, %s26
    %p35 = scmp.eq.s32.totalorder %s18, 1
    %p36 = por %p34, %p35
    %p37 = scmp.ne.s32.totalorder %s26, %s27
    %p38 = scmp.eq.s32.totalorder %s18, 0
    %p39 = por %p37, %p38
    %p40 = scmp.ne.s32.totalorder %s26, %s27
    %p41 = scmp.eq.s32.totalorder %s19, 1
    %p42 = por %p40, %p41
    %p44 = scmp.ne.s32.totalorder %s27, %s43
    %p45 = scmp.eq.s32.totalorder %s19, 0
    %p46 = por %p44, %p45
    %s47 = ssub.s32 %s13, %s20
    %p48 = scmp.eq.s32.totalorder %s47, 0
    %s50 = sadd.s32 %s49, 1
    %s51 = scalar_select %p48, %s49, %s50
    %p54 = pneg %p48
    %p55 = scmp.eq.s32.totalorder %s13, 1
    %p56 = por %p54, %p55
    %p57 = scmp.ne.s32.totalorder %s49, %s52
    %p58 = scmp.eq.s32.totalorder %s13, 0
    %p59 = por %p57, %p58
    %p60 = scmp.ne.s32.totalorder %s49, %s52
    %p61 = scmp.eq.s32.totalorder %s18, 1
    %p62 = por %p60, %p61
    %p63 = scmp.ne.s32.totalorder %s52, %s53
    %p64 = scmp.eq.s32.totalorder %s18, 0
    %p65 = por %p63, %p64
    %p66 = scmp.ne.s32.totalorder %s52, %s53
    %p67 = scmp.eq.s32.totalorder %s19, 1
    %p68 = por %p66, %p67
    %p70 = scmp.ne.s32.totalorder %s53, %s69
    %p71 = scmp.eq.s32.totalorder %s19, 0
    %p72 = por %p70, %p71
    %s73 = ssub.s32 %s13, %s20
    %p74 = scmp.eq.s32.totalorder %s73, 0
    %s76 = sadd.s32 %s75, 1
    %s77 = scalar_select %p74, %s75, %s76
    %p80 = pneg %p74
    %p81 = scmp.eq.s32.totalorder %s13, 1
    %p82 = por %p80, %p81
    %p83 = scmp.ne.s32.totalorder %s75, %s78
    %p84 = scmp.eq.s32.totalorder %s13, 0
    %p85 = por %p83, %p84
    %p86 = scmp.ne.s32.totalorder %s75, %s78
    %p87 = scmp.eq.s32.totalorder %s18, 1
    %p88 = por %p86, %p87
    %p89 = scmp.ne.s32.totalorder %s78, %s79
    %p90 = scmp.eq.s32.totalorder %s18, 0
    %p91 = por %p89, %p90
    %p92 = scmp.ne.s32.totalorder %s78, %s79
    %p93 = scmp.eq.s32.totalorder %s19, 1
    %p94 = por %p92, %p93
    %p96 = scmp.ne.s32.totalorder %s79, %s95
    %p97 = scmp.eq.s32.totalorder %s19, 0
    %p98 = por %p96, %p97
    %s100 = sadd.s32 %s99, 1
    %p103 = scmp.eq.s32.totalorder %s13, 1
    %p104 = scmp.ne.s32.totalorder %s99, %s101
    %p105 = scmp.eq.s32.totalorder %s13, 0
    %p106 = por %p104, %p105
    %p107 = scmp.ne.s32.totalorder %s99, %s101
    %p108 = scmp.eq.s32.totalorder %s18, 1
    %p109 = por %p107, %p108
    %p110 = scmp.ne.s32.totalorder %s101, %s102
    %p111 = scmp.eq.s32.totalorder %s18, 0
    %p112 = por %p110, %p111
    %p113 = scmp.ne.s32.totalorder %s101, %s102
    %p114 = scmp.eq.s32.totalorder %s19, 1
    %p115 = por %p113, %p114
    %p117 = scmp.ne.s32.totalorder %s102, %s116
    %p118 = scmp.eq.s32.totalorder %s19, 0
    %p119 = por %p117, %p118
    %s121 = sadd.s32 %s120, 1
    %p124 = scmp.eq.s32.totalorder %s13, 1
    %p125 = scmp.ne.s32.totalorder %s120, %s122
    %p126 = scmp.eq.s32.totalorder %s13, 0
    %p127 = por %p125, %p126
    %p128 = scmp.ne.s32.totalorder %s120, %s122
    %p129 = scmp.eq.s32.totalorder %s18, 1
    %p130 = por %p128, %p129
    %p131 = scmp.ne.s32.totalorder %s122, %s123
    %p132 = scmp.eq.s32.totalorder %s18, 0
    %p133 = por %p131, %p132
    %p134 = scmp.ne.s32.totalorder %s122, %s123
    %p135 = scmp.eq.s32.totalorder %s19, 1
    %p136 = por %p134, %p135
    %p138 = scmp.ne.s32.totalorder %s123, %s137
    %p139 = scmp.eq.s32.totalorder %s19, 0
    %p140 = por %p138, %p139
    %s142 = sadd.s32 %s141, 1
    %p145 = scmp.eq.s32.totalorder %s13, 1
    %p146 = scmp.ne.s32.totalorder %s141, %s143
    %p147 = scmp.eq.s32.totalorder %s13, 0
    %p148 = por %p146, %p147
    %p149 = scmp.ne.s32.totalorder %s141, %s143
    %p150 = scmp.eq.s32.totalorder %s18, 1
    %p151 = por %p149, %p150
    %p152 = scmp.ne.s32.totalorder %s143, %s144
    %p153 = scmp.eq.s32.totalorder %s18, 0
    %p154 = por %p152, %p153
    %p155 = scmp.ne.s32.totalorder %s143, %s144
    %p156 = scmp.eq.s32.totalorder %s19, 1
    %p157 = por %p155, %p156
    %p159 = scmp.ne.s32.totalorder %s144, %s158
    %p160 = scmp.eq.s32.totalorder %s19, 0
    %p161 = por %p159, %p160
    %s163 = sadd.s32 %s162, 1
    %p166 = scmp.eq.s32.totalorder %s13, 1
    %p167 = scmp.ne.s32.totalorder %s162, %s164
    %p168 = scmp.eq.s32.totalorder %s13, 0
    %p169 = por %p167, %p168
    %p170 = scmp.ne.s32.totalorder %s162, %s164
    %p171 = scmp.eq.s32.totalorder %s18, 1
    %p172 = por %p170, %p171
    %p173 = scmp.ne.s32.totalorder %s164, %s165
    %p174 = scmp.eq.s32.totalorder %s18, 0
    %p175 = por %p173, %p174
    %p176 = scmp.ne.s32.totalorder %s164, %s165
    %p177 = scmp.eq.s32.totalorder %s19, 1
    %p178 = por %p176, %p177
    %p180 = scmp.ne.s32.totalorder %s165, %s179
    %p181 = scmp.eq.s32.totalorder %s19, 0
    %p182 = por %p180, %p181
    %s183 = ssub.s32 %s13, %s20
    %p184 = scmp.eq.s32.totalorder %s183, 0
    %s186 = sadd.s32 %s185, 1
    %s187 = scalar_select %p184, %s185, %s186
    %p190 = pneg %p184
    %p191 = scmp.eq.s32.totalorder %s13, 1
    %p192 = por %p190, %p191
    %p193 = scmp.ne.s32.totalorder %s185, %s188
    %p194 = scmp.eq.s32.totalorder %s13, 0
    %p195 = por %p193, %p194
    %p196 = scmp.ne.s32.totalorder %s185, %s188
    %p197 = scmp.eq.s32.totalorder %s18, 1
    %p198 = por %p196, %p197
    %p199 = scmp.ne.s32.totalorder %s188, %s189
    %p200 = scmp.eq.s32.totalorder %s18, 0
    %p201 = por %p199, %p200
    %p202 = scmp.ne.s32.totalorder %s188, %s189
    %p203 = scmp.eq.s32.totalorder %s19, 1
    %p204 = por %p202, %p203
    %p206 = scmp.ne.s32.totalorder %s189, %s205
    %p207 = scmp.eq.s32.totalorder %s19, 0
    %p208 = por %p206, %p207
    %p209 = scmp.le.s32.totalorder 1, %s13
    %p210 = scmp.lt.s32.totalorder %s13, 3
    %p211 = pnand %p209, %p210
    %p212 = pneg %p211
    // Predicated region
    $region9: #{acos_forward.6} parent=5 // pred_check
      _
    $region10: #{acos_forward.6} parent=5 // pred_check_branch
      %214 = sbr.rel (%p211) target = $region12
    $region11: #{acos_forward.6} parent=5 // pred_region
      %s215 = ssub.s32 %s13, 1
      // Predicated region
      $region13: #{acos_forward.6} parent=11 // pred_check
        %p216 = pneg %p112
      $region14: #{acos_forward.6} parent=11 // pred_check_branch
        %218 = sbr.rel (%p216) target = $region16
      $region15: #{acos_forward.6} parent=11 // pred_region
        _
      $region16: #{acos_forward.6} parent=11 // pred_fallthru
        _
      // Predicated region
      $region17: #{acos_forward.6} parent=11 // pred_check
        %p219 = pneg %p133
      $region18: #{acos_forward.6} parent=11 // pred_check_branch
        %221 = sbr.rel (%p219) target = $region20
      $region19: #{acos_forward.6} parent=11 // pred_region
        _
      $region20: #{acos_forward.6} parent=11 // pred_fallthru
        _
      // Predicated region
      $region21: #{acos_forward.6} parent=11 // pred_check
        %p222 = pneg %p154
      $region22: #{acos_forward.6} parent=11 // pred_check_branch
        %224 = sbr.rel (%p222) target = $region24
      $region23: #{acos_forward.6} parent=11 // pred_region
        _
      $region24: #{acos_forward.6} parent=11 // pred_fallthru
        _
      // Predicated region
      $region25: #{acos_forward.6} parent=11 // pred_check
        %p225 = pneg %p175
      $region26: #{acos_forward.6} parent=11 // pred_check_branch
        %227 = sbr.rel (%p225) target = $region28
      $region27: #{acos_forward.6} parent=11 // pred_region
        _
      $region28: #{acos_forward.6} parent=11 // pred_fallthru
        _
    $region12: #{acos_forward.6} parent=5 // pred_fallthru
      _
    %p228 = scmp.lt.s32.totalorder %s13, 2
    // Predicated region
    $region29: #{acos_forward.6} parent=5 // pred_check
      %p229 = pneg %p228
    $region30: #{acos_forward.6} parent=5 // pred_check_branch
      %231 = sbr.rel (%p229) target = $region32
    $region31: #{acos_forward.6} parent=5 // pred_region
      // Predicated region
      $region33: #{acos_forward.6} parent=31 // pred_check
        %p232 = pneg %p33
      $region34: #{acos_forward.6} parent=31 // pred_check_branch
        %234 = sbr.rel (%p232) target = $region36
      $region35: #{acos_forward.6} parent=31 // pred_region
        %p235 = scmp.lt.s32.totalorder %s13, 1
        %s236 = scalar_select %p235, %s13, 1
        %s237 = smul.addr %s236, 2
        %s238 = smul.addr %s237, 4
        %s239 = scalar_lea.vmem %s0, %s238
      $region36: #{acos_forward.6} parent=31 // pred_fallthru
        _
      // Predicated region
      $region37: #{acos_forward.6} parent=31 // pred_check
        %p240 = pneg %p59
      $region38: #{acos_forward.6} parent=31 // pred_check_branch
        %242 = sbr.rel (%p240) target = $region40
      $region39: #{acos_forward.6} parent=31 // pred_region
        %p243 = scmp.lt.s32.totalorder %s13, 1
        %s244 = scalar_select %p243, %s13, 1
        %s245 = smul.addr %s244, 4
        %s246 = scalar_lea.vmem %s1, %s245
      $region40: #{acos_forward.6} parent=31 // pred_fallthru
        _
      // Predicated region
      $region41: #{acos_forward.6} parent=31 // pred_check
        %p247 = pneg %p85
      $region42: #{acos_forward.6} parent=31 // pred_check_branch
        %249 = sbr.rel (%p247) target = $region44
      $region43: #{acos_forward.6} parent=31 // pred_region
        %p250 = scmp.lt.s32.totalorder %s13, 1
        %s251 = scalar_select %p250, %s13, 1
        %s252 = scalar_lea.vmem %s2, %s251
      $region44: #{acos_forward.6} parent=31 // pred_fallthru
        _
    $region32: #{acos_forward.6} parent=5 // pred_fallthru
      _
    %p253 = scmp.le.s32.totalorder 1, %s13
    %p254 = scmp.lt.s32.totalorder %s13, 3
    %p255 = pnand %p253, %p254
    %p256 = pneg %p255
    // Predicated region
    $region45: #{acos_forward.6} parent=5 // pred_check
      _
    $region46: #{acos_forward.6} parent=5 // pred_check_branch
      %258 = sbr.rel (%p255) target = $region48
    $region47: #{acos_forward.6} parent=5 // pred_region
      %s259 = ssub.s32 %s13, 1
      %p260 = scmp.lt.s32.totalorder %s18, 1
      %s261 = scalar_select %p260, %s18, 1
      %s262 = smul.addr %s261, 2
      %s263 = smul.addr %s262, 4
      %s264 = scalar_lea.vmem %s0, %s263
      %p265 = pneg %p39
      %p266 = pneg %p36
      %p267 = scmp.lt.s32.totalorder %s18, 1
      %s268 = scalar_select %p267, %s18, 1
      %s269 = smul.addr %s268, 4
      %s270 = scalar_lea.vmem %s1, %s269
      %p271 = pneg %p65
      %p272 = pneg %p62
      %p273 = scmp.lt.s32.totalorder %s18, 1
      %s274 = scalar_select %p273, %s18, 1
      %s275 = scalar_lea.vmem %s2, %s274
      %p276 = pneg %p91
      %p277 = pneg %p88
      %p278 = pneg %p112
      %p279 = pneg %p109
      %p280 = pneg %p133
      %p281 = pneg %p130
      %p282 = pneg %p154
      %p283 = pneg %p151
      %p284 = pneg %p175
      %p285 = pneg %p172
      %p286 = pneg %p201
      %p287 = pneg %p198
      %p288 = scmp.lt.s32.totalorder %s18, 1
      %s289 = scalar_select %p288, %s18, 1
      %s290 = smul.addr %s289, 4
      %s291 = scalar_lea.vmem %s7, %s290
      %p292 = scmp.lt.s32.totalorder %s18, 1
      %s293 = scalar_select %p292, %s18, 1
      %s294 = smul.addr %s293, 2
      %s295 = smul.addr %s294, 4
      %s296 = scalar_lea.vmem %s0, %s295
      %p297 = scmp.lt.s32.totalorder %s18, 1
      %s298 = scalar_select %p297, %s18, 1
      %s299 = smul.addr %s298, 4
      %s300 = scalar_lea.vmem %s1, %s299
      %p301 = scmp.lt.s32.totalorder %s18, 1
      %s302 = scalar_select %p301, %s18, 1
      %s303 = scalar_lea.vmem %s2, %s302
      %p304 = scmp.lt.s32.totalorder %s18, 1
      %s305 = scalar_select %p304, %s18, 1
      %s306 = smul.addr %s305, 4
      %s307 = scalar_lea.vmem %s7, %s306
      %v309 = vld [vmem:[%s296] sm:$0xff]
      %311 = vrot.lane.b32.xlu0 %v309, 112
      %v312 = vpop.permute.xlu0 %311
      %313 = vrot.lane.b32.xlu0 %v309, 96
      %v314 = vpop.permute.xlu0 %313
      %315 = vrot.lane.b32.xlu0 %v309, 80
      %v316 = vpop.permute.xlu0 %315
      %v319 = vpack.i.b16 %v312, %v309
      %v320 = vshrl.u32 %v309, 16
      %v321 = vshrl.u32 %v312, 16
      %v322 = vpack.i.b16 %v321, %v320
      %v325 = vpack.i.b16 %v316, %v314
      %v326 = vshrl.u32 %v314, 16
      %v327 = vshrl.u32 %v316, 16
      %v328 = vpack.i.b16 %v327, %v326
      %v331 = vunpack.c.l.s4 1983009808
      %v332 = vunpack.c.0.s8 %v331
      %v333 = vlaneseq
      %v334 = vshrl.u32 %v333, 7
      %v335 = vsub.s32 %v332, %v334
      %v336 = vrot.slane %v319, %v335
      %v339 = vunpack.c.l.s4 1983009808
      %v340 = vunpack.c.0.s8 %v339
      %v341 = vlaneseq
      %v342 = vshrl.u32 %v341, 7
      %v343 = vsub.s32 %v340, %v342
      %v344 = vrot.slane %v325, %v343
      %v345 = vcombine.low %v336, %v344
      %v346 = vcombine.high %v336, %v344
      %v348 = vunpack.c.l.s4 1934713408
      %v349 = vunpack.c.0.s8 %v348
      %v350 = vlaneseq
      %v351 = vshrl.u32 %v350, 7
      %v352 = vsub.s32 %v349, %v351
      %v353 = vrot.slane %v345, %v352
      %v355 = vunpack.c.l.s4 1934713408
      %v356 = vunpack.c.0.s8 %v355
      %v357 = vlaneseq
      %v358 = vshrl.u32 %v357, 7
      %v359 = vsub.s32 %v356, %v358
      %v360 = vrot.slane %v346, %v359
      %v361 = vcombine.high %v353, 0
      %v362 = vcombine.high %v360, 0
      %v365 = vunpack.c.l.s4 1983009808
      %v366 = vunpack.c.0.s8 %v365
      %v367 = vlaneseq
      %v368 = vshrl.u32 %v367, 7
      %v369 = vsub.s32 %v366, %v368
      %v370 = vrot.slane %v322, %v369
      %v373 = vunpack.c.l.s4 1983009808
      %v374 = vunpack.c.0.s8 %v373
      %v375 = vlaneseq
      %v376 = vshrl.u32 %v375, 7
      %v377 = vsub.s32 %v374, %v376
      %v378 = vrot.slane %v328, %v377
      %v379 = vcombine.low %v370, %v378
      %v380 = vcombine.high %v370, %v378
      %v382 = vunpack.c.l.s4 1934713408
      %v383 = vunpack.c.0.s8 %v382
      %v384 = vlaneseq
      %v385 = vshrl.u32 %v384, 7
      %v386 = vsub.s32 %v383, %v385
      %v387 = vrot.slane %v379, %v386
      %v389 = vunpack.c.l.s4 1934713408
      %v390 = vunpack.c.0.s8 %v389
      %v391 = vlaneseq
      %v392 = vshrl.u32 %v391, 7
      %v393 = vsub.s32 %v390, %v392
      %v394 = vrot.slane %v380, %v393
      %v395 = vcombine.high %v387, 0
      %v396 = vcombine.high %v394, 0
      %v397 = vcombine.low %v353, %v360
      %v399 = vunpack.c.l.s4 1983009808
      %v400 = vunpack.c.0.s8 %v399
      %v401 = vlaneseq
      %v402 = vshrl.u32 %v401, 7
      %v403 = vsub.s32 %v400, %v402
      %v404 = vrot.slane %v397, %v403
      %v405 = vcombine.low %v361, %v362
      %v407 = vunpack.c.l.s4 1983009808
      %v408 = vunpack.c.0.s8 %v407
      %v409 = vlaneseq
      %v410 = vshrl.u32 %v409, 7
      %v411 = vsub.s32 %v408, %v410
      %v412 = vrot.slane %v405, %v411
      %v413 = vcombine.low %v404, %v412
      %v415 = vunpack.c.l.s4 1934713408
      %v416 = vunpack.c.0.s8 %v415
      %v417 = vlaneseq
      %v418 = vshrl.u32 %v417, 7
      %v419 = vsub.s32 %v416, %v418
      %v420 = vrot.slane %v413, %v419
      %v421 = vcombine.high %v420, 0
      %v422 = vcombine.low %v387, %v394
      %v424 = vunpack.c.l.s4 1983009808
      %v425 = vunpack.c.0.s8 %v424
      %v426 = vlaneseq
      %v427 = vshrl.u32 %v426, 7
      %v428 = vsub.s32 %v425, %v427
      %v429 = vrot.slane %v422, %v428
      %v430 = vcombine.low %v395, %v396
      %v432 = vunpack.c.l.s4 1983009808
      %v433 = vunpack.c.0.s8 %v432
      %v434 = vlaneseq
      %v435 = vshrl.u32 %v434, 7
      %v436 = vsub.s32 %v433, %v435
      %v437 = vrot.slane %v430, %v436
      %v438 = vcombine.low %v429, %v437
      %v440 = vunpack.c.l.s4 1934713408
      %v441 = vunpack.c.0.s8 %v440
      %v442 = vlaneseq
      %v443 = vshrl.u32 %v442, 7
      %v444 = vsub.s32 %v441, %v443
      %v445 = vrot.slane %v438, %v444
      %v446 = vcombine.high %v445, 0
      %v449 = vpack.i.b16 %v445, %v420
      %v450 = vshrl.u32 %v420, 16
      %v451 = vshrl.u32 %v445, 16
      %v452 = vpack.i.b16 %v451, %v450
      %v455 = vpack.i.b16 %v446, %v421
      %v456 = vshrl.u32 %v421, 16
      %v457 = vshrl.u32 %v446, 16
      %v458 = vpack.i.b16 %v457, %v456
      %459 = vrot.lane.b32.xlu0 %v309, 64
      %v460 = vpop.permute.xlu0 %459
      %461 = vrot.lane.b32.xlu0 %v312, 64
      %v462 = vpop.permute.xlu0 %461
      %463 = vrot.lane.b32.xlu0 %v314, 64
      %v464 = vpop.permute.xlu0 %463
      %465 = vrot.lane.b32.xlu0 %v316, 64
      %v466 = vpop.permute.xlu0 %465
      %v469 = vpack.i.b16 %v462, %v460
      %v470 = vshrl.u32 %v460, 16
      %v471 = vshrl.u32 %v462, 16
      %v472 = vpack.i.b16 %v471, %v470
      %v475 = vpack.i.b16 %v466, %v464
      %v476 = vshrl.u32 %v464, 16
      %v477 = vshrl.u32 %v466, 16
      %v478 = vpack.i.b16 %v477, %v476
      %v481 = vunpack.c.l.s4 1983009808
      %v482 = vunpack.c.0.s8 %v481
      %v483 = vlaneseq
      %v484 = vshrl.u32 %v483, 7
      %v485 = vsub.s32 %v482, %v484
      %v486 = vrot.slane %v469, %v485
      %v489 = vunpack.c.l.s4 1983009808
      %v490 = vunpack.c.0.s8 %v489
      %v491 = vlaneseq
      %v492 = vshrl.u32 %v491, 7
      %v493 = vsub.s32 %v490, %v492
      %v494 = vrot.slane %v475, %v493
      %v495 = vcombine.low %v486, %v494
      %v496 = vcombine.high %v486, %v494
      %v498 = vunpack.c.l.s4 1934713408
      %v499 = vunpack.c.0.s8 %v498
      %v500 = vlaneseq
      %v501 = vshrl.u32 %v500, 7
      %v502 = vsub.s32 %v499, %v501
      %v503 = vrot.slane %v495, %v502
      %v505 = vunpack.c.l.s4 1934713408
      %v506 = vunpack.c.0.s8 %v505
      %v507 = vlaneseq
      %v508 = vshrl.u32 %v507, 7
      %v509 = vsub.s32 %v506, %v508
      %v510 = vrot.slane %v496, %v509
      %v511 = vcombine.high %v503, 0
      %v512 = vcombine.high %v510, 0
      %v515 = vunpack.c.l.s4 1983009808
      %v516 = vunpack.c.0.s8 %v515
      %v517 = vlaneseq
      %v518 = vshrl.u32 %v517, 7
      %v519 = vsub.s32 %v516, %v518
      %v520 = vrot.slane %v472, %v519
      %v523 = vunpack.c.l.s4 1983009808
      %v524 = vunpack.c.0.s8 %v523
      %v525 = vlaneseq
      %v526 = vshrl.u32 %v525, 7
      %v527 = vsub.s32 %v524, %v526
      %v528 = vrot.slane %v478, %v527
      %v529 = vcombine.low %v520, %v528
      %v530 = vcombine.high %v520, %v528
      %v532 = vunpack.c.l.s4 1934713408
      %v533 = vunpack.c.0.s8 %v532
      %v534 = vlaneseq
      %v535 = vshrl.u32 %v534, 7
      %v536 = vsub.s32 %v533, %v535
      %v537 = vrot.slane %v529, %v536
      %v539 = vunpack.c.l.s4 1934713408
      %v540 = vunpack.c.0.s8 %v539
      %v541 = vlaneseq
      %v542 = vshrl.u32 %v541, 7
      %v543 = vsub.s32 %v540, %v542
      %v544 = vrot.slane %v530, %v543
      %v545 = vcombine.high %v537, 0
      %v546 = vcombine.high %v544, 0
      %v547 = vcombine.low %v503, %v510
      %v549 = vunpack.c.l.s4 1983009808
      %v550 = vunpack.c.0.s8 %v549
      %v551 = vlaneseq
      %v552 = vshrl.u32 %v551, 7
      %v553 = vsub.s32 %v550, %v552
      %v554 = vrot.slane %v547, %v553
      %v555 = vcombine.low %v511, %v512
      %v557 = vunpack.c.l.s4 1983009808
      %v558 = vunpack.c.0.s8 %v557
      %v559 = vlaneseq
      %v560 = vshrl.u32 %v559, 7
      %v561 = vsub.s32 %v558, %v560
      %v562 = vrot.slane %v555, %v561
      %v563 = vcombine.low %v554, %v562
      %v565 = vunpack.c.l.s4 1934713408
      %v566 = vunpack.c.0.s8 %v565
      %v567 = vlaneseq
      %v568 = vshrl.u32 %v567, 7
      %v569 = vsub.s32 %v566, %v568
      %v570 = vrot.slane %v563, %v569
      %v571 = vcombine.high %v570, 0
      %v572 = vcombine.low %v537, %v544
      %v574 = vunpack.c.l.s4 1983009808
      %v575 = vunpack.c.0.s8 %v574
      %v576 = vlaneseq
      %v577 = vshrl.u32 %v576, 7
      %v578 = vsub.s32 %v575, %v577
      %v579 = vrot.slane %v572, %v578
      %v580 = vcombine.low %v545, %v546
      %v582 = vunpack.c.l.s4 1983009808
      %v583 = vunpack.c.0.s8 %v582
      %v584 = vlaneseq
      %v585 = vshrl.u32 %v584, 7
      %v586 = vsub.s32 %v583, %v585
      %v587 = vrot.slane %v580, %v586
      %v588 = vcombine.low %v579, %v587
      %v590 = vunpack.c.l.s4 1934713408
      %v591 = vunpack.c.0.s8 %v590
      %v592 = vlaneseq
      %v593 = vshrl.u32 %v592, 7
      %v594 = vsub.s32 %v591, %v593
      %v595 = vrot.slane %v588, %v594
      %v596 = vcombine.high %v595, 0
      %v599 = vpack.i.b16 %v595, %v570
      %v600 = vshrl.u32 %v570, 16
      %v601 = vshrl.u32 %v595, 16
      %v602 = vpack.i.b16 %v601, %v600
      %v605 = vpack.i.b16 %v596, %v571
      %v606 = vshrl.u32 %v571, 16
      %v607 = vshrl.u32 %v596, 16
      %v608 = vpack.i.b16 %v607, %v606
      %v609 = vrot.slane %v309, 4
      %v610 = vrot.slane %v312, 4
      %v611 = vrot.slane %v314, 4
      %v612 = vrot.slane %v316, 4
      %v615 = vpack.i.b16 %v610, %v609
      %v616 = vshrl.u32 %v609, 16
      %v617 = vshrl.u32 %v610, 16
      %v618 = vpack.i.b16 %v617, %v616
      %v621 = vpack.i.b16 %v612, %v611
      %v622 = vshrl.u32 %v611, 16
      %v623 = vshrl.u32 %v612, 16
      %v624 = vpack.i.b16 %v623, %v622
      %v627 = vunpack.c.l.s4 1983009808
      %v628 = vunpack.c.0.s8 %v627
      %v629 = vlaneseq
      %v630 = vshrl.u32 %v629, 7
      %v631 = vsub.s32 %v628, %v630
      %v632 = vrot.slane %v615, %v631
      %v635 = vunpack.c.l.s4 1983009808
      %v636 = vunpack.c.0.s8 %v635
      %v637 = vlaneseq
      %v638 = vshrl.u32 %v637, 7
      %v639 = vsub.s32 %v636, %v638
      %v640 = vrot.slane %v621, %v639
      %v641 = vcombine.low %v632, %v640
      %v642 = vcombine.high %v632, %v640
      %v644 = vunpack.c.l.s4 1934713408
      %v645 = vunpack.c.0.s8 %v644
      %v646 = vlaneseq
      %v647 = vshrl.u32 %v646, 7
      %v648 = vsub.s32 %v645, %v647
      %v649 = vrot.slane %v641, %v648
      %v651 = vunpack.c.l.s4 1934713408
      %v652 = vunpack.c.0.s8 %v651
      %v653 = vlaneseq
      %v654 = vshrl.u32 %v653, 7
      %v655 = vsub.s32 %v652, %v654
      %v656 = vrot.slane %v642, %v655
      %v657 = vcombine.high %v649, 0
      %v658 = vcombine.high %v656, 0
      %v661 = vunpack.c.l.s4 1983009808
      %v662 = vunpack.c.0.s8 %v661
      %v663 = vlaneseq
      %v664 = vshrl.u32 %v663, 7
      %v665 = vsub.s32 %v662, %v664
      %v666 = vrot.slane %v618, %v665
      %v669 = vunpack.c.l.s4 1983009808
      %v670 = vunpack.c.0.s8 %v669
      %v671 = vlaneseq
      %v672 = vshrl.u32 %v671, 7
      %v673 = vsub.s32 %v670, %v672
      %v674 = vrot.slane %v624, %v673
      %v675 = vcombine.low %v666, %v674
      %v676 = vcombine.high %v666, %v674
      %v678 = vunpack.c.l.s4 1934713408
      %v679 = vunpack.c.0.s8 %v678
      %v680 = vlaneseq
      %v681 = vshrl.u32 %v680, 7
      %v682 = vsub.s32 %v679, %v681
      %v683 = vrot.slane %v675, %v682
      %v685 = vunpack.c.l.s4 1934713408
      %v686 = vunpack.c.0.s8 %v685
      %v687 = vlaneseq
      %v688 = vshrl.u32 %v687, 7
      %v689 = vsub.s32 %v686, %v688
      %v690 = vrot.slane %v676, %v689
      %v691 = vcombine.high %v683, 0
      %v692 = vcombine.high %v690, 0
      %v693 = vcombine.low %v649, %v656
      %v695 = vunpack.c.l.s4 1983009808
      %v696 = vunpack.c.0.s8 %v695
      %v697 = vlaneseq
      %v698 = vshrl.u32 %v697, 7
      %v699 = vsub.s32 %v696, %v698
      %v700 = vrot.slane %v693, %v699
      %v701 = vcombine.low %v657, %v658
      %v703 = vunpack.c.l.s4 1983009808
      %v704 = vunpack.c.0.s8 %v703
      %v705 = vlaneseq
      %v706 = vshrl.u32 %v705, 7
      %v707 = vsub.s32 %v704, %v706
      %v708 = vrot.slane %v701, %v707
      %v709 = vcombine.low %v700, %v708
      %v711 = vunpack.c.l.s4 1934713408
      %v712 = vunpack.c.0.s8 %v711
      %v713 = vlaneseq
      %v714 = vshrl.u32 %v713, 7
      %v715 = vsub.s32 %v712, %v714
      %v716 = vrot.slane %v709, %v715
      %v717 = vcombine.high %v716, 0
      %v718 = vcombine.low %v683, %v690
      %v720 = vunpack.c.l.s4 1983009808
      %v721 = vunpack.c.0.s8 %v720
      %v722 = vlaneseq
      %v723 = vshrl.u32 %v722, 7
      %v724 = vsub.s32 %v721, %v723
      %v725 = vrot.slane %v718, %v724
      %v726 = vcombine.low %v691, %v692
      %v728 = vunpack.c.l.s4 1983009808
      %v729 = vunpack.c.0.s8 %v728
      %v730 = vlaneseq
      %v731 = vshrl.u32 %v730, 7
      %v732 = vsub.s32 %v729, %v731
      %v733 = vrot.slane %v726, %v732
      %v734 = vcombine.low %v725, %v733
      %v736 = vunpack.c.l.s4 1934713408
      %v737 = vunpack.c.0.s8 %v736
      %v738 = vlaneseq
      %v739 = vshrl.u32 %v738, 7
      %v740 = vsub.s32 %v737, %v739
      %v741 = vrot.slane %v734, %v740
      %v742 = vcombine.high %v741, 0
      %v745 = vpack.i.b16 %v741, %v716
      %v746 = vshrl.u32 %v716, 16
      %v747 = vshrl.u32 %v741, 16
      %v748 = vpack.i.b16 %v747, %v746
      %v751 = vpack.i.b16 %v742, %v717
      %v752 = vshrl.u32 %v717, 16
      %v753 = vshrl.u32 %v742, 16
      %v754 = vpack.i.b16 %v753, %v752
      %vm755 = vcmask 130048
      %v757 = vsel %vm755, %v449, 0
      %v760 = vsel %vm755, %v599, 0
      %762 = vmatprep.subr.bf16.mxu0 0
      %763 = vmatpush1.bf16.xpose.msra.mxu0 0
      %764 = vmatprep.subr.bf16.mxu0 0
      %765 = vmatpush1.bf16.xpose.msra.mxu0 0
      %766 = vmatprep.subr.bf16.mxu0 0
      %767 = vmatpush1.bf16.xpose.msra.mxu0 0
      %768 = vmatprep.subr.bf16.mxu0 0
      %769 = vmatpush1.bf16.xpose.msra.mxu0 0
      %770 = vmatprep.subr.bf16.mxu0 0
      %771 = vmatpush1.bf16.xpose.msra.mxu0 0
      %772 = vmatprep.subr.bf16.mxu0 0
      %773 = vmatpush1.bf16.xpose.msra.mxu0 0
      %774 = vmatprep.subr.bf16.mxu0 0
      %775 = vmatpush1.bf16.xpose.msra.mxu0 0
      %776 = vmatprep.subr.bf16.mxu0 0
      %777 = vmatpush1.bf16.xpose.msra.mxu0 %v760
      %778 = vmatprep.subr.bf16.mxu0 0
      %779 = vmatpush2.bf16.xpose.msra.mxu0 0
      %780 = vmatprep.subr.bf16.mxu0 0
      %781 = vmatpush2.bf16.xpose.msra.mxu0 0
      %782 = vmatprep.subr.bf16.mxu0 0
      %783 = vmatpush2.bf16.xpose.msra.mxu0 0
      %784 = vmatprep.subr.bf16.mxu0 0
      %785 = vmatpush2.bf16.xpose.msra.mxu0 0
      %786 = vmatprep.subr.bf16.mxu0 0
      %787 = vmatpush2.bf16.xpose.msra.mxu0 0
      %788 = vmatprep.subr.bf16.mxu0 0
      %789 = vmatpush2.bf16.xpose.msra.mxu0 0
      %790 = vmatprep.subr.bf16.mxu0 0
      %791 = vmatpush2.bf16.xpose.msra.mxu0 0
      %792 = vmatprep.subr.bf16.mxu0 0
      %793 = vmatpush2.bf16.xpose.msra.mxu0 0
      %794 = vmatprep.mubr.bf16.mxu0 0
      %795 = vmatmul.mubr.bf16.gmra.mxu0 %v757
      %v796 = vpop.f32.mrf.mxu0
      %v797 = vadd.f32 0.0, %v796
      %v798 = vpop.f32.mrf.mxu0
      %v799 = vpop.f32.mrf.mxu0
      %v800 = vpop.f32.mrf.mxu0
      %801 = vdwg.mxu0
      %v803 = vsel %vm755, %v452, 0
      %v806 = vsel %vm755, %v602, 0
      %808 = vmatprep.subr.bf16.mxu0 0
      %809 = vmatpush1.bf16.xpose.msra.mxu0 0
      %810 = vmatprep.subr.bf16.mxu0 0
      %811 = vmatpush1.bf16.xpose.msra.mxu0 0
      %812 = vmatprep.subr.bf16.mxu0 0
      %813 = vmatpush1.bf16.xpose.msra.mxu0 0
      %814 = vmatprep.subr.bf16.mxu0 0
      %815 = vmatpush1.bf16.xpose.msra.mxu0 0
      %816 = vmatprep.subr.bf16.mxu0 0
      %817 = vmatpush1.bf16.xpose.msra.mxu0 0
      %818 = vmatprep.subr.bf16.mxu0 0
      %819 = vmatpush1.bf16.xpose.msra.mxu0 0
      %820 = vmatprep.subr.bf16.mxu0 0
      %821 = vmatpush1.bf16.xpose.msra.mxu0 0
      %822 = vmatprep.subr.bf16.mxu0 0
      %823 = vmatpush1.bf16.xpose.msra.mxu0 %v806
      %824 = vmatprep.subr.bf16.mxu0 0
      %825 = vmatpush2.bf16.xpose.msra.mxu0 0
      %826 = vmatprep.subr.bf16.mxu0 0
      %827 = vmatpush2.bf16.xpose.msra.mxu0 0
      %828 = vmatprep.subr.bf16.mxu0 0
      %829 = vmatpush2.bf16.xpose.msra.mxu0 0
      %830 = vmatprep.subr.bf16.mxu0 0
      %831 = vmatpush2.bf16.xpose.msra.mxu0 0
      %832 = vmatprep.subr.bf16.mxu0 0
      %833 = vmatpush2.bf16.xpose.msra.mxu0 0
      %834 = vmatprep.subr.bf16.mxu0 0
      %835 = vmatpush2.bf16.xpose.msra.mxu0 0
      %836 = vmatprep.subr.bf16.mxu0 0
      %837 = vmatpush2.bf16.xpose.msra.mxu0 0
      %838 = vmatprep.subr.bf16.mxu0 0
      %839 = vmatpush2.bf16.xpose.msra.mxu0 0
      %840 = vmatprep.mubr.bf16.mxu0 0
      %841 = vmatmul.mubr.bf16.gmra.mxu0 %v803
      %v842 = vpop.f32.mrf.mxu0
      %v843 = vadd.f32 0.0, %v842
      %v844 = vpop.f32.mrf.mxu0
      %v845 = vpop.f32.mrf.mxu0
      %v846 = vpop.f32.mrf.mxu0
      %847 = vdwg.mxu0
      %v849 = vsel %vm755, %v455, 0
      %v852 = vsel %vm755, %v605, 0
      %854 = vmatprep.subr.bf16.mxu0 0
      %855 = vmatpush1.bf16.xpose.msra.mxu0 0
      %856 = vmatprep.subr.bf16.mxu0 0
      %857 = vmatpush1.bf16.xpose.msra.mxu0 0
      %858 = vmatprep.subr.bf16.mxu0 0
      %859 = vmatpush1.bf16.xpose.msra.mxu0 0
      %860 = vmatprep.subr.bf16.mxu0 0
      %861 = vmatpush1.bf16.xpose.msra.mxu0 0
      %862 = vmatprep.subr.bf16.mxu0 0
      %863 = vmatpush1.bf16.xpose.msra.mxu0 0
      %864 = vmatprep.subr.bf16.mxu0 0
      %865 = vmatpush1.bf16.xpose.msra.mxu0 0
      %866 = vmatprep.subr.bf16.mxu0 0
      %867 = vmatpush1.bf16.xpose.msra.mxu0 0
      %868 = vmatprep.subr.bf16.mxu0 0
      %869 = vmatpush1.bf16.xpose.msra.mxu0 %v852
      %870 = vmatprep.subr.bf16.mxu0 0
      %871 = vmatpush2.bf16.xpose.msra.mxu0 0
      %872 = vmatprep.subr.bf16.mxu0 0
      %873 = vmatpush2.bf16.xpose.msra.mxu0 0
      %874 = vmatprep.subr.bf16.mxu0 0
      %875 = vmatpush2.bf16.xpose.msra.mxu0 0
      %876 = vmatprep.subr.bf16.mxu0 0
      %877 = vmatpush2.bf16.xpose.msra.mxu0 0
      %878 = vmatprep.subr.bf16.mxu0 0
      %879 = vmatpush2.bf16.xpose.msra.mxu0 0
      %880 = vmatprep.subr.bf16.mxu0 0
      %881 = vmatpush2.bf16.xpose.msra.mxu0 0
      %882 = vmatprep.subr.bf16.mxu0 0
      %883 = vmatpush2.bf16.xpose.msra.mxu0 0
      %884 = vmatprep.subr.bf16.mxu0 0
      %885 = vmatpush2.bf16.xpose.msra.mxu0 0
      %886 = vmatprep.mubr.bf16.mxu0 0
      %887 = vmatmul.mubr.bf16.gmra.mxu0 %v849
      %v888 = vpop.f32.mrf.mxu0
      %v889 = vadd.f32 0.0, %v888
      %v890 = vpop.f32.mrf.mxu0
      %v891 = vpop.f32.mrf.mxu0
      %v892 = vpop.f32.mrf.mxu0
      %893 = vdwg.mxu0
      %v895 = vsel %vm755, %v458, 0
      %v898 = vsel %vm755, %v608, 0
      %900 = vmatprep.subr.bf16.mxu0 0
      %901 = vmatpush1.bf16.xpose.msra.mxu0 0
      %902 = vmatprep.subr.bf16.mxu0 0
      %903 = vmatpush1.bf16.xpose.msra.mxu0 0
      %904 = vmatprep.subr.bf16.mxu0 0
      %905 = vmatpush1.bf16.xpose.msra.mxu0 0
      %906 = vmatprep.subr.bf16.mxu0 0
      %907 = vmatpush1.bf16.xpose.msra.mxu0 0
      %908 = vmatprep.subr.bf16.mxu0 0
      %909 = vmatpush1.bf16.xpose.msra.mxu0 0
      %910 = vmatprep.subr.bf16.mxu0 0
      %911 = vmatpush1.bf16.xpose.msra.mxu0 0
      %912 = vmatprep.subr.bf16.mxu0 0
      %913 = vmatpush1.bf16.xpose.msra.mxu0 0
      %914 = vmatprep.subr.bf16.mxu0 0
      %915 = vmatpush1.bf16.xpose.msra.mxu0 %v898
      %916 = vmatprep.subr.bf16.mxu0 0
      %917 = vmatpush2.bf16.xpose.msra.mxu0 0
      %918 = vmatprep.subr.bf16.mxu0 0
      %919 = vmatpush2.bf16.xpose.msra.mxu0 0
      %920 = vmatprep.subr.bf16.mxu0 0
      %921 = vmatpush2.bf16.xpose.msra.mxu0 0
      %922 = vmatprep.subr.bf16.mxu0 0
      %923 = vmatpush2.bf16.xpose.msra.mxu0 0
      %924 = vmatprep.subr.bf16.mxu0 0
      %925 = vmatpush2.bf16.xpose.msra.mxu0 0
      %926 = vmatprep.subr.bf16.mxu0 0
      %927 = vmatpush2.bf16.xpose.msra.mxu0 0
      %928 = vmatprep.subr.bf16.mxu0 0
      %929 = vmatpush2.bf16.xpose.msra.mxu0 0
      %930 = vmatprep.subr.bf16.mxu0 0
      %931 = vmatpush2.bf16.xpose.msra.mxu0 0
      %932 = vmatprep.mubr.bf16.mxu0 0
      %933 = vmatmul.mubr.bf16.gmra.mxu0 %v895
      %v934 = vpop.f32.mrf.mxu0
      %v935 = vadd.f32 0.0, %v934
      %v936 = vpop.f32.mrf.mxu0
      %v937 = vpop.f32.mrf.mxu0
      %v938 = vpop.f32.mrf.mxu0
      %939 = vdwg.mxu0
      %v940 = vmul.f32 %v797, 0.25
      %v941 = vmul.f32 %v843, 0.25
      %v942 = vmul.f32 %v889, 0.25
      %v943 = vmul.f32 %v935, 0.25
      %v944 = vld [vmem:[%s303] sm:$0x1]
      %v945 = vsub.f32 1.0, %v944
      %v946 = vmul.f32 %v945, -1e+09
      %v948 = vlaneseq
      %v949 = vshrl.u32 %v948, 7
      %v950 = vsub.s32 0, %v949
      %v951 = vrot.slane %v946, %v950
      %v953 = vadd.f32 %v940, %v951
      %v954 = vadd.f32 %v941, %v951
      %v955 = vadd.f32 %v942, %v951
      %v956 = vadd.f32 %v943, %v951
      %vm957 = vcmask 64512
      %v958 = vsel %vm957, %v953, -inf
      %959 = vmax.xlane.f32.xlu0 %v958
      %v960 = vpop.xlane.xlu0 %959
      %v961 = vsel %vm957, %v954, -inf
      %962 = vmax.xlane.f32.xlu0 %v961
      %v963 = vpop.xlane.xlu0 %962
      %v964 = vsel %vm957, %v955, -inf
      %965 = vmax.xlane.f32.xlu0 %v964
      %v966 = vpop.xlane.xlu0 %965
      %v967 = vsel %vm957, %v956, -inf
      %968 = vmax.xlane.f32.xlu0 %v967
      %v969 = vpop.xlane.xlu0 %968
      %v970 = vsub.f32 %v953, %v960
      %v971 = vsub.f32 %v954, %v963
      %v972 = vsub.f32 %v955, %v966
      %v973 = vsub.f32 %v956, %v969
      %v974 = vmul.f32 %v970, 1.442695
      %v975 = vpow.pop %v974
      %v976 = vmul.f32 %v971, 1.442695
      %v977 = vpow.pop %v976
      %v978 = vmul.f32 %v972, 1.442695
      %v979 = vpow.pop %v978
      %v980 = vmul.f32 %v973, 1.442695
      %v981 = vpow.pop %v980
      %v982 = vsel %vm957, %v975, 0.0
      %983 = vadd.xlane.f32.xlu0 %v982
      %v984 = vpop.xlane.xlu0 %983
      %v985 = vsel %vm957, %v977, 0.0
      %986 = vadd.xlane.f32.xlu0 %v985
      %v987 = vpop.xlane.xlu0 %986
      %v988 = vsel %vm957, %v979, 0.0
      %989 = vadd.xlane.f32.xlu0 %v988
      %v990 = vpop.xlane.xlu0 %989
      %v991 = vsel %vm957, %v981, 0.0
      %992 = vadd.xlane.f32.xlu0 %v991
      %v993 = vpop.xlane.xlu0 %992
      %v994 = vrcp.pop %v984
      %v995 = vmul.f32 %v975, %v994
      %v996 = vrcp.pop %v987
      %v997 = vmul.f32 %v977, %v996
      %v998 = vrcp.pop %v990
      %v999 = vmul.f32 %v979, %v998
      %v1000 = vrcp.pop %v993
      %v1001 = vmul.f32 %v981, %v1000
      %v1002 = vpack.c.bf16 %v995, %v995
      %v1003 = vpack.c.bf16 %v997, %v997
      %v1004 = vpack.c.bf16 %v999, %v999
      %v1005 = vpack.c.bf16 %v1001, %v1001
      %v1007 = vsel %vm957, %v1002, 0
      %vm1009 = vcmask 1043456
      %v1011 = vsel %vm1009, %v745, 0
      %1013 = vmatprep.subr.bf16.mxu0 0
      %1014 = vmatpush1.bf16.msra.mxu0 0
      %1015 = vmatprep.subr.bf16.mxu0 0
      %1016 = vmatpush1.bf16.msra.mxu0 0
      %1017 = vmatprep.subr.bf16.mxu0 0
      %1018 = vmatpush1.bf16.msra.mxu0 0
      %1019 = vmatprep.subr.bf16.mxu0 0
      %1020 = vmatpush1.bf16.msra.mxu0 0
      %1021 = vmatprep.subr.bf16.mxu0 0
      %1022 = vmatpush1.bf16.msra.mxu0 0
      %1023 = vmatprep.subr.bf16.mxu0 0
      %1024 = vmatpush1.bf16.msra.mxu0 0
      %1025 = vmatprep.subr.bf16.mxu0 0
      %1026 = vmatpush1.bf16.msra.mxu0 0
      %1027 = vmatprep.subr.bf16.mxu0 0
      %1028 = vmatpush1.bf16.msra.mxu0 %v1011
      %1029 = vmatprep.subr.bf16.mxu0 0
      %1030 = vmatpush2.bf16.msra.mxu0 0
      %1031 = vmatprep.subr.bf16.mxu0 0
      %1032 = vmatpush2.bf16.msra.mxu0 0
      %1033 = vmatprep.subr.bf16.mxu0 0
      %1034 = vmatpush2.bf16.msra.mxu0 0
      %1035 = vmatprep.subr.bf16.mxu0 0
      %1036 = vmatpush2.bf16.msra.mxu0 0
      %1037 = vmatprep.subr.bf16.mxu0 0
      %1038 = vmatpush2.bf16.msra.mxu0 0
      %1039 = vmatprep.subr.bf16.mxu0 0
      %1040 = vmatpush2.bf16.msra.mxu0 0
      %1041 = vmatprep.subr.bf16.mxu0 0
      %1042 = vmatpush2.bf16.msra.mxu0 0
      %1043 = vmatprep.subr.bf16.mxu0 0
      %1044 = vmatpush2.bf16.msra.mxu0 0
      %1045 = vmatprep.mubr.bf16.mxu0 0
      %1046 = vmatmul.mubr.bf16.gmra.mxu0 %v1007
      %v1047 = vpop.f32.mrf.mxu0
      %v1048 = vadd.f32 0.0, %v1047
      %v1049 = vpop.f32.mrf.mxu0
      %v1050 = vpop.f32.mrf.mxu0
      %v1051 = vpop.f32.mrf.mxu0
      %1052 = vdwg.mxu0
      %v1054 = vsel %vm957, %v1003, 0
      %v1057 = vsel %vm1009, %v748, 0
      %1059 = vmatprep.subr.bf16.mxu0 0
      %1060 = vmatpush1.bf16.msra.mxu0 0
      %1061 = vmatprep.subr.bf16.mxu0 0
      %1062 = vmatpush1.bf16.msra.mxu0 0
      %1063 = vmatprep.subr.bf16.mxu0 0
      %1064 = vmatpush1.bf16.msra.mxu0 0
      %1065 = vmatprep.subr.bf16.mxu0 0
      %1066 = vmatpush1.bf16.msra.mxu0 0
      %1067 = vmatprep.subr.bf16.mxu0 0
      %1068 = vmatpush1.bf16.msra.mxu0 0
      %1069 = vmatprep.subr.bf16.mxu0 0
      %1070 = vmatpush1.bf16.msra.mxu0 0
      %1071 = vmatprep.subr.bf16.mxu0 0
      %1072 = vmatpush1.bf16.msra.mxu0 0
      %1073 = vmatprep.subr.bf16.mxu0 0
      %1074 = vmatpush1.bf16.msra.mxu0 %v1057
      %1075 = vmatprep.subr.bf16.mxu0 0
      %1076 = vmatpush2.bf16.msra.mxu0 0
      %1077 = vmatprep.subr.bf16.mxu0 0
      %1078 = vmatpush2.bf16.msra.mxu0 0
      %1079 = vmatprep.subr.bf16.mxu0 0
      %1080 = vmatpush2.bf16.msra.mxu0 0
      %1081 = vmatprep.subr.bf16.mxu0 0
      %1082 = vmatpush2.bf16.msra.mxu0 0
      %1083 = vmatprep.subr.bf16.mxu0 0
      %1084 = vmatpush2.bf16.msra.mxu0 0
      %1085 = vmatprep.subr.bf16.mxu0 0
      %1086 = vmatpush2.bf16.msra.mxu0 0
      %1087 = vmatprep.subr.bf16.mxu0 0
      %1088 = vmatpush2.bf16.msra.mxu0 0
      %1089 = vmatprep.subr.bf16.mxu0 0
      %1090 = vmatpush2.bf16.msra.mxu0 0
      %1091 = vmatprep.mubr.bf16.mxu0 0
      %1092 = vmatmul.mubr.bf16.gmra.mxu0 %v1054
      %v1093 = vpop.f32.mrf.mxu0
      %v1094 = vadd.f32 0.0, %v1093
      %v1095 = vpop.f32.mrf.mxu0
      %v1096 = vpop.f32.mrf.mxu0
      %v1097 = vpop.f32.mrf.mxu0
      %1098 = vdwg.mxu0
      %v1100 = vsel %vm957, %v1004, 0
      %v1103 = vsel %vm1009, %v751, 0
      %1105 = vmatprep.subr.bf16.mxu0 0
      %1106 = vmatpush1.bf16.msra.mxu0 0
      %1107 = vmatprep.subr.bf16.mxu0 0
      %1108 = vmatpush1.bf16.msra.mxu0 0
      %1109 = vmatprep.subr.bf16.mxu0 0
      %1110 = vmatpush1.bf16.msra.mxu0 0
      %1111 = vmatprep.subr.bf16.mxu0 0
      %1112 = vmatpush1.bf16.msra.mxu0 0
      %1113 = vmatprep.subr.bf16.mxu0 0
      %1114 = vmatpush1.bf16.msra.mxu0 0
      %1115 = vmatprep.subr.bf16.mxu0 0
      %1116 = vmatpush1.bf16.msra.mxu0 0
      %1117 = vmatprep.subr.bf16.mxu0 0
      %1118 = vmatpush1.bf16.msra.mxu0 0
      %1119 = vmatprep.subr.bf16.mxu0 0
      %1120 = vmatpush1.bf16.msra.mxu0 %v1103
      %1121 = vmatprep.subr.bf16.mxu0 0
      %1122 = vmatpush2.bf16.msra.mxu0 0
      %1123 = vmatprep.subr.bf16.mxu0 0
      %1124 = vmatpush2.bf16.msra.mxu0 0
      %1125 = vmatprep.subr.bf16.mxu0 0
      %1126 = vmatpush2.bf16.msra.mxu0 0
      %1127 = vmatprep.subr.bf16.mxu0 0
      %1128 = vmatpush2.bf16.msra.mxu0 0
      %1129 = vmatprep.subr.bf16.mxu0 0
      %1130 = vmatpush2.bf16.msra.mxu0 0
      %1131 = vmatprep.subr.bf16.mxu0 0
      %1132 = vmatpush2.bf16.msra.mxu0 0
      %1133 = vmatprep.subr.bf16.mxu0 0
      %1134 = vmatpush2.bf16.msra.mxu0 0
      %1135 = vmatprep.subr.bf16.mxu0 0
      %1136 = vmatpush2.bf16.msra.mxu0 0
      %1137 = vmatprep.mubr.bf16.mxu0 0
      %1138 = vmatmul.mubr.bf16.gmra.mxu0 %v1100
      %v1139 = vpop.f32.mrf.mxu0
      %v1140 = vadd.f32 0.0, %v1139
      %v1141 = vpop.f32.mrf.mxu0
      %v1142 = vpop.f32.mrf.mxu0
      %v1143 = vpop.f32.mrf.mxu0
      %1144 = vdwg.mxu0
      %v1146 = vsel %vm957, %v1005, 0
      %v1149 = vsel %vm1009, %v754, 0
      %1151 = vmatprep.subr.bf16.mxu0 0
      %1152 = vmatpush1.bf16.msra.mxu0 0
      %1153 = vmatprep.subr.bf16.mxu0 0
      %1154 = vmatpush1.bf16.msra.mxu0 0
      %1155 = vmatprep.subr.bf16.mxu0 0
      %1156 = vmatpush1.bf16.msra.mxu0 0
      %1157 = vmatprep.subr.bf16.mxu0 0
      %1158 = vmatpush1.bf16.msra.mxu0 0
      %1159 = vmatprep.subr.bf16.mxu0 0
      %1160 = vmatpush1.bf16.msra.mxu0 0
      %1161 = vmatprep.subr.bf16.mxu0 0
      %1162 = vmatpush1.bf16.msra.mxu0 0
      %1163 = vmatprep.subr.bf16.mxu0 0
      %1164 = vmatpush1.bf16.msra.mxu0 0
      %1165 = vmatprep.subr.bf16.mxu0 0
      %1166 = vmatpush1.bf16.msra.mxu0 %v1149
      %1167 = vmatprep.subr.bf16.mxu0 0
      %1168 = vmatpush2.bf16.msra.mxu0 0
      %1169 = vmatprep.subr.bf16.mxu0 0
      %1170 = vmatpush2.bf16.msra.mxu0 0
      %1171 = vmatprep.subr.bf16.mxu0 0
      %1172 = vmatpush2.bf16.msra.mxu0 0
      %1173 = vmatprep.subr.bf16.mxu0 0
      %1174 = vmatpush2.bf16.msra.mxu0 0
      %1175 = vmatprep.subr.bf16.mxu0 0
      %1176 = vmatpush2.bf16.msra.mxu0 0
      %1177 = vmatprep.subr.bf16.mxu0 0
      %1178 = vmatpush2.bf16.msra.mxu0 0
      %1179 = vmatprep.subr.bf16.mxu0 0
      %1180 = vmatpush2.bf16.msra.mxu0 0
      %1181 = vmatprep.subr.bf16.mxu0 0
      %1182 = vmatpush2.bf16.msra.mxu0 0
      %1183 = vmatprep.mubr.bf16.mxu0 0
      %1184 = vmatmul.mubr.bf16.gmra.mxu0 %v1146
      %v1185 = vpop.f32.mrf.mxu0
      %v1186 = vadd.f32 0.0, %v1185
      %v1187 = vpop.f32.mrf.mxu0
      %v1188 = vpop.f32.mrf.mxu0
      %v1189 = vpop.f32.mrf.mxu0
      %1190 = vdwg.mxu0
      %v1191 = vcombine.low %v1048, %v1140
      %v1192 = vcombine.high %v1048, %v1140
      %v1194 = vunpack.c.l.s4 1983009808
      %v1195 = vunpack.c.0.s8 %v1194
      %v1196 = vlaneseq
      %v1197 = vshrl.u32 %v1196, 7
      %v1198 = vsub.s32 %v1195, %v1197
      %v1199 = vrot.slane %v1191, %v1198
      %v1201 = vunpack.c.l.s4 1983009808
      %v1202 = vunpack.c.0.s8 %v1201
      %v1203 = vlaneseq
      %v1204 = vshrl.u32 %v1203, 7
      %v1205 = vsub.s32 %v1202, %v1204
      %v1206 = vrot.slane %v1192, %v1205
      %v1207 = vcombine.low %v1094, %v1186
      %v1208 = vcombine.high %v1094, %v1186
      %v1210 = vunpack.c.l.s4 1983009808
      %v1211 = vunpack.c.0.s8 %v1210
      %v1212 = vlaneseq
      %v1213 = vshrl.u32 %v1212, 7
      %v1214 = vsub.s32 %v1211, %v1213
      %v1215 = vrot.slane %v1207, %v1214
      %v1217 = vunpack.c.l.s4 1983009808
      %v1218 = vunpack.c.0.s8 %v1217
      %v1219 = vlaneseq
      %v1220 = vshrl.u32 %v1219, 7
      %v1221 = vsub.s32 %v1218, %v1220
      %v1222 = vrot.slane %v1208, %v1221
      %v1223 = vcombine.low %v1199, %v1215
      %v1224 = vcombine.high %v1199, %v1215
      %v1226 = vunpack.c.l.s4 1934713408
      %v1227 = vunpack.c.0.s8 %v1226
      %v1228 = vlaneseq
      %v1229 = vshrl.u32 %v1228, 7
      %v1230 = vsub.s32 %v1227, %v1229
      %v1231 = vrot.slane %v1223, %v1230
      %v1233 = vunpack.c.l.s4 1934713408
      %v1234 = vunpack.c.0.s8 %v1233
      %v1235 = vlaneseq
      %v1236 = vshrl.u32 %v1235, 7
      %v1237 = vsub.s32 %v1234, %v1236
      %v1238 = vrot.slane %v1224, %v1237
      %v1239 = vcombine.low %v1206, %v1222
      %v1240 = vcombine.high %v1206, %v1222
      %v1242 = vunpack.c.l.s4 1934713408
      %v1243 = vunpack.c.0.s8 %v1242
      %v1244 = vlaneseq
      %v1245 = vshrl.u32 %v1244, 7
      %v1246 = vsub.s32 %v1243, %v1245
      %v1247 = vrot.slane %v1239, %v1246
      %v1249 = vunpack.c.l.s4 1934713408
      %v1250 = vunpack.c.0.s8 %v1249
      %v1251 = vlaneseq
      %v1252 = vshrl.u32 %v1251, 7
      %v1253 = vsub.s32 %v1250, %v1252
      %v1254 = vrot.slane %v1240, %v1253
      %v1255 = vcombine.high %v1231, 0.0
      %v1256 = vcombine.high %v1238, 0.0
      %v1257 = vcombine.high %v1247, 0.0
      %v1258 = vcombine.high %v1254, 0.0
      %v1259 = vcombine.low %v1231, %v1238
      %v1261 = vunpack.c.l.s4 1983009808
      %v1262 = vunpack.c.0.s8 %v1261
      %v1263 = vlaneseq
      %v1264 = vshrl.u32 %v1263, 7
      %v1265 = vsub.s32 %v1262, %v1264
      %v1266 = vrot.slane %v1259, %v1265
      %v1267 = vcombine.low %v1255, %v1256
      %v1269 = vunpack.c.l.s4 1983009808
      %v1270 = vunpack.c.0.s8 %v1269
      %v1271 = vlaneseq
      %v1272 = vshrl.u32 %v1271, 7
      %v1273 = vsub.s32 %v1270, %v1272
      %v1274 = vrot.slane %v1267, %v1273
      %v1275 = vcombine.low %v1247, %v1254
      %v1277 = vunpack.c.l.s4 1983009808
      %v1278 = vunpack.c.0.s8 %v1277
      %v1279 = vlaneseq
      %v1280 = vshrl.u32 %v1279, 7
      %v1281 = vsub.s32 %v1278, %v1280
      %v1282 = vrot.slane %v1275, %v1281
      %v1283 = vcombine.low %v1257, %v1258
      %v1285 = vunpack.c.l.s4 1983009808
      %v1286 = vunpack.c.0.s8 %v1285
      %v1287 = vlaneseq
      %v1288 = vshrl.u32 %v1287, 7
      %v1289 = vsub.s32 %v1286, %v1288
      %v1290 = vrot.slane %v1283, %v1289
      %v1291 = vcombine.low %v1266, %v1274
      %v1292 = vcombine.high %v1266, %v1274
      %v1294 = vunpack.c.l.s4 1934713408
      %v1295 = vunpack.c.0.s8 %v1294
      %v1296 = vlaneseq
      %v1297 = vshrl.u32 %v1296, 7
      %v1298 = vsub.s32 %v1295, %v1297
      %v1299 = vrot.slane %v1291, %v1298
      %v1301 = vunpack.c.l.s4 1934713408
      %v1302 = vunpack.c.0.s8 %v1301
      %v1303 = vlaneseq
      %v1304 = vshrl.u32 %v1303, 7
      %v1305 = vsub.s32 %v1302, %v1304
      %v1306 = vrot.slane %v1292, %v1305
      %v1307 = vcombine.low %v1282, %v1290
      %v1308 = vcombine.high %v1282, %v1290
      %v1310 = vunpack.c.l.s4 1934713408
      %v1311 = vunpack.c.0.s8 %v1310
      %v1312 = vlaneseq
      %v1313 = vshrl.u32 %v1312, 7
      %v1314 = vsub.s32 %v1311, %v1313
      %v1315 = vrot.slane %v1307, %v1314
      %v1317 = vunpack.c.l.s4 1934713408
      %v1318 = vunpack.c.0.s8 %v1317
      %v1319 = vlaneseq
      %v1320 = vshrl.u32 %v1319, 7
      %v1321 = vsub.s32 %v1318, %v1320
      %v1322 = vrot.slane %v1308, %v1321
      %v1323 = vcombine.low %v1299, %v1315
      %v1324 = vcombine.high %v1299, %v1315
      %v1325 = vcombine.low %v1306, %v1322
      %v1326 = vcombine.high %v1306, %v1322
      %1328 = vrot.lane.b32.xlu0 %v1324, 16
      %v1329 = vpop.permute.xlu0 %1328
      %1332 = vrot.lane.b32.xlu0 %v1325, 32
      %v1333 = vpop.permute.xlu0 %1332
      %1336 = vrot.lane.b32.xlu0 %v1326, 48
      %v1337 = vpop.permute.xlu0 %1336
      %v1339 = vsel %vm755, %v1323, %v1329
      %vm1340 = vcmask 261120
      %v1341 = vsel %vm1340, %v1339, %v1333
      %vm1342 = vcmask 392192
      %v1343 = vsel %vm1342, %v1341, %v1337
      %v1344 = vpack.c.bf16 %v1343, %v1343
      %v1345 = vld [vmem:[%s3] sm:$0xf]
      %v1346 = vld [vmem:[%s3 + $0x4] sm:$0xf]
      %v1347 = vld [vmem:[%s3 + $0x8] sm:$0xf]
      %v1348 = vld [vmem:[%s3 + $0xc] sm:$0xf]
      %v1349 = vld [vmem:[%s3 + $0x10] sm:$0xf]
      %v1350 = vld [vmem:[%s3 + $0x14] sm:$0xf]
      %v1351 = vld [vmem:[%s3 + $0x18] sm:$0xf]
      %v1352 = vld [vmem:[%s3 + $0x1c] sm:$0xf]
      %v1353 = vld [vmem:[%s4] sm:$0x1]
      %v1355 = vlaneseq
      %v1356 = vshrl.u32 %v1355, 7
      %v1357 = vsub.s32 0, %v1356
      %v1358 = vrot.slane %v1353, %v1357
      %v1368 = vunpack.c.l.b16 %v1345
      %v1369 = vunpack.c.l.b16 %v1346
      %v1370 = vunpack.c.l.b16 %v1347
      %v1371 = vunpack.c.l.b16 %v1348
      %v1372 = vunpack.c.l.b16 %v1349
      %v1373 = vunpack.c.l.b16 %v1350
      %v1374 = vunpack.c.l.b16 %v1351
      %v1375 = vunpack.c.l.b16 %v1352
      %v1376 = vpack.c.b16 %v1369, %v1368
      %v1377 = vpack.c.b16 %v1371, %v1370
      %v1378 = vpack.c.b16 %v1373, %v1372
      %v1379 = vpack.c.b16 %v1375, %v1374
      %vm1384 = vcmask 523264
      %v1386 = vsel %vm1384, %v1344, 0
      %1388 = vmatprep.subr.bf16.mxu0 0
      %1389 = vmatpush1.bf16.msra.mxu0 0
      %1390 = vmatprep.subr.bf16.mxu0 0
      %1391 = vmatpush1.bf16.msra.mxu0 0
      %1392 = vmatprep.subr.bf16.mxu0 0
      %1393 = vmatpush1.bf16.msra.mxu0 0
      %1394 = vmatprep.subr.bf16.mxu0 0
      %1395 = vmatpush1.bf16.msra.mxu0 0
      %1396 = vmatprep.subr.bf16.mxu0 0
      %1397 = vmatpush1.bf16.msra.mxu0 %v1379
      %1398 = vmatprep.subr.bf16.mxu0 0
      %1399 = vmatpush1.bf16.msra.mxu0 %v1378
      %1400 = vmatprep.subr.bf16.mxu0 0
      %1401 = vmatpush1.bf16.msra.mxu0 %v1377
      %1402 = vmatprep.subr.bf16.mxu0 0
      %1403 = vmatpush1.bf16.msra.mxu0 %v1376
      %1404 = vmatprep.subr.bf16.mxu0 0
      %1405 = vmatpush2.bf16.msra.mxu0 0
      %1406 = vmatprep.subr.bf16.mxu0 0
      %1407 = vmatpush2.bf16.msra.mxu0 0
      %1408 = vmatprep.subr.bf16.mxu0 0
      %1409 = vmatpush2.bf16.msra.mxu0 0
      %1410 = vmatprep.subr.bf16.mxu0 0
      %1411 = vmatpush2.bf16.msra.mxu0 0
      %1412 = vmatprep.subr.bf16.mxu0 0
      %1413 = vmatpush2.bf16.msra.mxu0 0
      %1414 = vmatprep.subr.bf16.mxu0 0
      %1415 = vmatpush2.bf16.msra.mxu0 0
      %1416 = vmatprep.subr.bf16.mxu0 0
      %1417 = vmatpush2.bf16.msra.mxu0 0
      %1418 = vmatprep.subr.bf16.mxu0 0
      %1419 = vmatpush2.bf16.msra.mxu0 0
      %1420 = vmatprep.mubr.bf16.mxu0 0
      %1421 = vmatmul.mubr.bf16.gmra.mxu0 %v1386
      %v1422 = vpop.f32.mrf.mxu0
      %v1423 = vadd.f32 %v1358, %v1422
      %v1424 = vpop.f32.mrf.mxu0
      %v1425 = vpop.f32.mrf.mxu0
      %v1426 = vpop.f32.mrf.mxu0
      %1427 = vdwg.mxu0
      %v1428 = vld [vmem:[%s300] sm:$0xf]
      %v1429 = vunpack.c.l.bf16 %v1428
      %v1430 = vadd.f32 %v1429, %v1423
      %v1431 = vsel %vm1384, %v1430, 0.0
      %1432 = vadd.xlane.f32.xlu0 %v1431
      %v1433 = vpop.xlane.xlu0 %1432
      %v1434 = vrcp.pop 64.0
      %v1435 = vmul.f32 %v1433, %v1434
      %v1436 = vsub.f32 %v1430, %v1435
      %v1437 = vmul.f32 %v1436, %v1436
      %v1438 = vsel %vm1384, %v1437, 0.0
      %1439 = vadd.xlane.f32.xlu0 %v1438
      %v1440 = vpop.xlane.xlu0 %1439
      %v1441 = vmul.f32 %v1440, %v1434
      %v1442 = vadd.f32 %v1441, 1e-05
      %v1443 = vrsqrt.pop %v1442
      %v1444 = vmul.f32 %v1436, %v1443
      %v1445 = vld [vmem:[%s5] sm:$0x1]
      %v1447 = vlaneseq
      %v1448 = vshrl.u32 %v1447, 7
      %v1449 = vsub.s32 0, %v1448
      %v1450 = vrot.slane %v1445, %v1449
      %v1452 = vmul.f32 %v1444, %v1450
      %v1453 = vld [vmem:[%s6] sm:$0x1]
      %v1455 = vlaneseq
      %v1456 = vshrl.u32 %v1455, 7
      %v1457 = vsub.s32 0, %v1456
      %v1458 = vrot.slane %v1453, %v1457
      %v1460 = vadd.f32 %v1452, %v1458
      %v1461 = vpack.c.bf16 %v1460, %v1460
      %vm1462 = vcmask 519168
      %1463 = vst.msk [vmem:[%s307] sm:$0xf] %vm1462, %v1461
      %p1464 = scmp.lt.s32.totalorder %s18, 1
      %s1465 = scalar_select %p1464, %s18, 1
      %s1466 = smul.addr %s1465, 4
      %s1467 = scalar_lea.vmem %s7, %s1466
      // Predicated region
      $region49: #{acos_forward.6} parent=47 // pred_check
        %p1468 = pneg %p198
      $region50: #{acos_forward.6} parent=47 // pred_check_branch
        %1470 = sbr.rel (%p1468) target = $region52
      $region51: #{acos_forward.6} parent=47 // pred_region
        _
      $region52: #{acos_forward.6} parent=47 // pred_fallthru
        _
    $region48: #{acos_forward.6} parent=5 // pred_fallthru
      _
    %p1471 = scmp.le.s32.totalorder 2, %s13
    // Predicated region
    $region53: #{acos_forward.6} parent=5 // pred_check
      %p1472 = pneg %p1471
    $region54: #{acos_forward.6} parent=5 // pred_check_branch
      %1474 = sbr.rel (%p1472) target = $region56
    $region55: #{acos_forward.6} parent=5 // pred_region
      %s1475 = ssub.s32 %s13, 2
      // Predicated region
      $region57: #{acos_forward.6} parent=55 // pred_check
        %p1476 = pneg %p204
      $region58: #{acos_forward.6} parent=55 // pred_check_branch
        %1478 = sbr.rel (%p1476) target = $region60
      $region59: #{acos_forward.6} parent=55 // pred_region
        %p1479 = scmp.lt.s32.totalorder %s19, 1
        %s1480 = scalar_select %p1479, %s19, 1
        %s1481 = smul.addr %s1480, 4
        %s1482 = scalar_lea.vmem %s7, %s1481
      $region60: #{acos_forward.6} parent=55 // pred_fallthru
        _
    $region56: #{acos_forward.6} parent=5 // pred_fallthru
      _
  $region6: #{acos_forward.6} parent=0 // loop_footer
    %s17 = sadd.s32 1, %s13
  $region7: #{acos_forward.6} parent=0 // loop_footer_branch
    %12 = sbr.rel target = $region3
  $region8: #{acos_forward.6} parent=0 // loop_exit
    _

// kernel: acos_forward.9
$region0: #{acos_forward.9}
  #allocation0 [shape = 'u32[]', space=smem, size = 0x4, offset = 0x4, fixed_abs, tag = 'smem constant byte address 0x4 - core index']
  #allocation1 [shape = 'u32[144,128]{1,0:T(1,128)}', space=vmem, size = 0x12000, scoped, tag = 'internal scratch']
  %s0 = inlined_call_operand.vmem [shape: f32[16,256], index: 0, kind: input, shape index: {}]
  %s1 = inlined_call_operand.hbm [shape: f32[2,8,8], index: 1, kind: output, shape index: {}]
  %s2 = sld [smem:[#allocation0]]
  $region37: #{acos_forward.9} parent=0
    _
  %s4 = ssub.s32 1, %s2
  %s5 = scalar_select 0, %s4, %s2
  $region1: #{acos_forward.9} parent=0
    #allocation2 [shape = 'u8[8192]{0}', space=vmem, size = 0x2000, scoped, tag = 'output window, operand 0']
    #allocation3 [shape = 's32[2]{0}', space=sflag, size = 0x8, scoped, tag = 'scoped memory for acos_forward.9']
    %6 = vsyncpa [#allocation3], 0
    %s7 = scalar_lea.sflag [#allocation3], 1
    %8 = vsyncpa %s7, 0
    loop: start=0, step=1, limit=4
    $region2: #{acos_forward.9} parent=1 // loop_pre_header
      _
    $region3: #{acos_forward.9} parent=1 // loop_header
      %s10 = sphi 0, %s14
      %p11 = scmp.ge.s32.totalorder %s10, 4
      %s20 = sphi 0, %s22
      %s23 = sphi 0, %s20
      %s24 = sphi 0, %s23
      %s40 = sphi 0, %s24
      %s46 = sphi 0, %s48
      %s49 = sphi 0, %s46
      %s50 = sphi 0, %s49
      %s66 = sphi 0, %s50
    $region4: #{acos_forward.9} parent=1 // loop_header_branch
      %13 = sbr.rel (%p11) target = $region8
    $region5: #{acos_forward.9} parent=1 // loop_body
      %s15 = ssub.s32 %s10, 1
      %s16 = ssub.s32 %s10, 2
      %s17 = sadd.s32 %s10, 1
      %s18 = ssub.s32 %s10, %s17
      %p19 = scmp.eq.s32.totalorder %s18, 0
      %s21 = sadd.s32 %s20, 1
      %s22 = scalar_select %p19, %s20, %s21
      %p25 = pneg %p19
      %p26 = scmp.eq.s32.totalorder %s10, 1
      %p27 = por %p25, %p26
      %p28 = scmp.ne.s32.totalorder %s20, %s23
      %p29 = scmp.eq.s32.totalorder %s10, 0
      %p30 = por %p28, %p29
      %p31 = scmp.ne.s32.totalorder %s20, %s23
      %p32 = scmp.eq.s32.totalorder %s15, 1
      %p33 = por %p31, %p32
      %p34 = scmp.ne.s32.totalorder %s23, %s24
      %p35 = scmp.eq.s32.totalorder %s15, 0
      %p36 = por %p34, %p35
      %p37 = scmp.ne.s32.totalorder %s23, %s24
      %p38 = scmp.eq.s32.totalorder %s16, 1
      %p39 = por %p37, %p38
      %p41 = scmp.ne.s32.totalorder %s24, %s40
      %p42 = scmp.eq.s32.totalorder %s16, 0
      %p43 = por %p41, %p42
      %s44 = ssub.s32 %s10, %s17
      %p45 = scmp.eq.s32.totalorder %s44, 0
      %s47 = sadd.s32 %s46, 1
      %s48 = scalar_select %p45, %s46, %s47
      %p51 = pneg %p45
      %p52 = scmp.eq.s32.totalorder %s10, 1
      %p53 = por %p51, %p52
      %p54 = scmp.ne.s32.totalorder %s46, %s49
      %p55 = scmp.eq.s32.totalorder %s10, 0
      %p56 = por %p54, %p55
      %p57 = scmp.ne.s32.totalorder %s46, %s49
      %p58 = scmp.eq.s32.totalorder %s15, 1
      %p59 = por %p57, %p58
      %p60 = scmp.ne.s32.totalorder %s49, %s50
      %p61 = scmp.eq.s32.totalorder %s15, 0
      %p62 = por %p60, %p61
      %p63 = scmp.ne.s32.totalorder %s49, %s50
      %p64 = scmp.eq.s32.totalorder %s16, 1
      %p65 = por %p63, %p64
      %p67 = scmp.ne.s32.totalorder %s50, %s66
      %p68 = scmp.eq.s32.totalorder %s16, 0
      %p69 = por %p67, %p68
      %p70 = scmp.le.s32.totalorder 1, %s10
      %p71 = scmp.lt.s32.totalorder %s10, 3
      %p72 = pnand %p70, %p71
      %p73 = pneg %p72
      // Predicated region
      $region9: #{acos_forward.9} parent=5 // pred_check
        _
      $region10: #{acos_forward.9} parent=5 // pred_check_branch
        %75 = sbr.rel (%p72) target = $region12
      $region11: #{acos_forward.9} parent=5 // pred_region
        %s76 = ssub.s32 %s10, 1
      $region12: #{acos_forward.9} parent=5 // pred_fallthru
        _
      %p77 = scmp.lt.s32.totalorder %s10, 2
      // Predicated region
      $region13: #{acos_forward.9} parent=5 // pred_check
        %p78 = pneg %p77
      $region14: #{acos_forward.9} parent=5 // pred_check_branch
        %80 = sbr.rel (%p78) target = $region16
      $region15: #{acos_forward.9} parent=5 // pred_region
        // Predicated region
        $region17: #{acos_forward.9} parent=15 // pred_check
          %p81 = pneg %p30
        $region18: #{acos_forward.9} parent=15 // pred_check_branch
          %83 = sbr.rel (%p81) target = $region20
        $region19: #{acos_forward.9} parent=15 // pred_region
          %p84 = scmp.lt.s32.totalorder %s10, 1
          %s85 = scalar_select %p84, %s10, 1
          %s86 = smul.addr %s85, 2
          %s87 = smul.addr %s86, 8
          %s88 = scalar_lea.vmem %s0, %s87
        $region20: #{acos_forward.9} parent=15 // pred_fallthru
          _
      $region16: #{acos_forward.9} parent=5 // pred_fallthru
        _
      %p89 = scmp.le.s32.totalorder 1, %s10
      %p90 = scmp.lt.s32.totalorder %s10, 3
      %p91 = pnand %p89, %p90
      %p92 = pneg %p91
      // Predicated region
      $region21: #{acos_forward.9} parent=5 // pred_check
        _
      $region22: #{acos_forward.9} parent=5 // pred_check_branch
        %94 = sbr.rel (%p91) target = $region24
      $region23: #{acos_forward.9} parent=5 // pred_region
        %s95 = ssub.s32 %s10, 1
        %p96 = scmp.lt.s32.totalorder %s15, 1
        %s97 = scalar_select %p96, %s15, 1
        %s98 = smul.addr %s97, 2
        %s99 = smul.addr %s98, 8
        %s100 = scalar_lea.vmem %s0, %s99
        %p101 = pneg %p36
        %p102 = pneg %p33
        %p103 = pneg %p62
        %p104 = pneg %p59
        %s105 = sand.u32 %s49, 1
        %s106 = scalar_lea.sflag [#allocation3], %s105
        %s107 = sand.u32 %s49, 1
        %s108 = smul.addr %s107, 8
        %s109 = scalar_lea.vmem [#allocation2], %s108
        %p110 = scmp.lt.s32.totalorder %s15, 1
        %s111 = scalar_select %p110, %s15, 1
        %s112 = smul.addr %s111, 2
        %s113 = smul.addr %s112, 8
        %s114 = scalar_lea.vmem %s0, %s113
        %v116 = vld [vmem:[%s114] sm:$0xff]
        %v117 = vld [vmem:[%s114 + $0x8] sm:$0xff]
        %v118 = vpack.c.bf16 %v116, %v116
        %120 = vrot.lane.b32.xlu0 %v118, 64
        %v121 = vpop.permute.xlu0 %120
        %vm122 = vcmask 523264
        %v124 = vsel %vm122, %v118, 0
        %v127 = vsel %vm122, %v121, 0
        %129 = vmatprep.subr.bf16.mxu0 0
        %130 = vmatpush1.bf16.xpose.msra.mxu0 0
        %131 = vmatprep.subr.bf16.mxu0 0
        %132 = vmatpush1.bf16.xpose.msra.mxu0 0
        %133 = vmatprep.subr.bf16.mxu0 0
        %134 = vmatpush1.bf16.xpose.msra.mxu0 0
        %135 = vmatprep.subr.bf16.mxu0 0
        %136 = vmatpush1.bf16.xpose.msra.mxu0 0
        %137 = vmatprep.subr.bf16.mxu0 0
        %138 = vmatpush1.bf16.xpose.msra.mxu0 0
        %139 = vmatprep.subr.bf16.mxu0 0
        %140 = vmatpush1.bf16.xpose.msra.mxu0 0
        %141 = vmatprep.subr.bf16.mxu0 0
        %142 = vmatpush1.bf16.xpose.msra.mxu0 0
        %143 = vmatprep.subr.bf16.mxu0 0
        %144 = vmatpush1.bf16.xpose.msra.mxu0 %v127
        %145 = vmatprep.subr.bf16.mxu0 0
        %146 = vmatpush2.bf16.xpose.msra.mxu0 0
        %147 = vmatprep.subr.bf16.mxu0 0
        %148 = vmatpush2.bf16.xpose.msra.mxu0 0
        %149 = vmatprep.subr.bf16.mxu0 0
        %150 = vmatpush2.bf16.xpose.msra.mxu0 0
        %151 = vmatprep.subr.bf16.mxu0 0
        %152 = vmatpush2.bf16.xpose.msra.mxu0 0
        %153 = vmatprep.subr.bf16.mxu0 0
        %154 = vmatpush2.bf16.xpose.msra.mxu0 0
        %155 = vmatprep.subr.bf16.mxu0 0
        %156 = vmatpush2.bf16.xpose.msra.mxu0 0
        %157 = vmatprep.subr.bf16.mxu0 0
        %158 = vmatpush2.bf16.xpose.msra.mxu0 0
        %159 = vmatprep.subr.bf16.mxu0 0
        %160 = vmatpush2.bf16.xpose.msra.mxu0 0
        %161 = vmatprep.mubr.bf16.mxu0 0
        %162 = vmatmul.mubr.bf16.gmra.mxu0 %v124
        %v163 = vpop.f32.mrf.mxu0
        %v164 = vadd.f32 0.0, %v163
        %v165 = vpop.f32.mrf.mxu0
        %v166 = vpop.f32.mrf.mxu0
        %v167 = vpop.f32.mrf.mxu0
        %168 = vdwg.mxu0
        %v169 = vmul.f32 %v164, 0.125
        %vm170 = vcmask 23552
        %v171 = vsel %vm170, %v117, -inf
        %172 = vmax.xlane.f32.xlu0 %v171
        %v173 = vpop.xlane.xlu0 %172
        %v174 = vsub.f32 %v117, %v173
        %v175 = vmul.f32 %v174, 1.442695
        %v176 = vpow.pop %v175
        %v177 = vsel %vm170, %v176, 0.0
        %178 = vadd.xlane.f32.xlu0 %v177
        %v179 = vpop.xlane.xlu0 %178
        %v180 = vrcp.pop %v179
        %v181 = vmul.f32 %v176, %v180
        %v182 = vsub.f32 1.0, %v181
        %vm183 = vcmask 48152
        %v184 = vsel %vm183, %v117, -inf
        %185 = vmax.xlane.f32.xlu0 %v184
        %v186 = vpop.xlane.xlu0 %185
        %v187 = vsub.f32 %v117, %v186
        %v188 = vmul.f32 %v187, 1.442695
        %v189 = vpow.pop %v188
        %191 = vrot.lane.b32.xlu0 %v189, 125
        %v192 = vpop.permute.xlu0 %191
        %v194 = vsel %vm170, %v192, 0.0
        %195 = vadd.xlane.f32.xlu0 %v194
        %v196 = vpop.xlane.xlu0 %195
        %v197 = vrcp.pop %v196
        %v198 = vmul.f32 %v189, %v197
        %v199 = vsub.f32 1.0, %v198
        %v200 = vxor.u32 %v169, 2147483648
        %v201 = vmul.f32 %v200, 1.442695
        %v202 = vpow.pop %v201
        %v203 = vadd.f32 %v202, 1.0
        %v204 = vrcp.pop %v203
        %v205 = vmul.f32 1.0, %v204
        %207 = vset.pattern.permute.xlu0 0
        %208 = vperm.xlu0 %207, %v182
        %v209 = vpop.permute.xlu0 %208
        %v211 = vmul.f32 %v205, %v209
        %213 = vset.pattern.permute.xlu0 3
        %214 = vperm.xlu0 %213, %v199
        %v215 = vpop.permute.xlu0 %214
        %v216 = vlaneseq
        %v217 = vand.u32 %v216, 127
        %v218 = vlaneseq
        %v219 = vshrl.u32 %v218, 7
        %v220 = vsub.s32 %v217, %v219
        %v221 = vrot.slane %v215, %v220
        %vm222 = vcmask 1042434
        %v223 = vsel %vm222, %v221, %v221
        %vm224 = vcmask 1043459
        %v225 = vsel %vm224, %v221, %v223
        %vm226 = vcmask 1044484
        %v227 = vsel %vm226, %v221, %v225
        %vm228 = vcmask 1045509
        %v229 = vsel %vm228, %v221, %v227
        %vm230 = vcmask 1046534
        %v231 = vsel %vm230, %v221, %v229
        %vm232 = vcmask 1047559
        %v233 = vsel %vm232, %v221, %v231
        %v235 = vmul.f32 %v211, %v233
        %vm236 = vcmask 64512
        %237 = vst.msk [vmem:[%s109] sm:$0xff] %vm236, %v235
        %s238 = sand.u32 %s49, 1
        %s239 = scalar_lea.sflag [#allocation3], %s238
        %s240 = sand.u32 %s49, 1
        %s241 = smul.addr %s240, 8
        %s242 = scalar_lea.vmem [#allocation2], %s241
        // Predicated region
        $region25: #{acos_forward.9} parent=23 // pred_check
          %p243 = pneg %p59
        $region26: #{acos_forward.9} parent=23 // pred_check_branch
          %245 = sbr.rel (%p243) target = $region28
        $region27: #{acos_forward.9} parent=23 // pred_region
          %s247 = ssub.s32 128, 128
          %248 = vsyncadd %s239, %s247
          %s249 = smul.addr %s15, 128
          %s250 = scalar_lea.hbm %s1, %s249
          %s252 = sshll.u32 %s242, 4
          %s253 = int_to_ptr.vmem [resolvable:$true] %s252
          %255 = dma.vmem_to_hbm [thread:$0]  %s253, 128, %s250, %s239
        $region28: #{acos_forward.9} parent=23 // pred_fallthru
          _
      $region24: #{acos_forward.9} parent=5 // pred_fallthru
        _
      %p256 = scmp.le.s32.totalorder 2, %s10
      // Predicated region
      $region29: #{acos_forward.9} parent=5 // pred_check
        %p257 = pneg %p256
      $region30: #{acos_forward.9} parent=5 // pred_check_branch
        %259 = sbr.rel (%p257) target = $region32
      $region31: #{acos_forward.9} parent=5 // pred_region
        %s260 = ssub.s32 %s10, 2
        // Predicated region
        $region33: #{acos_forward.9} parent=31 // pred_check
          %p261 = pneg %p65
        $region34: #{acos_forward.9} parent=31 // pred_check_branch
          %263 = sbr.rel (%p261) target = $region36
        $region35: #{acos_forward.9} parent=31 // pred_region
          %s264 = sand.u32 %s50, 1
          %s265 = scalar_lea.sflag [#allocation3], %s264
          %s266 = sand.u32 %s50, 1
          %s267 = smul.addr %s266, 8
          %s268 = scalar_lea.vmem [#allocation2], %s267
          %269 = dma.done %s265, 128
        $region36: #{acos_forward.9} parent=31 // pred_fallthru
          _
      $region32: #{acos_forward.9} parent=5 // pred_fallthru
        _
    $region6: #{acos_forward.9} parent=1 // loop_footer
      %s14 = sadd.s32 1, %s10
    $region7: #{acos_forward.9} parent=1 // loop_footer_branch
      %9 = sbr.rel target = $region3
    $region8: #{acos_forward.9} parent=1 // loop_exit
      _
    %270 = vsyncpa [#allocation3], 1
    %s271 = scalar_lea.sflag [#allocation3], 1
    %272 = vsyncpa %s271, 1

</llo_original>
